<compile_context>
chip_gen: v6e
topology: v6e:2x2x1
jax: 0.10.0
libtpu: 0.0.40
codegen_flags: <defaults>
</compile_context>

<pallas_src>
import jax
import jax.numpy as jnp
from jax.experimental import pallas as pl
from jax.experimental.pallas import tpu as pltpu

# Shapes implied by the module: fc1 expects 128*23 features
#   L=100 -> conv1(k=3) -> 98 -> pool(2) -> 49 -> conv2(k=3) -> 47 -> pool(2) -> 23
L_IN = 100
C_IN = 2
C1 = 64            # conv1 out channels
C2 = 128           # conv2 out channels
KW = 3             # conv kernel width
P2 = 23            # length after the second (floor) pool
HID = 64
OUT = 2

NR = L_IN // 4     # 25 input rows; each row packs 4 time steps x 2 channels (8 lanes)
NT2 = P2 + 1       # 24: pooled-2 length padded by one garbage row (killed by zero fc1 wts)
FC1_K = NT2 * C2   # 3072: zero-padded fc1 contraction size


def cnn_kernel(x_ref, w1_ref, b1_ref, w2c_ref, b2_ref,
               wf1_ref, bf1_ref, wf2_ref, bf2_ref, o_ref):
    bt = x_ref.shape[0]
    f32 = jnp.float32

    x = x_ref[...]                                   # (bt, 25, 8): x[b,u,2s+c] = x[b,4u+s,c]
    # next-row view (row u -> u+1); its last row only feeds values that are discarded later
    xn = jnp.concatenate([x[:, 1:, :], x[:, NR - 1:NR, :]], axis=1)   # (bt, 25, 8)

    w1 = w1_ref[...]                                 # (6, 1, 64), row = 2*k + c
    b1 = b1_ref[...]                                 # (1, 64)

    # ---- conv1 + pool1: polyphase over (time % 4), fully batch-vectorized on the VPU ----
    # phase p holds conv1 output at time 4u+p; pool1 pairs phases (0,1) and (2,3).
    base = jnp.broadcast_to(b1, (bt, NR, C1)).astype(f32)
    accs = [base, base, base, base]
    for l in range(12):                              # source lane l = 2*(p+k) + c
        c = l % 2
        s = l // 2                                   # = p + k
        if l < 8:
            src = jnp.broadcast_to(x[:, :, l:l + 1], (bt, NR, C1))
        else:
            src = jnp.broadcast_to(xn[:, :, l - 8:l - 7], (bt, NR, C1))
        for p in range(4):
            k = s - p
            if 0 <= k < KW:
                accs[p] = accs[p] + src * w1[2 * k + c]
    h = [jnp.maximum(a, 0.0) for a in accs]
    # P[b,u,0:64]   = pool1 row 2u   = max(conv1[4u],   conv1[4u+1])
    # P[b,u,64:128] = pool1 row 2u+1 = max(conv1[4u+2], conv1[4u+3])
    P = jnp.concatenate([jnp.maximum(h[0], h[1]),
                         jnp.maximum(h[2], h[3])], axis=2)            # (bt, 25, 128)

    # ---- conv2 (im2col) + pool2: two big MXU matmuls (even/odd conv2 rows) ----
    Pa = P[:, 0:NT2, :]                              # pool1 rows (2u, 2u+1), u = 0..23
    Pn = P[:, 1:NT2 + 1, :]                          # pool1 rows (2u+2, 2u+3)
    xe = jnp.concatenate([Pa, Pn[:, :, 0:C1]], axis=2)   # even rows t=2u:   [p1[2u]|p1[2u+1]|p1[2u+2]]
    xo = jnp.concatenate([Pa[:, :, C1:], Pn], axis=2)    # odd rows t=2u+1:  [p1[2u+1]|p1[2u+2]|p1[2u+3]]

    w2c = w2c_ref[...]                               # (192, 128)
    b2 = b2_ref[...]                                 # (1, 128)
    he = jnp.maximum(jnp.dot(xe.reshape(bt * NT2, KW * C1), w2c,
                             preferred_element_type=f32) + b2, 0.0)   # (bt*24, 128)
    ho = jnp.maximum(jnp.dot(xo.reshape(bt * NT2, KW * C1), w2c,
                             preferred_element_type=f32) + b2, 0.0)   # (bt*24, 128)
    p2 = jnp.maximum(he, ho).reshape(bt, NT2, C2)    # (bt, 24, 128); row 23 is garbage

    # ---- fc1 (single matmul over zero-padded flattened features) + fc2 ----
    flat = p2.reshape(bt, FC1_K)                     # (bt, 3072); garbage row hits zero weights
    h3 = jnp.maximum(jnp.dot(flat, wf1_ref[...],
                             preferred_element_type=f32) + bf1_ref[...], 0.0)    # (bt, 64)
    out = jnp.dot(h3, wf2_ref[...], preferred_element_type=f32) + bf2_ref[...]   # (bt, 2)
    o_ref[...] = out.astype(o_ref.dtype)


def cnn_forward(x_ncw, params, block_b=None):
    """x_ncw: (B, 2, 100) float32, PyTorch NCW layout. Returns (B, 2)."""
    w1, b1, w2, b2, wf1, bf1, wf2, bf2 = params
    B = x_ncw.shape[0]

    if block_b is None:
        if B >= 16:
            # >=2 grid steps so both v7x TensorCores get work; cap block for VMEM.
            block_b = min(128, 8 * pl.cdiv(pl.cdiv(B, 2), 8))
        else:
            block_b = 8 * pl.cdiv(B, 8)
    assert block_b % 8 == 0
    nblk = pl.cdiv(B, block_b)
    Bp = nblk * block_b

    # ---- wrapper-side layout plumbing (no model compute) ----
    x_t = jnp.transpose(x_ncw, (0, 2, 1)).astype(jnp.float32)        # (B, 100, 2) time-major
    if Bp != B:
        x_t = jnp.pad(x_t, ((0, Bp - B), (0, 0), (0, 0)))            # zero-pad batch
    xk = x_t.reshape(Bp, NR, 8)                                      # lane-dense: 4 steps x 2 ch / row

    w1k = jnp.transpose(w1, (2, 1, 0)).reshape(2 * KW, 1, C1)        # (6, 1, 64), row = 2k + c
    w2c = jnp.transpose(w2, (2, 1, 0)).reshape(KW * C1, C2)          # (192, 128) im2col, row = k*64 + c
    # PyTorch flatten is channel-major (c*23 + t); reorder to (t, c, out) and zero-pad t to 24
    wf1k = jnp.concatenate(
        [jnp.transpose(wf1.reshape(HID, C2, P2), (2, 1, 0)),
         jnp.zeros((1, C2, HID), wf1.dtype)], axis=0).reshape(FC1_K, HID)   # (3072, 64)
    wf2k = wf2.T                                                     # (64, 2)
    b1k = b1.reshape(1, C1)
    b2k = b2.reshape(1, C2)
    bf1k = bf1.reshape(1, HID)
    bf2k = bf2.reshape(1, OUT)

    out = pl.pallas_call(
        cnn_kernel,
        out_shape=jax.ShapeDtypeStruct((Bp, OUT), jnp.float32),
        grid_spec=pltpu.PrefetchScalarGridSpec(
            num_scalar_prefetch=0,
            grid=(nblk,),
            in_specs=[
                pl.BlockSpec((block_b, NR, 8), lambda i: (i, 0, 0)),
                pl.BlockSpec((2 * KW, 1, C1),  lambda i: (0, 0, 0)),
                pl.BlockSpec((1, C1),          lambda i: (0, 0)),
                pl.BlockSpec((KW * C1, C2),    lambda i: (0, 0)),
                pl.BlockSpec((1, C2),          lambda i: (0, 0)),
                pl.BlockSpec((FC1_K, HID),     lambda i: (0, 0)),
                pl.BlockSpec((1, HID),         lambda i: (0, 0)),
                pl.BlockSpec((HID, OUT),       lambda i: (0, 0)),
                pl.BlockSpec((1, OUT),         lambda i: (0, 0)),
            ],
            out_specs=pl.BlockSpec((block_b, OUT), lambda i: (i, 0)),
        ),
        compiler_params=pltpu.CompilerParams(
            dimension_semantics=("parallel",),
            vmem_limit_bytes=48 * 1024 * 1024),
    )(xk, w1k, b1k, w2c, b2k, wf1k, bf1k, wf2k, bf2k)
    return out[:B]                                                   # (B, 2)


def ref_forward(x_ncw, params):
    """Pure-JAX reference mirroring the PyTorch forward (NCW layout)."""
    w1, b1, w2, b2, wf1, bf1, wf2, bf2 = params

    def conv1d(x, w, b):
        Lout = x.shape[2] - w.shape[2] + 1
        out = jnp.zeros((x.shape[0], w.shape[0], Lout), jnp.float32)
        for k in range(w.shape[2]):
            out += jnp.einsum('oi,bil->bol', w[:, :, k], x[:, :, k:k + Lout])
        return out + b[None, :, None]

    def pool(x):
        l = (x.shape[2] // 2) * 2
        return jnp.max(x[:, :, :l].reshape(x.shape[0], x.shape[1], -1, 2), axis=-1)

    h = pool(jnp.maximum(conv1d(x_ncw, w1, b1), 0.0))
    h = pool(jnp.maximum(conv1d(h, w2, b2), 0.0))
    flat = h.reshape(h.shape[0], -1)
    h = jnp.maximum(flat @ wf1.T + bf1, 0.0)
    return h @ wf2.T + bf2


def init_params(key):
    ks = jax.random.split(key, 8)
    s = 0.05
    w1 = s * jax.random.normal(ks[0], (C1, C_IN, KW), jnp.float32)
    b1 = s * jax.random.normal(ks[1], (C1,), jnp.float32)
    w2 = s * jax.random.normal(ks[2], (C2, C1, KW), jnp.float32)
    b2 = s * jax.random.normal(ks[3], (C2,), jnp.float32)
    wf1 = s * jax.random.normal(ks[4], (HID, C2 * P2), jnp.float32)
    bf1 = s * jax.random.normal(ks[5], (HID,), jnp.float32)
    wf2 = s * jax.random.normal(ks[6], (OUT, HID), jnp.float32)
    bf2 = s * jax.random.normal(ks[7], (OUT,), jnp.float32)
    return (w1, b1, w2, b2, wf1, bf1, wf2, bf2)


if __name__ == "__main__":
    key = jax.random.PRNGKey(0)
    pkey, xkey, xkey2 = jax.random.split(key, 3)
    params = init_params(pkey)

    # small shapes consistent with the module: (batch=2, channels=2, length=100)
    B = 2
    x = jax.random.normal(xkey, (B, C_IN, L_IN), jnp.float32)
    y = jax.block_until_ready(cnn_forward(x, params))
    y_ref = jax.block_until_ready(ref_forward(x, params))
    assert y.shape == (B, OUT)
    assert jnp.allclose(y, y_ref, atol=2e-4, rtol=2e-4), (y, y_ref)

    # second check exercising batch padding and a multi-block grid
    B2 = 20
    x2 = jax.random.normal(xkey2, (B2, C_IN, L_IN), jnp.float32)
    y2 = jax.block_until_ready(cnn_forward(x2, params))
    y2_ref = jax.block_until_ready(ref_forward(x2, params))
    assert jnp.allclose(y2, y2_ref, atol=2e-4, rtol=2e-4), (y2, y2_ref)

    print("KERNEL_OK")
</pallas_src>

<mosaic_0001>
module attributes {stable_mosaic.version = 11 : i64} {
  func.func @cnn_kernel(%arg0: i32, %arg1: memref<8x25x8xf32, #tpu.memory_space<vmem>>, %arg2: memref<6x1x64xf32, #tpu.memory_space<vmem>>, %arg3: memref<1x64xf32, #tpu.memory_space<vmem>>, %arg4: memref<192x128xf32, #tpu.memory_space<vmem>>, %arg5: memref<1x128xf32, #tpu.memory_space<vmem>>, %arg6: memref<3072x64xf32, #tpu.memory_space<vmem>>, %arg7: memref<1x64xf32, #tpu.memory_space<vmem>>, %arg8: memref<64x2xf32, #tpu.memory_space<vmem>>, %arg9: memref<1x2xf32, #tpu.memory_space<vmem>>, %arg10: memref<8x2xf32, #tpu.memory_space<vmem>>) attributes {dimension_semantics = [#tpu.dimension_semantics<parallel>], iteration_bounds = array<i64: 1>, scalar_prefetch = 0 : i64, scratch_operands = 0 : i64, tpu.core_type = #tpu.core_type<tc>, window_params = [{transform_indices = @transform_0, window_bounds = array<i64: 8, 25, 8>}, {pipeline_mode = #tpu.pipeline_mode<synchronous>, transform_indices = @transform_1, window_bounds = array<i64: 6, 1, 64>}, {pipeline_mode = #tpu.pipeline_mode<synchronous>, transform_indices = @transform_2, window_bounds = array<i64: 1, 64>}, {pipeline_mode = #tpu.pipeline_mode<synchronous>, transform_indices = @transform_3, window_bounds = array<i64: 192, 128>}, {pipeline_mode = #tpu.pipeline_mode<synchronous>, transform_indices = @transform_4, window_bounds = array<i64: 1, 128>}, {pipeline_mode = #tpu.pipeline_mode<synchronous>, transform_indices = @transform_5, window_bounds = array<i64: 3072, 64>}, {pipeline_mode = #tpu.pipeline_mode<synchronous>, transform_indices = @transform_6, window_bounds = array<i64: 1, 64>}, {pipeline_mode = #tpu.pipeline_mode<synchronous>, transform_indices = @transform_7, window_bounds = array<i64: 64, 2>}, {pipeline_mode = #tpu.pipeline_mode<synchronous>, transform_indices = @transform_8, window_bounds = array<i64: 1, 2>}, {transform_indices = @transform_9, window_bounds = array<i64: 8, 2>}]} {
    %c0 = arith.constant 0 : index
    %c0_0 = arith.constant 0 : index
    %c0_1 = arith.constant 0 : index
    %0 = vector.load %arg1[%c0, %c0_0, %c0_1] : memref<8x25x8xf32, #tpu.memory_space<vmem>>, vector<8x25x8xf32>
    %1 = vector.extract_strided_slice %0 {offsets = [0, 1, 0], sizes = [8, 24, 8], strides = [1, 1, 1]} : vector<8x25x8xf32> to vector<8x24x8xf32>
    %2 = vector.extract_strided_slice %0 {offsets = [0, 24, 0], sizes = [8, 1, 8], strides = [1, 1, 1]} : vector<8x25x8xf32> to vector<8x1x8xf32>
    %3 = tpu.concatenate %1, %2 in 1 : vector<8x24x8xf32>, vector<8x1x8xf32> -> vector<8x25x8xf32>
    %c0_2 = arith.constant 0 : index
    %c0_3 = arith.constant 0 : index
    %c0_4 = arith.constant 0 : index
    %4 = vector.load %arg2[%c0_2, %c0_3, %c0_4] : memref<6x1x64xf32, #tpu.memory_space<vmem>>, vector<6x1x64xf32>
    %c0_5 = arith.constant 0 : index
    %c0_6 = arith.constant 0 : index
    %5 = vector.load %arg3[%c0_5, %c0_6] : memref<1x64xf32, #tpu.memory_space<vmem>>, vector<1x64xf32>
    %6 = vector.shape_cast %5 : vector<1x64xf32> to vector<1x1x64xf32>
    %7 = vector.broadcast %6 : vector<1x1x64xf32> to vector<8x25x64xf32>
    %8 = vector.extract_strided_slice %0 {offsets = [0, 0, 0], sizes = [8, 25, 1], strides = [1, 1, 1]} : vector<8x25x8xf32> to vector<8x25x1xf32>
    %9 = vector.shape_cast %8 : vector<8x25x1xf32> to vector<8x25x1xf32>
    %10 = vector.broadcast %9 : vector<8x25x1xf32> to vector<8x25x64xf32>
    %11 = vector.extract_strided_slice %4 {offsets = [0, 0, 0], sizes = [1, 1, 64], strides = [1, 1, 1]} : vector<6x1x64xf32> to vector<1x1x64xf32>
    %12 = vector.shape_cast %11 : vector<1x1x64xf32> to vector<1x64xf32>
    %13 = vector.shape_cast %12 : vector<1x64xf32> to vector<1x1x64xf32>
    %14 = vector.broadcast %13 : vector<1x1x64xf32> to vector<8x25x64xf32>
    %15 = arith.mulf %10, %14 : vector<8x25x64xf32>
    %16 = arith.addf %7, %15 : vector<8x25x64xf32>
    %17 = vector.extract_strided_slice %0 {offsets = [0, 0, 1], sizes = [8, 25, 1], strides = [1, 1, 1]} : vector<8x25x8xf32> to vector<8x25x1xf32>
    %18 = vector.shape_cast %17 : vector<8x25x1xf32> to vector<8x25x1xf32>
    %19 = vector.broadcast %18 : vector<8x25x1xf32> to vector<8x25x64xf32>
    %20 = vector.extract_strided_slice %4 {offsets = [1, 0, 0], sizes = [1, 1, 64], strides = [1, 1, 1]} : vector<6x1x64xf32> to vector<1x1x64xf32>
    %21 = vector.shape_cast %20 : vector<1x1x64xf32> to vector<1x64xf32>
    %22 = vector.shape_cast %21 : vector<1x64xf32> to vector<1x1x64xf32>
    %23 = vector.broadcast %22 : vector<1x1x64xf32> to vector<8x25x64xf32>
    %24 = arith.mulf %19, %23 : vector<8x25x64xf32>
    %25 = arith.addf %16, %24 : vector<8x25x64xf32>
    %26 = vector.extract_strided_slice %0 {offsets = [0, 0, 2], sizes = [8, 25, 1], strides = [1, 1, 1]} : vector<8x25x8xf32> to vector<8x25x1xf32>
    %27 = vector.shape_cast %26 : vector<8x25x1xf32> to vector<8x25x1xf32>
    %28 = vector.broadcast %27 : vector<8x25x1xf32> to vector<8x25x64xf32>
    %29 = vector.extract_strided_slice %4 {offsets = [2, 0, 0], sizes = [1, 1, 64], strides = [1, 1, 1]} : vector<6x1x64xf32> to vector<1x1x64xf32>
    %30 = vector.shape_cast %29 : vector<1x1x64xf32> to vector<1x64xf32>
    %31 = vector.shape_cast %30 : vector<1x64xf32> to vector<1x1x64xf32>
    %32 = vector.broadcast %31 : vector<1x1x64xf32> to vector<8x25x64xf32>
    %33 = arith.mulf %28, %32 : vector<8x25x64xf32>
    %34 = arith.addf %25, %33 : vector<8x25x64xf32>
    %35 = vector.extract_strided_slice %4 {offsets = [0, 0, 0], sizes = [1, 1, 64], strides = [1, 1, 1]} : vector<6x1x64xf32> to vector<1x1x64xf32>
    %36 = vector.shape_cast %35 : vector<1x1x64xf32> to vector<1x64xf32>
    %37 = vector.shape_cast %36 : vector<1x64xf32> to vector<1x1x64xf32>
    %38 = vector.broadcast %37 : vector<1x1x64xf32> to vector<8x25x64xf32>
    %39 = arith.mulf %28, %38 : vector<8x25x64xf32>
    %40 = arith.addf %7, %39 : vector<8x25x64xf32>
    %41 = vector.extract_strided_slice %0 {offsets = [0, 0, 3], sizes = [8, 25, 1], strides = [1, 1, 1]} : vector<8x25x8xf32> to vector<8x25x1xf32>
    %42 = vector.shape_cast %41 : vector<8x25x1xf32> to vector<8x25x1xf32>
    %43 = vector.broadcast %42 : vector<8x25x1xf32> to vector<8x25x64xf32>
    %44 = vector.extract_strided_slice %4 {offsets = [3, 0, 0], sizes = [1, 1, 64], strides = [1, 1, 1]} : vector<6x1x64xf32> to vector<1x1x64xf32>
    %45 = vector.shape_cast %44 : vector<1x1x64xf32> to vector<1x64xf32>
    %46 = vector.shape_cast %45 : vector<1x64xf32> to vector<1x1x64xf32>
    %47 = vector.broadcast %46 : vector<1x1x64xf32> to vector<8x25x64xf32>
    %48 = arith.mulf %43, %47 : vector<8x25x64xf32>
    %49 = arith.addf %34, %48 : vector<8x25x64xf32>
    %50 = vector.extract_strided_slice %4 {offsets = [1, 0, 0], sizes = [1, 1, 64], strides = [1, 1, 1]} : vector<6x1x64xf32> to vector<1x1x64xf32>
    %51 = vector.shape_cast %50 : vector<1x1x64xf32> to vector<1x64xf32>
    %52 = vector.shape_cast %51 : vector<1x64xf32> to vector<1x1x64xf32>
    %53 = vector.broadcast %52 : vector<1x1x64xf32> to vector<8x25x64xf32>
    %54 = arith.mulf %43, %53 : vector<8x25x64xf32>
    %55 = arith.addf %40, %54 : vector<8x25x64xf32>
    %56 = vector.extract_strided_slice %0 {offsets = [0, 0, 4], sizes = [8, 25, 1], strides = [1, 1, 1]} : vector<8x25x8xf32> to vector<8x25x1xf32>
    %57 = vector.shape_cast %56 : vector<8x25x1xf32> to vector<8x25x1xf32>
    %58 = vector.broadcast %57 : vector<8x25x1xf32> to vector<8x25x64xf32>
    %59 = vector.extract_strided_slice %4 {offsets = [4, 0, 0], sizes = [1, 1, 64], strides = [1, 1, 1]} : vector<6x1x64xf32> to vector<1x1x64xf32>
    %60 = vector.shape_cast %59 : vector<1x1x64xf32> to vector<1x64xf32>
    %61 = vector.shape_cast %60 : vector<1x64xf32> to vector<1x1x64xf32>
    %62 = vector.broadcast %61 : vector<1x1x64xf32> to vector<8x25x64xf32>
    %63 = arith.mulf %58, %62 : vector<8x25x64xf32>
    %64 = arith.addf %49, %63 : vector<8x25x64xf32>
    %65 = vector.extract_strided_slice %4 {offsets = [2, 0, 0], sizes = [1, 1, 64], strides = [1, 1, 1]} : vector<6x1x64xf32> to vector<1x1x64xf32>
    %66 = vector.shape_cast %65 : vector<1x1x64xf32> to vector<1x64xf32>
    %67 = vector.shape_cast %66 : vector<1x64xf32> to vector<1x1x64xf32>
    %68 = vector.broadcast %67 : vector<1x1x64xf32> to vector<8x25x64xf32>
    %69 = arith.mulf %58, %68 : vector<8x25x64xf32>
    %70 = arith.addf %55, %69 : vector<8x25x64xf32>
    %71 = vector.extract_strided_slice %4 {offsets = [0, 0, 0], sizes = [1, 1, 64], strides = [1, 1, 1]} : vector<6x1x64xf32> to vector<1x1x64xf32>
    %72 = vector.shape_cast %71 : vector<1x1x64xf32> to vector<1x64xf32>
    %73 = vector.shape_cast %72 : vector<1x64xf32> to vector<1x1x64xf32>
    %74 = vector.broadcast %73 : vector<1x1x64xf32> to vector<8x25x64xf32>
    %75 = arith.mulf %58, %74 : vector<8x25x64xf32>
    %76 = arith.addf %7, %75 : vector<8x25x64xf32>
    %77 = vector.extract_strided_slice %0 {offsets = [0, 0, 5], sizes = [8, 25, 1], strides = [1, 1, 1]} : vector<8x25x8xf32> to vector<8x25x1xf32>
    %78 = vector.shape_cast %77 : vector<8x25x1xf32> to vector<8x25x1xf32>
    %79 = vector.broadcast %78 : vector<8x25x1xf32> to vector<8x25x64xf32>
    %80 = vector.extract_strided_slice %4 {offsets = [5, 0, 0], sizes = [1, 1, 64], strides = [1, 1, 1]} : vector<6x1x64xf32> to vector<1x1x64xf32>
    %81 = vector.shape_cast %80 : vector<1x1x64xf32> to vector<1x64xf32>
    %82 = vector.shape_cast %81 : vector<1x64xf32> to vector<1x1x64xf32>
    %83 = vector.broadcast %82 : vector<1x1x64xf32> to vector<8x25x64xf32>
    %84 = arith.mulf %79, %83 : vector<8x25x64xf32>
    %85 = arith.addf %64, %84 : vector<8x25x64xf32>
    %86 = vector.extract_strided_slice %4 {offsets = [3, 0, 0], sizes = [1, 1, 64], strides = [1, 1, 1]} : vector<6x1x64xf32> to vector<1x1x64xf32>
    %87 = vector.shape_cast %86 : vector<1x1x64xf32> to vector<1x64xf32>
    %88 = vector.shape_cast %87 : vector<1x64xf32> to vector<1x1x64xf32>
    %89 = vector.broadcast %88 : vector<1x1x64xf32> to vector<8x25x64xf32>
    %90 = arith.mulf %79, %89 : vector<8x25x64xf32>
    %91 = arith.addf %70, %90 : vector<8x25x64xf32>
    %92 = vector.extract_strided_slice %4 {offsets = [1, 0, 0], sizes = [1, 1, 64], strides = [1, 1, 1]} : vector<6x1x64xf32> to vector<1x1x64xf32>
    %93 = vector.shape_cast %92 : vector<1x1x64xf32> to vector<1x64xf32>
    %94 = vector.shape_cast %93 : vector<1x64xf32> to vector<1x1x64xf32>
    %95 = vector.broadcast %94 : vector<1x1x64xf32> to vector<8x25x64xf32>
    %96 = arith.mulf %79, %95 : vector<8x25x64xf32>
    %97 = arith.addf %76, %96 : vector<8x25x64xf32>
    %98 = vector.extract_strided_slice %0 {offsets = [0, 0, 6], sizes = [8, 25, 1], strides = [1, 1, 1]} : vector<8x25x8xf32> to vector<8x25x1xf32>
    %99 = vector.shape_cast %98 : vector<8x25x1xf32> to vector<8x25x1xf32>
    %100 = vector.broadcast %99 : vector<8x25x1xf32> to vector<8x25x64xf32>
    %101 = vector.extract_strided_slice %4 {offsets = [4, 0, 0], sizes = [1, 1, 64], strides = [1, 1, 1]} : vector<6x1x64xf32> to vector<1x1x64xf32>
    %102 = vector.shape_cast %101 : vector<1x1x64xf32> to vector<1x64xf32>
    %103 = vector.shape_cast %102 : vector<1x64xf32> to vector<1x1x64xf32>
    %104 = vector.broadcast %103 : vector<1x1x64xf32> to vector<8x25x64xf32>
    %105 = arith.mulf %100, %104 : vector<8x25x64xf32>
    %106 = arith.addf %91, %105 : vector<8x25x64xf32>
    %107 = vector.extract_strided_slice %4 {offsets = [2, 0, 0], sizes = [1, 1, 64], strides = [1, 1, 1]} : vector<6x1x64xf32> to vector<1x1x64xf32>
    %108 = vector.shape_cast %107 : vector<1x1x64xf32> to vector<1x64xf32>
    %109 = vector.shape_cast %108 : vector<1x64xf32> to vector<1x1x64xf32>
    %110 = vector.broadcast %109 : vector<1x1x64xf32> to vector<8x25x64xf32>
    %111 = arith.mulf %100, %110 : vector<8x25x64xf32>
    %112 = arith.addf %97, %111 : vector<8x25x64xf32>
    %113 = vector.extract_strided_slice %4 {offsets = [0, 0, 0], sizes = [1, 1, 64], strides = [1, 1, 1]} : vector<6x1x64xf32> to vector<1x1x64xf32>
    %114 = vector.shape_cast %113 : vector<1x1x64xf32> to vector<1x64xf32>
    %115 = vector.shape_cast %114 : vector<1x64xf32> to vector<1x1x64xf32>
    %116 = vector.broadcast %115 : vector<1x1x64xf32> to vector<8x25x64xf32>
    %117 = arith.mulf %100, %116 : vector<8x25x64xf32>
    %118 = arith.addf %7, %117 : vector<8x25x64xf32>
    %119 = vector.extract_strided_slice %0 {offsets = [0, 0, 7], sizes = [8, 25, 1], strides = [1, 1, 1]} : vector<8x25x8xf32> to vector<8x25x1xf32>
    %120 = vector.shape_cast %119 : vector<8x25x1xf32> to vector<8x25x1xf32>
    %121 = vector.broadcast %120 : vector<8x25x1xf32> to vector<8x25x64xf32>
    %122 = vector.extract_strided_slice %4 {offsets = [5, 0, 0], sizes = [1, 1, 64], strides = [1, 1, 1]} : vector<6x1x64xf32> to vector<1x1x64xf32>
    %123 = vector.shape_cast %122 : vector<1x1x64xf32> to vector<1x64xf32>
    %124 = vector.shape_cast %123 : vector<1x64xf32> to vector<1x1x64xf32>
    %125 = vector.broadcast %124 : vector<1x1x64xf32> to vector<8x25x64xf32>
    %126 = arith.mulf %121, %125 : vector<8x25x64xf32>
    %127 = arith.addf %106, %126 : vector<8x25x64xf32>
    %128 = vector.extract_strided_slice %4 {offsets = [3, 0, 0], sizes = [1, 1, 64], strides = [1, 1, 1]} : vector<6x1x64xf32> to vector<1x1x64xf32>
    %129 = vector.shape_cast %128 : vector<1x1x64xf32> to vector<1x64xf32>
    %130 = vector.shape_cast %129 : vector<1x64xf32> to vector<1x1x64xf32>
    %131 = vector.broadcast %130 : vector<1x1x64xf32> to vector<8x25x64xf32>
    %132 = arith.mulf %121, %131 : vector<8x25x64xf32>
    %133 = arith.addf %112, %132 : vector<8x25x64xf32>
    %134 = vector.extract_strided_slice %4 {offsets = [1, 0, 0], sizes = [1, 1, 64], strides = [1, 1, 1]} : vector<6x1x64xf32> to vector<1x1x64xf32>
    %135 = vector.shape_cast %134 : vector<1x1x64xf32> to vector<1x64xf32>
    %136 = vector.shape_cast %135 : vector<1x64xf32> to vector<1x1x64xf32>
    %137 = vector.broadcast %136 : vector<1x1x64xf32> to vector<8x25x64xf32>
    %138 = arith.mulf %121, %137 : vector<8x25x64xf32>
    %139 = arith.addf %118, %138 : vector<8x25x64xf32>
    %140 = vector.extract_strided_slice %3 {offsets = [0, 0, 0], sizes = [8, 25, 1], strides = [1, 1, 1]} : vector<8x25x8xf32> to vector<8x25x1xf32>
    %141 = vector.shape_cast %140 : vector<8x25x1xf32> to vector<8x25x1xf32>
    %142 = vector.broadcast %141 : vector<8x25x1xf32> to vector<8x25x64xf32>
    %143 = vector.extract_strided_slice %4 {offsets = [4, 0, 0], sizes = [1, 1, 64], strides = [1, 1, 1]} : vector<6x1x64xf32> to vector<1x1x64xf32>
    %144 = vector.shape_cast %143 : vector<1x1x64xf32> to vector<1x64xf32>
    %145 = vector.shape_cast %144 : vector<1x64xf32> to vector<1x1x64xf32>
    %146 = vector.broadcast %145 : vector<1x1x64xf32> to vector<8x25x64xf32>
    %147 = arith.mulf %142, %146 : vector<8x25x64xf32>
    %148 = arith.addf %133, %147 : vector<8x25x64xf32>
    %149 = vector.extract_strided_slice %4 {offsets = [2, 0, 0], sizes = [1, 1, 64], strides = [1, 1, 1]} : vector<6x1x64xf32> to vector<1x1x64xf32>
    %150 = vector.shape_cast %149 : vector<1x1x64xf32> to vector<1x64xf32>
    %151 = vector.shape_cast %150 : vector<1x64xf32> to vector<1x1x64xf32>
    %152 = vector.broadcast %151 : vector<1x1x64xf32> to vector<8x25x64xf32>
    %153 = arith.mulf %142, %152 : vector<8x25x64xf32>
    %154 = arith.addf %139, %153 : vector<8x25x64xf32>
    %155 = vector.extract_strided_slice %3 {offsets = [0, 0, 1], sizes = [8, 25, 1], strides = [1, 1, 1]} : vector<8x25x8xf32> to vector<8x25x1xf32>
    %156 = vector.shape_cast %155 : vector<8x25x1xf32> to vector<8x25x1xf32>
    %157 = vector.broadcast %156 : vector<8x25x1xf32> to vector<8x25x64xf32>
    %158 = vector.extract_strided_slice %4 {offsets = [5, 0, 0], sizes = [1, 1, 64], strides = [1, 1, 1]} : vector<6x1x64xf32> to vector<1x1x64xf32>
    %159 = vector.shape_cast %158 : vector<1x1x64xf32> to vector<1x64xf32>
    %160 = vector.shape_cast %159 : vector<1x64xf32> to vector<1x1x64xf32>
    %161 = vector.broadcast %160 : vector<1x1x64xf32> to vector<8x25x64xf32>
    %162 = arith.mulf %157, %161 : vector<8x25x64xf32>
    %163 = arith.addf %148, %162 : vector<8x25x64xf32>
    %164 = vector.extract_strided_slice %4 {offsets = [3, 0, 0], sizes = [1, 1, 64], strides = [1, 1, 1]} : vector<6x1x64xf32> to vector<1x1x64xf32>
    %165 = vector.shape_cast %164 : vector<1x1x64xf32> to vector<1x64xf32>
    %166 = vector.shape_cast %165 : vector<1x64xf32> to vector<1x1x64xf32>
    %167 = vector.broadcast %166 : vector<1x1x64xf32> to vector<8x25x64xf32>
    %168 = arith.mulf %157, %167 : vector<8x25x64xf32>
    %169 = arith.addf %154, %168 : vector<8x25x64xf32>
    %170 = vector.extract_strided_slice %3 {offsets = [0, 0, 2], sizes = [8, 25, 1], strides = [1, 1, 1]} : vector<8x25x8xf32> to vector<8x25x1xf32>
    %171 = vector.shape_cast %170 : vector<8x25x1xf32> to vector<8x25x1xf32>
    %172 = vector.broadcast %171 : vector<8x25x1xf32> to vector<8x25x64xf32>
    %173 = vector.extract_strided_slice %4 {offsets = [4, 0, 0], sizes = [1, 1, 64], strides = [1, 1, 1]} : vector<6x1x64xf32> to vector<1x1x64xf32>
    %174 = vector.shape_cast %173 : vector<1x1x64xf32> to vector<1x64xf32>
    %175 = vector.shape_cast %174 : vector<1x64xf32> to vector<1x1x64xf32>
    %176 = vector.broadcast %175 : vector<1x1x64xf32> to vector<8x25x64xf32>
    %177 = arith.mulf %172, %176 : vector<8x25x64xf32>
    %178 = arith.addf %169, %177 : vector<8x25x64xf32>
    %179 = vector.extract_strided_slice %3 {offsets = [0, 0, 3], sizes = [8, 25, 1], strides = [1, 1, 1]} : vector<8x25x8xf32> to vector<8x25x1xf32>
    %180 = vector.shape_cast %179 : vector<8x25x1xf32> to vector<8x25x1xf32>
    %181 = vector.broadcast %180 : vector<8x25x1xf32> to vector<8x25x64xf32>
    %182 = vector.extract_strided_slice %4 {offsets = [5, 0, 0], sizes = [1, 1, 64], strides = [1, 1, 1]} : vector<6x1x64xf32> to vector<1x1x64xf32>
    %183 = vector.shape_cast %182 : vector<1x1x64xf32> to vector<1x64xf32>
    %184 = vector.shape_cast %183 : vector<1x64xf32> to vector<1x1x64xf32>
    %185 = vector.broadcast %184 : vector<1x1x64xf32> to vector<8x25x64xf32>
    %186 = arith.mulf %181, %185 : vector<8x25x64xf32>
    %187 = arith.addf %178, %186 : vector<8x25x64xf32>
    %cst = arith.constant 0.000000e+00 : f32
    %188 = vector.broadcast %cst : f32 to vector<8x25x64xf32>
    %189 = arith.maximumf %85, %188 : vector<8x25x64xf32>
    %cst_7 = arith.constant 0.000000e+00 : f32
    %190 = vector.broadcast %cst_7 : f32 to vector<8x25x64xf32>
    %191 = arith.maximumf %127, %190 : vector<8x25x64xf32>
    %cst_8 = arith.constant 0.000000e+00 : f32
    %192 = vector.broadcast %cst_8 : f32 to vector<8x25x64xf32>
    %193 = arith.maximumf %163, %192 : vector<8x25x64xf32>
    %cst_9 = arith.constant 0.000000e+00 : f32
    %194 = vector.broadcast %cst_9 : f32 to vector<8x25x64xf32>
    %195 = arith.maximumf %187, %194 : vector<8x25x64xf32>
    %196 = arith.maximumf %189, %191 : vector<8x25x64xf32>
    %197 = arith.maximumf %193, %195 : vector<8x25x64xf32>
    %198 = tpu.concatenate %196, %197 in 2 : vector<8x25x64xf32>, vector<8x25x64xf32> -> vector<8x25x128xf32>
    %199 = vector.extract_strided_slice %198 {offsets = [0, 0, 0], sizes = [8, 24, 128], strides = [1, 1, 1]} : vector<8x25x128xf32> to vector<8x24x128xf32>
    %200 = vector.extract_strided_slice %198 {offsets = [0, 1, 0], sizes = [8, 24, 128], strides = [1, 1, 1]} : vector<8x25x128xf32> to vector<8x24x128xf32>
    %201 = vector.extract_strided_slice %200 {offsets = [0, 0, 0], sizes = [8, 24, 64], strides = [1, 1, 1]} : vector<8x24x128xf32> to vector<8x24x64xf32>
    %202 = tpu.concatenate %199, %201 in 2 : vector<8x24x128xf32>, vector<8x24x64xf32> -> vector<8x24x192xf32>
    %203 = vector.extract_strided_slice %199 {offsets = [0, 0, 64], sizes = [8, 24, 64], strides = [1, 1, 1]} : vector<8x24x128xf32> to vector<8x24x64xf32>
    %204 = tpu.concatenate %203, %200 in 2 : vector<8x24x64xf32>, vector<8x24x128xf32> -> vector<8x24x192xf32>
    %c0_10 = arith.constant 0 : index
    %c0_11 = arith.constant 0 : index
    %205 = vector.load %arg4[%c0_10, %c0_11] : memref<192x128xf32, #tpu.memory_space<vmem>>, vector<192x128xf32>
    %c0_12 = arith.constant 0 : index
    %c0_13 = arith.constant 0 : index
    %206 = vector.load %arg5[%c0_12, %c0_13] : memref<1x128xf32, #tpu.memory_space<vmem>>, vector<1x128xf32>
    %207 = vector.shape_cast %202 : vector<8x24x192xf32> to vector<192x192xf32>
    %cst_14 = arith.constant dense<0.000000e+00> : vector<192x128xf32>
    %208 = tpu.matmul %207, %205, %cst_14 {dimension_numbers = #tpu.dot_dimension_numbers<[1], [0], [0], [1], [0, 0, 1, 1], [], []>} : vector<192x192xf32>, vector<192x128xf32>, vector<192x128xf32> -> vector<192x128xf32>
    %209 = vector.broadcast %206 : vector<1x128xf32> to vector<192x128xf32>
    %210 = arith.addf %208, %209 : vector<192x128xf32>
    %cst_15 = arith.constant 0.000000e+00 : f32
    %211 = vector.broadcast %cst_15 : f32 to vector<192x128xf32>
    %212 = arith.maximumf %210, %211 : vector<192x128xf32>
    %213 = vector.shape_cast %204 : vector<8x24x192xf32> to vector<192x192xf32>
    %cst_16 = arith.constant dense<0.000000e+00> : vector<192x128xf32>
    %214 = tpu.matmul %213, %205, %cst_16 {dimension_numbers = #tpu.dot_dimension_numbers<[1], [0], [0], [1], [0, 0, 1, 1], [], []>} : vector<192x192xf32>, vector<192x128xf32>, vector<192x128xf32> -> vector<192x128xf32>
    %215 = vector.broadcast %206 : vector<1x128xf32> to vector<192x128xf32>
    %216 = arith.addf %214, %215 : vector<192x128xf32>
    %cst_17 = arith.constant 0.000000e+00 : f32
    %217 = vector.broadcast %cst_17 : f32 to vector<192x128xf32>
    %218 = arith.maximumf %216, %217 : vector<192x128xf32>
    %219 = arith.maximumf %212, %218 : vector<192x128xf32>
    %220 = vector.shape_cast %219 : vector<192x128xf32> to vector<8x24x128xf32>
    %221 = vector.shape_cast %220 : vector<8x24x128xf32> to vector<8x3072xf32>
    %c0_18 = arith.constant 0 : index
    %c0_19 = arith.constant 0 : index
    %222 = vector.load %arg6[%c0_18, %c0_19] : memref<3072x64xf32, #tpu.memory_space<vmem>>, vector<3072x64xf32>
    %cst_20 = arith.constant dense<0.000000e+00> : vector<8x64xf32>
    %223 = tpu.matmul %221, %222, %cst_20 {dimension_numbers = #tpu.dot_dimension_numbers<[1], [0], [0], [1], [0, 0, 1, 1], [], []>} : vector<8x3072xf32>, vector<3072x64xf32>, vector<8x64xf32> -> vector<8x64xf32>
    %c0_21 = arith.constant 0 : index
    %c0_22 = arith.constant 0 : index
    %224 = vector.load %arg7[%c0_21, %c0_22] : memref<1x64xf32, #tpu.memory_space<vmem>>, vector<1x64xf32>
    %225 = vector.broadcast %224 : vector<1x64xf32> to vector<8x64xf32>
    %226 = arith.addf %223, %225 : vector<8x64xf32>
    %cst_23 = arith.constant 0.000000e+00 : f32
    %227 = vector.broadcast %cst_23 : f32 to vector<8x64xf32>
    %228 = arith.maximumf %226, %227 : vector<8x64xf32>
    %c0_24 = arith.constant 0 : index
    %c0_25 = arith.constant 0 : index
    %229 = vector.load %arg8[%c0_24, %c0_25] : memref<64x2xf32, #tpu.memory_space<vmem>>, vector<64x2xf32>
    %cst_26 = arith.constant dense<0.000000e+00> : vector<8x2xf32>
    %230 = tpu.matmul %228, %229, %cst_26 {dimension_numbers = #tpu.dot_dimension_numbers<[1], [0], [0], [1], [0, 0, 1, 1], [], []>} : vector<8x64xf32>, vector<64x2xf32>, vector<8x2xf32> -> vector<8x2xf32>
    %c0_27 = arith.constant 0 : index
    %c0_28 = arith.constant 0 : index
    %231 = vector.load %arg9[%c0_27, %c0_28] : memref<1x2xf32, #tpu.memory_space<vmem>>, vector<1x2xf32>
    %232 = vector.broadcast %231 : vector<1x2xf32> to vector<8x2xf32>
    %233 = arith.addf %230, %232 : vector<8x2xf32>
    %c0_29 = arith.constant 0 : index
    %c0_30 = arith.constant 0 : index
    %234 = vector.load %arg10[%c0_29, %c0_30] : memref<8x2xf32, #tpu.memory_space<vmem>>, vector<8x2xf32>
    tpu.vector_store %arg10[%c0_29, %c0_30], %233 {strides = array<i32>} : memref<8x2xf32, #tpu.memory_space<vmem>>, vector<8x2xf32>,
    return
  }
  func.func @transform_0(%arg0: i32) -> (i32, i32, i32) {
    %c0_i32 = arith.constant 0 : i32
    %c0_i32_0 = arith.constant 0 : i32
    %c0_i32_1 = arith.constant 0 : i32
    return %arg0, %c0_i32, %c0_i32_0 : i32, i32, i32
  }
  func.func @transform_1(%arg0: i32) -> (i32, i32, i32) {
    %c0_i32 = arith.constant 0 : i32
    %c0_i32_0 = arith.constant 0 : i32
    %c0_i32_1 = arith.constant 0 : i32
    %c0_i32_2 = arith.constant 0 : i32
    return %c0_i32, %c0_i32_0, %c0_i32_1 : i32, i32, i32
  }
  func.func @transform_2(%arg0: i32) -> (i32, i32) {
    %c0_i32 = arith.constant 0 : i32
    %c0_i32_0 = arith.constant 0 : i32
    %c0_i32_1 = arith.constant 0 : i32
    return %c0_i32, %c0_i32_0 : i32, i32
  }
  func.func @transform_3(%arg0: i32) -> (i32, i32) {
    %c0_i32 = arith.constant 0 : i32
    %c0_i32_0 = arith.constant 0 : i32
    %c0_i32_1 = arith.constant 0 : i32
    return %c0_i32, %c0_i32_0 : i32, i32
  }
  func.func @transform_4(%arg0: i32) -> (i32, i32) {
    %c0_i32 = arith.constant 0 : i32
    %c0_i32_0 = arith.constant 0 : i32
    %c0_i32_1 = arith.constant 0 : i32
    return %c0_i32, %c0_i32_0 : i32, i32
  }
  func.func @transform_5(%arg0: i32) -> (i32, i32) {
    %c0_i32 = arith.constant 0 : i32
    %c0_i32_0 = arith.constant 0 : i32
    %c0_i32_1 = arith.constant 0 : i32
    return %c0_i32, %c0_i32_0 : i32, i32
  }
  func.func @transform_6(%arg0: i32) -> (i32, i32) {
    %c0_i32 = arith.constant 0 : i32
    %c0_i32_0 = arith.constant 0 : i32
    %c0_i32_1 = arith.constant 0 : i32
    return %c0_i32, %c0_i32_0 : i32, i32
  }
  func.func @transform_7(%arg0: i32) -> (i32, i32) {
    %c0_i32 = arith.constant 0 : i32
    %c0_i32_0 = arith.constant 0 : i32
    %c0_i32_1 = arith.constant 0 : i32
    return %c0_i32, %c0_i32_0 : i32, i32
  }
  func.func @transform_8(%arg0: i32) -> (i32, i32) {
    %c0_i32 = arith.constant 0 : i32
    %c0_i32_0 = arith.constant 0 : i32
    %c0_i32_1 = arith.constant 0 : i32
    return %c0_i32, %c0_i32_0 : i32, i32
  }
  func.func @transform_9(%arg0: i32) -> (i32, i32) {
    %c0_i32 = arith.constant 0 : i32
    %c0_i32_0 = arith.constant 0 : i32
    return %arg0, %c0_i32 : i32, i32
  }
}

</mosaic_0001>

<llo_original>
// kernel: tpu_custom_call.1
$region0: #{tpu_custom_call.1}
  #allocation0 [shape = 'u32[]', space=smem, size = 0x4, offset = 0x4, fixed_abs, tag = 'smem constant byte address 0x4 - core index']
  #allocation1 [shape = 'u32[144,128]{1,0:T(1,128)}', space=vmem, size = 0x12000, scoped, tag = 'internal scratch']
  %s0 = inlined_call_operand.vmem [shape: f32[8,25,8], index: 0, kind: input, shape index: {}]
  %s1 = inlined_call_operand.vmem [shape: f32[6,1,64], index: 1, kind: input, shape index: {}]
  %s2 = inlined_call_operand.vmem [shape: f32[1,64], index: 2, kind: input, shape index: {}]
  %s3 = inlined_call_operand.vmem [shape: f32[192,128], index: 3, kind: input, shape index: {}]
  %s4 = inlined_call_operand.vmem [shape: f32[1,128], index: 4, kind: input, shape index: {}]
  %s5 = inlined_call_operand.vmem [shape: f32[3072,64], index: 5, kind: input, shape index: {}]
  %s6 = inlined_call_operand.vmem [shape: f32[1,64], index: 6, kind: input, shape index: {}]
  %s7 = inlined_call_operand.vmem [shape: f32[64,2], index: 7, kind: input, shape index: {}]
  %s8 = inlined_call_operand.vmem [shape: f32[1,2], index: 8, kind: input, shape index: {}]
  %s9 = inlined_call_operand.vmem [shape: f32[8,2], index: 9, kind: output, shape index: {}]
  %s10 = sld [smem:[#allocation0]]
  $region46: #{tpu_custom_call.1} parent=0
    _
  %s12 = ssub.s32 1, %s10
  %s13 = scalar_select 0, %s12, %s10
  // Predicated region
  $region2: #{tpu_custom_call.1} parent=0 // pred_check
    _
  $region3: #{tpu_custom_call.1} parent=0 // pred_check_branch
    %15 = sbr.rel (0) target = $region5
  $region4: #{tpu_custom_call.1} parent=0 // pred_region
    _
  $region5: #{tpu_custom_call.1} parent=0 // pred_fallthru
    _
  // Predicated region
  $region6: #{tpu_custom_call.1} parent=0 // pred_check
    _
  $region7: #{tpu_custom_call.1} parent=0 // pred_check_branch
    %17 = sbr.rel (0) target = $region9
  $region8: #{tpu_custom_call.1} parent=0 // pred_region
    _
  $region9: #{tpu_custom_call.1} parent=0 // pred_fallthru
    _
  // Predicated region
  $region10: #{tpu_custom_call.1} parent=0 // pred_check
    _
  $region11: #{tpu_custom_call.1} parent=0 // pred_check_branch
    %19 = sbr.rel (0) target = $region13
  $region12: #{tpu_custom_call.1} parent=0 // pred_region
    _
  $region13: #{tpu_custom_call.1} parent=0 // pred_fallthru
    _
  // Predicated region
  $region14: #{tpu_custom_call.1} parent=0 // pred_check
    _
  $region15: #{tpu_custom_call.1} parent=0 // pred_check_branch
    %21 = sbr.rel (0) target = $region17
  $region16: #{tpu_custom_call.1} parent=0 // pred_region
    _
  $region17: #{tpu_custom_call.1} parent=0 // pred_fallthru
    _
  // Predicated region
  $region18: #{tpu_custom_call.1} parent=0 // pred_check
    _
  $region19: #{tpu_custom_call.1} parent=0 // pred_check_branch
    %23 = sbr.rel (0) target = $region21
  $region20: #{tpu_custom_call.1} parent=0 // pred_region
    _
  $region21: #{tpu_custom_call.1} parent=0 // pred_fallthru
    _
  // Predicated region
  $region22: #{tpu_custom_call.1} parent=0 // pred_check
    _
  $region23: #{tpu_custom_call.1} parent=0 // pred_check_branch
    %25 = sbr.rel (0) target = $region25
  $region24: #{tpu_custom_call.1} parent=0 // pred_region
    _
  $region25: #{tpu_custom_call.1} parent=0 // pred_fallthru
    _
  // Predicated region
  $region26: #{tpu_custom_call.1} parent=0 // pred_check
    _
  $region27: #{tpu_custom_call.1} parent=0 // pred_check_branch
    %27 = sbr.rel (0) target = $region29
  $region28: #{tpu_custom_call.1} parent=0 // pred_region
    _
  $region29: #{tpu_custom_call.1} parent=0 // pred_fallthru
    _
  // Predicated region
  $region30: #{tpu_custom_call.1} parent=0 // pred_check
    _
  $region31: #{tpu_custom_call.1} parent=0 // pred_check_branch
    %29 = sbr.rel (0) target = $region33
  $region32: #{tpu_custom_call.1} parent=0 // pred_region
    _
  $region33: #{tpu_custom_call.1} parent=0 // pred_fallthru
    _
  // Predicated region
  $region34: #{tpu_custom_call.1} parent=0 // pred_check
    _
  $region35: #{tpu_custom_call.1} parent=0 // pred_check_branch
    %31 = sbr.rel (0) target = $region37
  $region36: #{tpu_custom_call.1} parent=0 // pred_region
    _
  $region37: #{tpu_custom_call.1} parent=0 // pred_fallthru
    _
  %v32 = vld [vmem:[%s0] sm:$0xff]
  %v33 = vld [vmem:[%s0 + $0x8] sm:$0xff]
  %v34 = vld [vmem:[%s0 + $0x10] sm:$0xff]
  %v35 = vld [vmem:[%s0 + $0x18] sm:$0x1]
  %v36 = vld [vmem:[%s0 + $0x20] sm:$0xff]
  %v37 = vld [vmem:[%s0 + $0x28] sm:$0xff]
  %v38 = vld [vmem:[%s0 + $0x30] sm:$0xff]
  %v39 = vld [vmem:[%s0 + $0x38] sm:$0x1]
  %v40 = vld [vmem:[%s0 + $0x40] sm:$0xff]
  %v41 = vld [vmem:[%s0 + $0x48] sm:$0xff]
  %v42 = vld [vmem:[%s0 + $0x50] sm:$0xff]
  %v43 = vld [vmem:[%s0 + $0x58] sm:$0x1]
  %v44 = vld [vmem:[%s0 + $0x60] sm:$0xff]
  %v45 = vld [vmem:[%s0 + $0x68] sm:$0xff]
  %v46 = vld [vmem:[%s0 + $0x70] sm:$0xff]
  %v47 = vld [vmem:[%s0 + $0x78] sm:$0x1]
  %v48 = vld [vmem:[%s0 + $0x80] sm:$0xff]
  %v49 = vld [vmem:[%s0 + $0x88] sm:$0xff]
  %v50 = vld [vmem:[%s0 + $0x90] sm:$0xff]
  %v51 = vld [vmem:[%s0 + $0x98] sm:$0x1]
  %v52 = vld [vmem:[%s0 + $0xa0] sm:$0xff]
  %v53 = vld [vmem:[%s0 + $0xa8] sm:$0xff]
  %v54 = vld [vmem:[%s0 + $0xb0] sm:$0xff]
  %v55 = vld [vmem:[%s0 + $0xb8] sm:$0x1]
  %v56 = vld [vmem:[%s0 + $0xc0] sm:$0xff]
  %v57 = vld [vmem:[%s0 + $0xc8] sm:$0xff]
  %v58 = vld [vmem:[%s0 + $0xd0] sm:$0xff]
  %v59 = vld [vmem:[%s0 + $0xd8] sm:$0x1]
  %v60 = vld [vmem:[%s0 + $0xe0] sm:$0xff]
  %v61 = vld [vmem:[%s0 + $0xe8] sm:$0xff]
  %v62 = vld [vmem:[%s0 + $0xf0] sm:$0xff]
  %v63 = vld [vmem:[%s0 + $0xf8] sm:$0x1]
  %vm96 = vcmask 1046528
  %v97 = vrot.slane %v32, 1
  %v98 = vrot.slane %v33, 1
  %v99 = vsel %vm96, %v97, %v98
  %v100 = vrot.slane %v34, 1
  %v101 = vsel %vm96, %v98, %v100
  %v102 = vrot.slane %v35, 1
  %v103 = vsel %vm96, %v100, %v102
  %v104 = vrot.slane %v36, 1
  %v105 = vrot.slane %v37, 1
  %v106 = vsel %vm96, %v104, %v105
  %v107 = vrot.slane %v38, 1
  %v108 = vsel %vm96, %v105, %v107
  %v109 = vrot.slane %v39, 1
  %v110 = vsel %vm96, %v107, %v109
  %v111 = vrot.slane %v40, 1
  %v112 = vrot.slane %v41, 1
  %v113 = vsel %vm96, %v111, %v112
  %v114 = vrot.slane %v42, 1
  %v115 = vsel %vm96, %v112, %v114
  %v116 = vrot.slane %v43, 1
  %v117 = vsel %vm96, %v114, %v116
  %v118 = vrot.slane %v44, 1
  %v119 = vrot.slane %v45, 1
  %v120 = vsel %vm96, %v118, %v119
  %v121 = vrot.slane %v46, 1
  %v122 = vsel %vm96, %v119, %v121
  %v123 = vrot.slane %v47, 1
  %v124 = vsel %vm96, %v121, %v123
  %v125 = vrot.slane %v48, 1
  %v126 = vrot.slane %v49, 1
  %v127 = vsel %vm96, %v125, %v126
  %v128 = vrot.slane %v50, 1
  %v129 = vsel %vm96, %v126, %v128
  %v130 = vrot.slane %v51, 1
  %v131 = vsel %vm96, %v128, %v130
  %v132 = vrot.slane %v52, 1
  %v133 = vrot.slane %v53, 1
  %v134 = vsel %vm96, %v132, %v133
  %v135 = vrot.slane %v54, 1
  %v136 = vsel %vm96, %v133, %v135
  %v137 = vrot.slane %v55, 1
  %v138 = vsel %vm96, %v135, %v137
  %v139 = vrot.slane %v56, 1
  %v140 = vrot.slane %v57, 1
  %v141 = vsel %vm96, %v139, %v140
  %v142 = vrot.slane %v58, 1
  %v143 = vsel %vm96, %v140, %v142
  %v144 = vrot.slane %v59, 1
  %v145 = vsel %vm96, %v142, %v144
  %v146 = vrot.slane %v60, 1
  %v147 = vrot.slane %v61, 1
  %v148 = vsel %vm96, %v146, %v147
  %v149 = vrot.slane %v62, 1
  %v150 = vsel %vm96, %v147, %v149
  %v151 = vrot.slane %v63, 1
  %v152 = vsel %vm96, %v149, %v151
  %v153 = vld [vmem:[%s1] sm:$0x1]
  %v154 = vld [vmem:[%s1 + $0x1] sm:$0x1]
  %v155 = vld [vmem:[%s1 + $0x2] sm:$0x1]
  %v156 = vld [vmem:[%s1 + $0x3] sm:$0x1]
  %v157 = vld [vmem:[%s1 + $0x4] sm:$0x1]
  %v158 = vld [vmem:[%s1 + $0x5] sm:$0x1]
  %v159 = vld [vmem:[%s2] sm:$0x1]
  %v161 = vlaneseq
  %v162 = vshrl.u32 %v161, 7
  %v163 = vsub.s32 0, %v162
  %v164 = vrot.slane %v159, %v163
  %166 = vset.pattern.permute.xlu0 0
  %167 = vperm.xlu0 %166, %v32
  %v168 = vpop.permute.xlu0 %167
  %170 = vset.pattern.permute.xlu0 0
  %171 = vperm.xlu0 %170, %v33
  %v172 = vpop.permute.xlu0 %171
  %174 = vset.pattern.permute.xlu0 0
  %175 = vperm.xlu0 %174, %v34
  %v176 = vpop.permute.xlu0 %175
  %178 = vset.pattern.permute.xlu0 0
  %179 = vperm.xlu0 %178, %v35
  %v180 = vpop.permute.xlu0 %179
  %182 = vset.pattern.permute.xlu0 0
  %183 = vperm.xlu0 %182, %v36
  %v184 = vpop.permute.xlu0 %183
  %186 = vset.pattern.permute.xlu0 0
  %187 = vperm.xlu0 %186, %v37
  %v188 = vpop.permute.xlu0 %187
  %190 = vset.pattern.permute.xlu0 0
  %191 = vperm.xlu0 %190, %v38
  %v192 = vpop.permute.xlu0 %191
  %194 = vset.pattern.permute.xlu0 0
  %195 = vperm.xlu0 %194, %v39
  %v196 = vpop.permute.xlu0 %195
  %198 = vset.pattern.permute.xlu0 0
  %199 = vperm.xlu0 %198, %v40
  %v200 = vpop.permute.xlu0 %199
  %202 = vset.pattern.permute.xlu0 0
  %203 = vperm.xlu0 %202, %v41
  %v204 = vpop.permute.xlu0 %203
  %206 = vset.pattern.permute.xlu0 0
  %207 = vperm.xlu0 %206, %v42
  %v208 = vpop.permute.xlu0 %207
  %210 = vset.pattern.permute.xlu0 0
  %211 = vperm.xlu0 %210, %v43
  %v212 = vpop.permute.xlu0 %211
  %214 = vset.pattern.permute.xlu0 0
  %215 = vperm.xlu0 %214, %v44
  %v216 = vpop.permute.xlu0 %215
  %218 = vset.pattern.permute.xlu0 0
  %219 = vperm.xlu0 %218, %v45
  %v220 = vpop.permute.xlu0 %219
  %222 = vset.pattern.permute.xlu0 0
  %223 = vperm.xlu0 %222, %v46
  %v224 = vpop.permute.xlu0 %223
  %226 = vset.pattern.permute.xlu0 0
  %227 = vperm.xlu0 %226, %v47
  %v228 = vpop.permute.xlu0 %227
  %230 = vset.pattern.permute.xlu0 0
  %231 = vperm.xlu0 %230, %v48
  %v232 = vpop.permute.xlu0 %231
  %234 = vset.pattern.permute.xlu0 0
  %235 = vperm.xlu0 %234, %v49
  %v236 = vpop.permute.xlu0 %235
  %238 = vset.pattern.permute.xlu0 0
  %239 = vperm.xlu0 %238, %v50
  %v240 = vpop.permute.xlu0 %239
  %242 = vset.pattern.permute.xlu0 0
  %243 = vperm.xlu0 %242, %v51
  %v244 = vpop.permute.xlu0 %243
  %246 = vset.pattern.permute.xlu0 0
  %247 = vperm.xlu0 %246, %v52
  %v248 = vpop.permute.xlu0 %247
  %250 = vset.pattern.permute.xlu0 0
  %251 = vperm.xlu0 %250, %v53
  %v252 = vpop.permute.xlu0 %251
  %254 = vset.pattern.permute.xlu0 0
  %255 = vperm.xlu0 %254, %v54
  %v256 = vpop.permute.xlu0 %255
  %258 = vset.pattern.permute.xlu0 0
  %259 = vperm.xlu0 %258, %v55
  %v260 = vpop.permute.xlu0 %259
  %262 = vset.pattern.permute.xlu0 0
  %263 = vperm.xlu0 %262, %v56
  %v264 = vpop.permute.xlu0 %263
  %266 = vset.pattern.permute.xlu0 0
  %267 = vperm.xlu0 %266, %v57
  %v268 = vpop.permute.xlu0 %267
  %270 = vset.pattern.permute.xlu0 0
  %271 = vperm.xlu0 %270, %v58
  %v272 = vpop.permute.xlu0 %271
  %274 = vset.pattern.permute.xlu0 0
  %275 = vperm.xlu0 %274, %v59
  %v276 = vpop.permute.xlu0 %275
  %278 = vset.pattern.permute.xlu0 0
  %279 = vperm.xlu0 %278, %v60
  %v280 = vpop.permute.xlu0 %279
  %282 = vset.pattern.permute.xlu0 0
  %283 = vperm.xlu0 %282, %v61
  %v284 = vpop.permute.xlu0 %283
  %286 = vset.pattern.permute.xlu0 0
  %287 = vperm.xlu0 %286, %v62
  %v288 = vpop.permute.xlu0 %287
  %290 = vset.pattern.permute.xlu0 0
  %291 = vperm.xlu0 %290, %v63
  %v292 = vpop.permute.xlu0 %291
  %v295 = vlaneseq
  %v296 = vshrl.u32 %v295, 7
  %v297 = vsub.s32 0, %v296
  %v298 = vrot.slane %v153, %v297
  %v300 = vmul.f32 %v168, %v298
  %v301 = vmul.f32 %v172, %v298
  %v302 = vmul.f32 %v176, %v298
  %v303 = vmul.f32 %v180, %v298
  %v304 = vmul.f32 %v184, %v298
  %v305 = vmul.f32 %v188, %v298
  %v306 = vmul.f32 %v192, %v298
  %v307 = vmul.f32 %v196, %v298
  %v308 = vmul.f32 %v200, %v298
  %v309 = vmul.f32 %v204, %v298
  %v310 = vmul.f32 %v208, %v298
  %v311 = vmul.f32 %v212, %v298
  %v312 = vmul.f32 %v216, %v298
  %v313 = vmul.f32 %v220, %v298
  %v314 = vmul.f32 %v224, %v298
  %v315 = vmul.f32 %v228, %v298
  %v316 = vmul.f32 %v232, %v298
  %v317 = vmul.f32 %v236, %v298
  %v318 = vmul.f32 %v240, %v298
  %v319 = vmul.f32 %v244, %v298
  %v320 = vmul.f32 %v248, %v298
  %v321 = vmul.f32 %v252, %v298
  %v322 = vmul.f32 %v256, %v298
  %v323 = vmul.f32 %v260, %v298
  %v324 = vmul.f32 %v264, %v298
  %v325 = vmul.f32 %v268, %v298
  %v326 = vmul.f32 %v272, %v298
  %v327 = vmul.f32 %v276, %v298
  %v328 = vmul.f32 %v280, %v298
  %v329 = vmul.f32 %v284, %v298
  %v330 = vmul.f32 %v288, %v298
  %v331 = vmul.f32 %v292, %v298
  %v332 = vadd.f32 %v164, %v300
  %v333 = vadd.f32 %v164, %v301
  %v334 = vadd.f32 %v164, %v302
  %v335 = vadd.f32 %v164, %v303
  %v336 = vadd.f32 %v164, %v304
  %v337 = vadd.f32 %v164, %v305
  %v338 = vadd.f32 %v164, %v306
  %v339 = vadd.f32 %v164, %v307
  %v340 = vadd.f32 %v164, %v308
  %v341 = vadd.f32 %v164, %v309
  %v342 = vadd.f32 %v164, %v310
  %v343 = vadd.f32 %v164, %v311
  %v344 = vadd.f32 %v164, %v312
  %v345 = vadd.f32 %v164, %v313
  %v346 = vadd.f32 %v164, %v314
  %v347 = vadd.f32 %v164, %v315
  %v348 = vadd.f32 %v164, %v316
  %v349 = vadd.f32 %v164, %v317
  %v350 = vadd.f32 %v164, %v318
  %v351 = vadd.f32 %v164, %v319
  %v352 = vadd.f32 %v164, %v320
  %v353 = vadd.f32 %v164, %v321
  %v354 = vadd.f32 %v164, %v322
  %v355 = vadd.f32 %v164, %v323
  %v356 = vadd.f32 %v164, %v324
  %v357 = vadd.f32 %v164, %v325
  %v358 = vadd.f32 %v164, %v326
  %v359 = vadd.f32 %v164, %v327
  %v360 = vadd.f32 %v164, %v328
  %v361 = vadd.f32 %v164, %v329
  %v362 = vadd.f32 %v164, %v330
  %v363 = vadd.f32 %v164, %v331
  %364 = vset.pattern.permute.xlu0 1
  %365 = vperm.xlu0 %364, %v32
  %v366 = vpop.permute.xlu0 %365
  %368 = vset.pattern.permute.xlu0 1
  %369 = vperm.xlu0 %368, %v33
  %v370 = vpop.permute.xlu0 %369
  %372 = vset.pattern.permute.xlu0 1
  %373 = vperm.xlu0 %372, %v34
  %v374 = vpop.permute.xlu0 %373
  %376 = vset.pattern.permute.xlu0 1
  %377 = vperm.xlu0 %376, %v35
  %v378 = vpop.permute.xlu0 %377
  %380 = vset.pattern.permute.xlu0 1
  %381 = vperm.xlu0 %380, %v36
  %v382 = vpop.permute.xlu0 %381
  %384 = vset.pattern.permute.xlu0 1
  %385 = vperm.xlu0 %384, %v37
  %v386 = vpop.permute.xlu0 %385
  %388 = vset.pattern.permute.xlu0 1
  %389 = vperm.xlu0 %388, %v38
  %v390 = vpop.permute.xlu0 %389
  %392 = vset.pattern.permute.xlu0 1
  %393 = vperm.xlu0 %392, %v39
  %v394 = vpop.permute.xlu0 %393
  %396 = vset.pattern.permute.xlu0 1
  %397 = vperm.xlu0 %396, %v40
  %v398 = vpop.permute.xlu0 %397
  %400 = vset.pattern.permute.xlu0 1
  %401 = vperm.xlu0 %400, %v41
  %v402 = vpop.permute.xlu0 %401
  %404 = vset.pattern.permute.xlu0 1
  %405 = vperm.xlu0 %404, %v42
  %v406 = vpop.permute.xlu0 %405
  %408 = vset.pattern.permute.xlu0 1
  %409 = vperm.xlu0 %408, %v43
  %v410 = vpop.permute.xlu0 %409
  %412 = vset.pattern.permute.xlu0 1
  %413 = vperm.xlu0 %412, %v44
  %v414 = vpop.permute.xlu0 %413
  %416 = vset.pattern.permute.xlu0 1
  %417 = vperm.xlu0 %416, %v45
  %v418 = vpop.permute.xlu0 %417
  %420 = vset.pattern.permute.xlu0 1
  %421 = vperm.xlu0 %420, %v46
  %v422 = vpop.permute.xlu0 %421
  %424 = vset.pattern.permute.xlu0 1
  %425 = vperm.xlu0 %424, %v47
  %v426 = vpop.permute.xlu0 %425
  %428 = vset.pattern.permute.xlu0 1
  %429 = vperm.xlu0 %428, %v48
  %v430 = vpop.permute.xlu0 %429
  %432 = vset.pattern.permute.xlu0 1
  %433 = vperm.xlu0 %432, %v49
  %v434 = vpop.permute.xlu0 %433
  %436 = vset.pattern.permute.xlu0 1
  %437 = vperm.xlu0 %436, %v50
  %v438 = vpop.permute.xlu0 %437
  %440 = vset.pattern.permute.xlu0 1
  %441 = vperm.xlu0 %440, %v51
  %v442 = vpop.permute.xlu0 %441
  %444 = vset.pattern.permute.xlu0 1
  %445 = vperm.xlu0 %444, %v52
  %v446 = vpop.permute.xlu0 %445
  %448 = vset.pattern.permute.xlu0 1
  %449 = vperm.xlu0 %448, %v53
  %v450 = vpop.permute.xlu0 %449
  %452 = vset.pattern.permute.xlu0 1
  %453 = vperm.xlu0 %452, %v54
  %v454 = vpop.permute.xlu0 %453
  %456 = vset.pattern.permute.xlu0 1
  %457 = vperm.xlu0 %456, %v55
  %v458 = vpop.permute.xlu0 %457
  %460 = vset.pattern.permute.xlu0 1
  %461 = vperm.xlu0 %460, %v56
  %v462 = vpop.permute.xlu0 %461
  %464 = vset.pattern.permute.xlu0 1
  %465 = vperm.xlu0 %464, %v57
  %v466 = vpop.permute.xlu0 %465
  %468 = vset.pattern.permute.xlu0 1
  %469 = vperm.xlu0 %468, %v58
  %v470 = vpop.permute.xlu0 %469
  %472 = vset.pattern.permute.xlu0 1
  %473 = vperm.xlu0 %472, %v59
  %v474 = vpop.permute.xlu0 %473
  %476 = vset.pattern.permute.xlu0 1
  %477 = vperm.xlu0 %476, %v60
  %v478 = vpop.permute.xlu0 %477
  %480 = vset.pattern.permute.xlu0 1
  %481 = vperm.xlu0 %480, %v61
  %v482 = vpop.permute.xlu0 %481
  %484 = vset.pattern.permute.xlu0 1
  %485 = vperm.xlu0 %484, %v62
  %v486 = vpop.permute.xlu0 %485
  %488 = vset.pattern.permute.xlu0 1
  %489 = vperm.xlu0 %488, %v63
  %v490 = vpop.permute.xlu0 %489
  %v493 = vlaneseq
  %v494 = vshrl.u32 %v493, 7
  %v495 = vsub.s32 0, %v494
  %v496 = vrot.slane %v154, %v495
  %v498 = vmul.f32 %v366, %v496
  %v499 = vmul.f32 %v370, %v496
  %v500 = vmul.f32 %v374, %v496
  %v501 = vmul.f32 %v378, %v496
  %v502 = vmul.f32 %v382, %v496
  %v503 = vmul.f32 %v386, %v496
  %v504 = vmul.f32 %v390, %v496
  %v505 = vmul.f32 %v394, %v496
  %v506 = vmul.f32 %v398, %v496
  %v507 = vmul.f32 %v402, %v496
  %v508 = vmul.f32 %v406, %v496
  %v509 = vmul.f32 %v410, %v496
  %v510 = vmul.f32 %v414, %v496
  %v511 = vmul.f32 %v418, %v496
  %v512 = vmul.f32 %v422, %v496
  %v513 = vmul.f32 %v426, %v496
  %v514 = vmul.f32 %v430, %v496
  %v515 = vmul.f32 %v434, %v496
  %v516 = vmul.f32 %v438, %v496
  %v517 = vmul.f32 %v442, %v496
  %v518 = vmul.f32 %v446, %v496
  %v519 = vmul.f32 %v450, %v496
  %v520 = vmul.f32 %v454, %v496
  %v521 = vmul.f32 %v458, %v496
  %v522 = vmul.f32 %v462, %v496
  %v523 = vmul.f32 %v466, %v496
  %v524 = vmul.f32 %v470, %v496
  %v525 = vmul.f32 %v474, %v496
  %v526 = vmul.f32 %v478, %v496
  %v527 = vmul.f32 %v482, %v496
  %v528 = vmul.f32 %v486, %v496
  %v529 = vmul.f32 %v490, %v496
  %v530 = vadd.f32 %v332, %v498
  %v531 = vadd.f32 %v333, %v499
  %v532 = vadd.f32 %v334, %v500
  %v533 = vadd.f32 %v335, %v501
  %v534 = vadd.f32 %v336, %v502
  %v535 = vadd.f32 %v337, %v503
  %v536 = vadd.f32 %v338, %v504
  %v537 = vadd.f32 %v339, %v505
  %v538 = vadd.f32 %v340, %v506
  %v539 = vadd.f32 %v341, %v507
  %v540 = vadd.f32 %v342, %v508
  %v541 = vadd.f32 %v343, %v509
  %v542 = vadd.f32 %v344, %v510
  %v543 = vadd.f32 %v345, %v511
  %v544 = vadd.f32 %v346, %v512
  %v545 = vadd.f32 %v347, %v513
  %v546 = vadd.f32 %v348, %v514
  %v547 = vadd.f32 %v349, %v515
  %v548 = vadd.f32 %v350, %v516
  %v549 = vadd.f32 %v351, %v517
  %v550 = vadd.f32 %v352, %v518
  %v551 = vadd.f32 %v353, %v519
  %v552 = vadd.f32 %v354, %v520
  %v553 = vadd.f32 %v355, %v521
  %v554 = vadd.f32 %v356, %v522
  %v555 = vadd.f32 %v357, %v523
  %v556 = vadd.f32 %v358, %v524
  %v557 = vadd.f32 %v359, %v525
  %v558 = vadd.f32 %v360, %v526
  %v559 = vadd.f32 %v361, %v527
  %v560 = vadd.f32 %v362, %v528
  %v561 = vadd.f32 %v363, %v529
  %562 = vset.pattern.permute.xlu0 2
  %563 = vperm.xlu0 %562, %v32
  %v564 = vpop.permute.xlu0 %563
  %566 = vset.pattern.permute.xlu0 2
  %567 = vperm.xlu0 %566, %v33
  %v568 = vpop.permute.xlu0 %567
  %570 = vset.pattern.permute.xlu0 2
  %571 = vperm.xlu0 %570, %v34
  %v572 = vpop.permute.xlu0 %571
  %574 = vset.pattern.permute.xlu0 2
  %575 = vperm.xlu0 %574, %v35
  %v576 = vpop.permute.xlu0 %575
  %578 = vset.pattern.permute.xlu0 2
  %579 = vperm.xlu0 %578, %v36
  %v580 = vpop.permute.xlu0 %579
  %582 = vset.pattern.permute.xlu0 2
  %583 = vperm.xlu0 %582, %v37
  %v584 = vpop.permute.xlu0 %583
  %586 = vset.pattern.permute.xlu0 2
  %587 = vperm.xlu0 %586, %v38
  %v588 = vpop.permute.xlu0 %587
  %590 = vset.pattern.permute.xlu0 2
  %591 = vperm.xlu0 %590, %v39
  %v592 = vpop.permute.xlu0 %591
  %594 = vset.pattern.permute.xlu0 2
  %595 = vperm.xlu0 %594, %v40
  %v596 = vpop.permute.xlu0 %595
  %598 = vset.pattern.permute.xlu0 2
  %599 = vperm.xlu0 %598, %v41
  %v600 = vpop.permute.xlu0 %599
  %602 = vset.pattern.permute.xlu0 2
  %603 = vperm.xlu0 %602, %v42
  %v604 = vpop.permute.xlu0 %603
  %606 = vset.pattern.permute.xlu0 2
  %607 = vperm.xlu0 %606, %v43
  %v608 = vpop.permute.xlu0 %607
  %610 = vset.pattern.permute.xlu0 2
  %611 = vperm.xlu0 %610, %v44
  %v612 = vpop.permute.xlu0 %611
  %614 = vset.pattern.permute.xlu0 2
  %615 = vperm.xlu0 %614, %v45
  %v616 = vpop.permute.xlu0 %615
  %618 = vset.pattern.permute.xlu0 2
  %619 = vperm.xlu0 %618, %v46
  %v620 = vpop.permute.xlu0 %619
  %622 = vset.pattern.permute.xlu0 2
  %623 = vperm.xlu0 %622, %v47
  %v624 = vpop.permute.xlu0 %623
  %626 = vset.pattern.permute.xlu0 2
  %627 = vperm.xlu0 %626, %v48
  %v628 = vpop.permute.xlu0 %627
  %630 = vset.pattern.permute.xlu0 2
  %631 = vperm.xlu0 %630, %v49
  %v632 = vpop.permute.xlu0 %631
  %634 = vset.pattern.permute.xlu0 2
  %635 = vperm.xlu0 %634, %v50
  %v636 = vpop.permute.xlu0 %635
  %638 = vset.pattern.permute.xlu0 2
  %639 = vperm.xlu0 %638, %v51
  %v640 = vpop.permute.xlu0 %639
  %642 = vset.pattern.permute.xlu0 2
  %643 = vperm.xlu0 %642, %v52
  %v644 = vpop.permute.xlu0 %643
  %646 = vset.pattern.permute.xlu0 2
  %647 = vperm.xlu0 %646, %v53
  %v648 = vpop.permute.xlu0 %647
  %650 = vset.pattern.permute.xlu0 2
  %651 = vperm.xlu0 %650, %v54
  %v652 = vpop.permute.xlu0 %651
  %654 = vset.pattern.permute.xlu0 2
  %655 = vperm.xlu0 %654, %v55
  %v656 = vpop.permute.xlu0 %655
  %658 = vset.pattern.permute.xlu0 2
  %659 = vperm.xlu0 %658, %v56
  %v660 = vpop.permute.xlu0 %659
  %662 = vset.pattern.permute.xlu0 2
  %663 = vperm.xlu0 %662, %v57
  %v664 = vpop.permute.xlu0 %663
  %666 = vset.pattern.permute.xlu0 2
  %667 = vperm.xlu0 %666, %v58
  %v668 = vpop.permute.xlu0 %667
  %670 = vset.pattern.permute.xlu0 2
  %671 = vperm.xlu0 %670, %v59
  %v672 = vpop.permute.xlu0 %671
  %674 = vset.pattern.permute.xlu0 2
  %675 = vperm.xlu0 %674, %v60
  %v676 = vpop.permute.xlu0 %675
  %678 = vset.pattern.permute.xlu0 2
  %679 = vperm.xlu0 %678, %v61
  %v680 = vpop.permute.xlu0 %679
  %682 = vset.pattern.permute.xlu0 2
  %683 = vperm.xlu0 %682, %v62
  %v684 = vpop.permute.xlu0 %683
  %686 = vset.pattern.permute.xlu0 2
  %687 = vperm.xlu0 %686, %v63
  %v688 = vpop.permute.xlu0 %687
  %v691 = vlaneseq
  %v692 = vshrl.u32 %v691, 7
  %v693 = vsub.s32 0, %v692
  %v694 = vrot.slane %v155, %v693
  %v696 = vmul.f32 %v564, %v694
  %v697 = vmul.f32 %v568, %v694
  %v698 = vmul.f32 %v572, %v694
  %v699 = vmul.f32 %v576, %v694
  %v700 = vmul.f32 %v580, %v694
  %v701 = vmul.f32 %v584, %v694
  %v702 = vmul.f32 %v588, %v694
  %v703 = vmul.f32 %v592, %v694
  %v704 = vmul.f32 %v596, %v694
  %v705 = vmul.f32 %v600, %v694
  %v706 = vmul.f32 %v604, %v694
  %v707 = vmul.f32 %v608, %v694
  %v708 = vmul.f32 %v612, %v694
  %v709 = vmul.f32 %v616, %v694
  %v710 = vmul.f32 %v620, %v694
  %v711 = vmul.f32 %v624, %v694
  %v712 = vmul.f32 %v628, %v694
  %v713 = vmul.f32 %v632, %v694
  %v714 = vmul.f32 %v636, %v694
  %v715 = vmul.f32 %v640, %v694
  %v716 = vmul.f32 %v644, %v694
  %v717 = vmul.f32 %v648, %v694
  %v718 = vmul.f32 %v652, %v694
  %v719 = vmul.f32 %v656, %v694
  %v720 = vmul.f32 %v660, %v694
  %v721 = vmul.f32 %v664, %v694
  %v722 = vmul.f32 %v668, %v694
  %v723 = vmul.f32 %v672, %v694
  %v724 = vmul.f32 %v676, %v694
  %v725 = vmul.f32 %v680, %v694
  %v726 = vmul.f32 %v684, %v694
  %v727 = vmul.f32 %v688, %v694
  %v728 = vadd.f32 %v530, %v696
  %v729 = vadd.f32 %v531, %v697
  %v730 = vadd.f32 %v532, %v698
  %v731 = vadd.f32 %v533, %v699
  %v732 = vadd.f32 %v534, %v700
  %v733 = vadd.f32 %v535, %v701
  %v734 = vadd.f32 %v536, %v702
  %v735 = vadd.f32 %v537, %v703
  %v736 = vadd.f32 %v538, %v704
  %v737 = vadd.f32 %v539, %v705
  %v738 = vadd.f32 %v540, %v706
  %v739 = vadd.f32 %v541, %v707
  %v740 = vadd.f32 %v542, %v708
  %v741 = vadd.f32 %v543, %v709
  %v742 = vadd.f32 %v544, %v710
  %v743 = vadd.f32 %v545, %v711
  %v744 = vadd.f32 %v546, %v712
  %v745 = vadd.f32 %v547, %v713
  %v746 = vadd.f32 %v548, %v714
  %v747 = vadd.f32 %v549, %v715
  %v748 = vadd.f32 %v550, %v716
  %v749 = vadd.f32 %v551, %v717
  %v750 = vadd.f32 %v552, %v718
  %v751 = vadd.f32 %v553, %v719
  %v752 = vadd.f32 %v554, %v720
  %v753 = vadd.f32 %v555, %v721
  %v754 = vadd.f32 %v556, %v722
  %v755 = vadd.f32 %v557, %v723
  %v756 = vadd.f32 %v558, %v724
  %v757 = vadd.f32 %v559, %v725
  %v758 = vadd.f32 %v560, %v726
  %v759 = vadd.f32 %v561, %v727
  %v760 = vmul.f32 %v564, %v298
  %v761 = vmul.f32 %v568, %v298
  %v762 = vmul.f32 %v572, %v298
  %v763 = vmul.f32 %v576, %v298
  %v764 = vmul.f32 %v580, %v298
  %v765 = vmul.f32 %v584, %v298
  %v766 = vmul.f32 %v588, %v298
  %v767 = vmul.f32 %v592, %v298
  %v768 = vmul.f32 %v596, %v298
  %v769 = vmul.f32 %v600, %v298
  %v770 = vmul.f32 %v604, %v298
  %v771 = vmul.f32 %v608, %v298
  %v772 = vmul.f32 %v612, %v298
  %v773 = vmul.f32 %v616, %v298
  %v774 = vmul.f32 %v620, %v298
  %v775 = vmul.f32 %v624, %v298
  %v776 = vmul.f32 %v628, %v298
  %v777 = vmul.f32 %v632, %v298
  %v778 = vmul.f32 %v636, %v298
  %v779 = vmul.f32 %v640, %v298
  %v780 = vmul.f32 %v644, %v298
  %v781 = vmul.f32 %v648, %v298
  %v782 = vmul.f32 %v652, %v298
  %v783 = vmul.f32 %v656, %v298
  %v784 = vmul.f32 %v660, %v298
  %v785 = vmul.f32 %v664, %v298
  %v786 = vmul.f32 %v668, %v298
  %v787 = vmul.f32 %v672, %v298
  %v788 = vmul.f32 %v676, %v298
  %v789 = vmul.f32 %v680, %v298
  %v790 = vmul.f32 %v684, %v298
  %v791 = vmul.f32 %v688, %v298
  %v792 = vadd.f32 %v164, %v760
  %v793 = vadd.f32 %v164, %v761
  %v794 = vadd.f32 %v164, %v762
  %v795 = vadd.f32 %v164, %v763
  %v796 = vadd.f32 %v164, %v764
  %v797 = vadd.f32 %v164, %v765
  %v798 = vadd.f32 %v164, %v766
  %v799 = vadd.f32 %v164, %v767
  %v800 = vadd.f32 %v164, %v768
  %v801 = vadd.f32 %v164, %v769
  %v802 = vadd.f32 %v164, %v770
  %v803 = vadd.f32 %v164, %v771
  %v804 = vadd.f32 %v164, %v772
  %v805 = vadd.f32 %v164, %v773
  %v806 = vadd.f32 %v164, %v774
  %v807 = vadd.f32 %v164, %v775
  %v808 = vadd.f32 %v164, %v776
  %v809 = vadd.f32 %v164, %v777
  %v810 = vadd.f32 %v164, %v778
  %v811 = vadd.f32 %v164, %v779
  %v812 = vadd.f32 %v164, %v780
  %v813 = vadd.f32 %v164, %v781
  %v814 = vadd.f32 %v164, %v782
  %v815 = vadd.f32 %v164, %v783
  %v816 = vadd.f32 %v164, %v784
  %v817 = vadd.f32 %v164, %v785
  %v818 = vadd.f32 %v164, %v786
  %v819 = vadd.f32 %v164, %v787
  %v820 = vadd.f32 %v164, %v788
  %v821 = vadd.f32 %v164, %v789
  %v822 = vadd.f32 %v164, %v790
  %v823 = vadd.f32 %v164, %v791
  %824 = vset.pattern.permute.xlu0 3
  %825 = vperm.xlu0 %824, %v32
  %v826 = vpop.permute.xlu0 %825
  %828 = vset.pattern.permute.xlu0 3
  %829 = vperm.xlu0 %828, %v33
  %v830 = vpop.permute.xlu0 %829
  %832 = vset.pattern.permute.xlu0 3
  %833 = vperm.xlu0 %832, %v34
  %v834 = vpop.permute.xlu0 %833
  %836 = vset.pattern.permute.xlu0 3
  %837 = vperm.xlu0 %836, %v35
  %v838 = vpop.permute.xlu0 %837
  %840 = vset.pattern.permute.xlu0 3
  %841 = vperm.xlu0 %840, %v36
  %v842 = vpop.permute.xlu0 %841
  %844 = vset.pattern.permute.xlu0 3
  %845 = vperm.xlu0 %844, %v37
  %v846 = vpop.permute.xlu0 %845
  %848 = vset.pattern.permute.xlu0 3
  %849 = vperm.xlu0 %848, %v38
  %v850 = vpop.permute.xlu0 %849
  %852 = vset.pattern.permute.xlu0 3
  %853 = vperm.xlu0 %852, %v39
  %v854 = vpop.permute.xlu0 %853
  %856 = vset.pattern.permute.xlu0 3
  %857 = vperm.xlu0 %856, %v40
  %v858 = vpop.permute.xlu0 %857
  %860 = vset.pattern.permute.xlu0 3
  %861 = vperm.xlu0 %860, %v41
  %v862 = vpop.permute.xlu0 %861
  %864 = vset.pattern.permute.xlu0 3
  %865 = vperm.xlu0 %864, %v42
  %v866 = vpop.permute.xlu0 %865
  %868 = vset.pattern.permute.xlu0 3
  %869 = vperm.xlu0 %868, %v43
  %v870 = vpop.permute.xlu0 %869
  %872 = vset.pattern.permute.xlu0 3
  %873 = vperm.xlu0 %872, %v44
  %v874 = vpop.permute.xlu0 %873
  %876 = vset.pattern.permute.xlu0 3
  %877 = vperm.xlu0 %876, %v45
  %v878 = vpop.permute.xlu0 %877
  %880 = vset.pattern.permute.xlu0 3
  %881 = vperm.xlu0 %880, %v46
  %v882 = vpop.permute.xlu0 %881
  %884 = vset.pattern.permute.xlu0 3
  %885 = vperm.xlu0 %884, %v47
  %v886 = vpop.permute.xlu0 %885
  %888 = vset.pattern.permute.xlu0 3
  %889 = vperm.xlu0 %888, %v48
  %v890 = vpop.permute.xlu0 %889
  %892 = vset.pattern.permute.xlu0 3
  %893 = vperm.xlu0 %892, %v49
  %v894 = vpop.permute.xlu0 %893
  %896 = vset.pattern.permute.xlu0 3
  %897 = vperm.xlu0 %896, %v50
  %v898 = vpop.permute.xlu0 %897
  %900 = vset.pattern.permute.xlu0 3
  %901 = vperm.xlu0 %900, %v51
  %v902 = vpop.permute.xlu0 %901
  %904 = vset.pattern.permute.xlu0 3
  %905 = vperm.xlu0 %904, %v52
  %v906 = vpop.permute.xlu0 %905
  %908 = vset.pattern.permute.xlu0 3
  %909 = vperm.xlu0 %908, %v53
  %v910 = vpop.permute.xlu0 %909
  %912 = vset.pattern.permute.xlu0 3
  %913 = vperm.xlu0 %912, %v54
  %v914 = vpop.permute.xlu0 %913
  %916 = vset.pattern.permute.xlu0 3
  %917 = vperm.xlu0 %916, %v55
  %v918 = vpop.permute.xlu0 %917
  %920 = vset.pattern.permute.xlu0 3
  %921 = vperm.xlu0 %920, %v56
  %v922 = vpop.permute.xlu0 %921
  %924 = vset.pattern.permute.xlu0 3
  %925 = vperm.xlu0 %924, %v57
  %v926 = vpop.permute.xlu0 %925
  %928 = vset.pattern.permute.xlu0 3
  %929 = vperm.xlu0 %928, %v58
  %v930 = vpop.permute.xlu0 %929
  %932 = vset.pattern.permute.xlu0 3
  %933 = vperm.xlu0 %932, %v59
  %v934 = vpop.permute.xlu0 %933
  %936 = vset.pattern.permute.xlu0 3
  %937 = vperm.xlu0 %936, %v60
  %v938 = vpop.permute.xlu0 %937
  %940 = vset.pattern.permute.xlu0 3
  %941 = vperm.xlu0 %940, %v61
  %v942 = vpop.permute.xlu0 %941
  %944 = vset.pattern.permute.xlu0 3
  %945 = vperm.xlu0 %944, %v62
  %v946 = vpop.permute.xlu0 %945
  %948 = vset.pattern.permute.xlu0 3
  %949 = vperm.xlu0 %948, %v63
  %v950 = vpop.permute.xlu0 %949
  %v953 = vlaneseq
  %v954 = vshrl.u32 %v953, 7
  %v955 = vsub.s32 0, %v954
  %v956 = vrot.slane %v156, %v955
  %v958 = vmul.f32 %v826, %v956
  %v959 = vmul.f32 %v830, %v956
  %v960 = vmul.f32 %v834, %v956
  %v961 = vmul.f32 %v838, %v956
  %v962 = vmul.f32 %v842, %v956
  %v963 = vmul.f32 %v846, %v956
  %v964 = vmul.f32 %v850, %v956
  %v965 = vmul.f32 %v854, %v956
  %v966 = vmul.f32 %v858, %v956
  %v967 = vmul.f32 %v862, %v956
  %v968 = vmul.f32 %v866, %v956
  %v969 = vmul.f32 %v870, %v956
  %v970 = vmul.f32 %v874, %v956
  %v971 = vmul.f32 %v878, %v956
  %v972 = vmul.f32 %v882, %v956
  %v973 = vmul.f32 %v886, %v956
  %v974 = vmul.f32 %v890, %v956
  %v975 = vmul.f32 %v894, %v956
  %v976 = vmul.f32 %v898, %v956
  %v977 = vmul.f32 %v902, %v956
  %v978 = vmul.f32 %v906, %v956
  %v979 = vmul.f32 %v910, %v956
  %v980 = vmul.f32 %v914, %v956
  %v981 = vmul.f32 %v918, %v956
  %v982 = vmul.f32 %v922, %v956
  %v983 = vmul.f32 %v926, %v956
  %v984 = vmul.f32 %v930, %v956
  %v985 = vmul.f32 %v934, %v956
  %v986 = vmul.f32 %v938, %v956
  %v987 = vmul.f32 %v942, %v956
  %v988 = vmul.f32 %v946, %v956
  %v989 = vmul.f32 %v950, %v956
  %v990 = vadd.f32 %v728, %v958
  %v991 = vadd.f32 %v729, %v959
  %v992 = vadd.f32 %v730, %v960
  %v993 = vadd.f32 %v731, %v961
  %v994 = vadd.f32 %v732, %v962
  %v995 = vadd.f32 %v733, %v963
  %v996 = vadd.f32 %v734, %v964
  %v997 = vadd.f32 %v735, %v965
  %v998 = vadd.f32 %v736, %v966
  %v999 = vadd.f32 %v737, %v967
  %v1000 = vadd.f32 %v738, %v968
  %v1001 = vadd.f32 %v739, %v969
  %v1002 = vadd.f32 %v740, %v970
  %v1003 = vadd.f32 %v741, %v971
  %v1004 = vadd.f32 %v742, %v972
  %v1005 = vadd.f32 %v743, %v973
  %v1006 = vadd.f32 %v744, %v974
  %v1007 = vadd.f32 %v745, %v975
  %v1008 = vadd.f32 %v746, %v976
  %v1009 = vadd.f32 %v747, %v977
  %v1010 = vadd.f32 %v748, %v978
  %v1011 = vadd.f32 %v749, %v979
  %v1012 = vadd.f32 %v750, %v980
  %v1013 = vadd.f32 %v751, %v981
  %v1014 = vadd.f32 %v752, %v982
  %v1015 = vadd.f32 %v753, %v983
  %v1016 = vadd.f32 %v754, %v984
  %v1017 = vadd.f32 %v755, %v985
  %v1018 = vadd.f32 %v756, %v986
  %v1019 = vadd.f32 %v757, %v987
  %v1020 = vadd.f32 %v758, %v988
  %v1021 = vadd.f32 %v759, %v989
  %v1022 = vmul.f32 %v826, %v496
  %v1023 = vmul.f32 %v830, %v496
  %v1024 = vmul.f32 %v834, %v496
  %v1025 = vmul.f32 %v838, %v496
  %v1026 = vmul.f32 %v842, %v496
  %v1027 = vmul.f32 %v846, %v496
  %v1028 = vmul.f32 %v850, %v496
  %v1029 = vmul.f32 %v854, %v496
  %v1030 = vmul.f32 %v858, %v496
  %v1031 = vmul.f32 %v862, %v496
  %v1032 = vmul.f32 %v866, %v496
  %v1033 = vmul.f32 %v870, %v496
  %v1034 = vmul.f32 %v874, %v496
  %v1035 = vmul.f32 %v878, %v496
  %v1036 = vmul.f32 %v882, %v496
  %v1037 = vmul.f32 %v886, %v496
  %v1038 = vmul.f32 %v890, %v496
  %v1039 = vmul.f32 %v894, %v496
  %v1040 = vmul.f32 %v898, %v496
  %v1041 = vmul.f32 %v902, %v496
  %v1042 = vmul.f32 %v906, %v496
  %v1043 = vmul.f32 %v910, %v496
  %v1044 = vmul.f32 %v914, %v496
  %v1045 = vmul.f32 %v918, %v496
  %v1046 = vmul.f32 %v922, %v496
  %v1047 = vmul.f32 %v926, %v496
  %v1048 = vmul.f32 %v930, %v496
  %v1049 = vmul.f32 %v934, %v496
  %v1050 = vmul.f32 %v938, %v496
  %v1051 = vmul.f32 %v942, %v496
  %v1052 = vmul.f32 %v946, %v496
  %v1053 = vmul.f32 %v950, %v496
  %v1054 = vadd.f32 %v792, %v1022
  %v1055 = vadd.f32 %v793, %v1023
  %v1056 = vadd.f32 %v794, %v1024
  %v1057 = vadd.f32 %v795, %v1025
  %v1058 = vadd.f32 %v796, %v1026
  %v1059 = vadd.f32 %v797, %v1027
  %v1060 = vadd.f32 %v798, %v1028
  %v1061 = vadd.f32 %v799, %v1029
  %v1062 = vadd.f32 %v800, %v1030
  %v1063 = vadd.f32 %v801, %v1031
  %v1064 = vadd.f32 %v802, %v1032
  %v1065 = vadd.f32 %v803, %v1033
  %v1066 = vadd.f32 %v804, %v1034
  %v1067 = vadd.f32 %v805, %v1035
  %v1068 = vadd.f32 %v806, %v1036
  %v1069 = vadd.f32 %v807, %v1037
  %v1070 = vadd.f32 %v808, %v1038
  %v1071 = vadd.f32 %v809, %v1039
  %v1072 = vadd.f32 %v810, %v1040
  %v1073 = vadd.f32 %v811, %v1041
  %v1074 = vadd.f32 %v812, %v1042
  %v1075 = vadd.f32 %v813, %v1043
  %v1076 = vadd.f32 %v814, %v1044
  %v1077 = vadd.f32 %v815, %v1045
  %v1078 = vadd.f32 %v816, %v1046
  %v1079 = vadd.f32 %v817, %v1047
  %v1080 = vadd.f32 %v818, %v1048
  %v1081 = vadd.f32 %v819, %v1049
  %v1082 = vadd.f32 %v820, %v1050
  %v1083 = vadd.f32 %v821, %v1051
  %v1084 = vadd.f32 %v822, %v1052
  %v1085 = vadd.f32 %v823, %v1053
  %1086 = vset.pattern.permute.xlu0 4
  %1087 = vperm.xlu0 %1086, %v32
  %v1088 = vpop.permute.xlu0 %1087
  %1090 = vset.pattern.permute.xlu0 4
  %1091 = vperm.xlu0 %1090, %v33
  %v1092 = vpop.permute.xlu0 %1091
  %1094 = vset.pattern.permute.xlu0 4
  %1095 = vperm.xlu0 %1094, %v34
  %v1096 = vpop.permute.xlu0 %1095
  %1098 = vset.pattern.permute.xlu0 4
  %1099 = vperm.xlu0 %1098, %v35
  %v1100 = vpop.permute.xlu0 %1099
  %1102 = vset.pattern.permute.xlu0 4
  %1103 = vperm.xlu0 %1102, %v36
  %v1104 = vpop.permute.xlu0 %1103
  %1106 = vset.pattern.permute.xlu0 4
  %1107 = vperm.xlu0 %1106, %v37
  %v1108 = vpop.permute.xlu0 %1107
  %1110 = vset.pattern.permute.xlu0 4
  %1111 = vperm.xlu0 %1110, %v38
  %v1112 = vpop.permute.xlu0 %1111
  %1114 = vset.pattern.permute.xlu0 4
  %1115 = vperm.xlu0 %1114, %v39
  %v1116 = vpop.permute.xlu0 %1115
  %1118 = vset.pattern.permute.xlu0 4
  %1119 = vperm.xlu0 %1118, %v40
  %v1120 = vpop.permute.xlu0 %1119
  %1122 = vset.pattern.permute.xlu0 4
  %1123 = vperm.xlu0 %1122, %v41
  %v1124 = vpop.permute.xlu0 %1123
  %1126 = vset.pattern.permute.xlu0 4
  %1127 = vperm.xlu0 %1126, %v42
  %v1128 = vpop.permute.xlu0 %1127
  %1130 = vset.pattern.permute.xlu0 4
  %1131 = vperm.xlu0 %1130, %v43
  %v1132 = vpop.permute.xlu0 %1131
  %1134 = vset.pattern.permute.xlu0 4
  %1135 = vperm.xlu0 %1134, %v44
  %v1136 = vpop.permute.xlu0 %1135
  %1138 = vset.pattern.permute.xlu0 4
  %1139 = vperm.xlu0 %1138, %v45
  %v1140 = vpop.permute.xlu0 %1139
  %1142 = vset.pattern.permute.xlu0 4
  %1143 = vperm.xlu0 %1142, %v46
  %v1144 = vpop.permute.xlu0 %1143
  %1146 = vset.pattern.permute.xlu0 4
  %1147 = vperm.xlu0 %1146, %v47
  %v1148 = vpop.permute.xlu0 %1147
  %1150 = vset.pattern.permute.xlu0 4
  %1151 = vperm.xlu0 %1150, %v48
  %v1152 = vpop.permute.xlu0 %1151
  %1154 = vset.pattern.permute.xlu0 4
  %1155 = vperm.xlu0 %1154, %v49
  %v1156 = vpop.permute.xlu0 %1155
  %1158 = vset.pattern.permute.xlu0 4
  %1159 = vperm.xlu0 %1158, %v50
  %v1160 = vpop.permute.xlu0 %1159
  %1162 = vset.pattern.permute.xlu0 4
  %1163 = vperm.xlu0 %1162, %v51
  %v1164 = vpop.permute.xlu0 %1163
  %1166 = vset.pattern.permute.xlu0 4
  %1167 = vperm.xlu0 %1166, %v52
  %v1168 = vpop.permute.xlu0 %1167
  %1170 = vset.pattern.permute.xlu0 4
  %1171 = vperm.xlu0 %1170, %v53
  %v1172 = vpop.permute.xlu0 %1171
  %1174 = vset.pattern.permute.xlu0 4
  %1175 = vperm.xlu0 %1174, %v54
  %v1176 = vpop.permute.xlu0 %1175
  %1178 = vset.pattern.permute.xlu0 4
  %1179 = vperm.xlu0 %1178, %v55
  %v1180 = vpop.permute.xlu0 %1179
  %1182 = vset.pattern.permute.xlu0 4
  %1183 = vperm.xlu0 %1182, %v56
  %v1184 = vpop.permute.xlu0 %1183
  %1186 = vset.pattern.permute.xlu0 4
  %1187 = vperm.xlu0 %1186, %v57
  %v1188 = vpop.permute.xlu0 %1187
  %1190 = vset.pattern.permute.xlu0 4
  %1191 = vperm.xlu0 %1190, %v58
  %v1192 = vpop.permute.xlu0 %1191
  %1194 = vset.pattern.permute.xlu0 4
  %1195 = vperm.xlu0 %1194, %v59
  %v1196 = vpop.permute.xlu0 %1195
  %1198 = vset.pattern.permute.xlu0 4
  %1199 = vperm.xlu0 %1198, %v60
  %v1200 = vpop.permute.xlu0 %1199
  %1202 = vset.pattern.permute.xlu0 4
  %1203 = vperm.xlu0 %1202, %v61
  %v1204 = vpop.permute.xlu0 %1203
  %1206 = vset.pattern.permute.xlu0 4
  %1207 = vperm.xlu0 %1206, %v62
  %v1208 = vpop.permute.xlu0 %1207
  %1210 = vset.pattern.permute.xlu0 4
  %1211 = vperm.xlu0 %1210, %v63
  %v1212 = vpop.permute.xlu0 %1211
  %v1215 = vlaneseq
  %v1216 = vshrl.u32 %v1215, 7
  %v1217 = vsub.s32 0, %v1216
  %v1218 = vrot.slane %v157, %v1217
  %v1220 = vmul.f32 %v1088, %v1218
  %v1221 = vmul.f32 %v1092, %v1218
  %v1222 = vmul.f32 %v1096, %v1218
  %v1223 = vmul.f32 %v1100, %v1218
  %v1224 = vmul.f32 %v1104, %v1218
  %v1225 = vmul.f32 %v1108, %v1218
  %v1226 = vmul.f32 %v1112, %v1218
  %v1227 = vmul.f32 %v1116, %v1218
  %v1228 = vmul.f32 %v1120, %v1218
  %v1229 = vmul.f32 %v1124, %v1218
  %v1230 = vmul.f32 %v1128, %v1218
  %v1231 = vmul.f32 %v1132, %v1218
  %v1232 = vmul.f32 %v1136, %v1218
  %v1233 = vmul.f32 %v1140, %v1218
  %v1234 = vmul.f32 %v1144, %v1218
  %v1235 = vmul.f32 %v1148, %v1218
  %v1236 = vmul.f32 %v1152, %v1218
  %v1237 = vmul.f32 %v1156, %v1218
  %v1238 = vmul.f32 %v1160, %v1218
  %v1239 = vmul.f32 %v1164, %v1218
  %v1240 = vmul.f32 %v1168, %v1218
  %v1241 = vmul.f32 %v1172, %v1218
  %v1242 = vmul.f32 %v1176, %v1218
  %v1243 = vmul.f32 %v1180, %v1218
  %v1244 = vmul.f32 %v1184, %v1218
  %v1245 = vmul.f32 %v1188, %v1218
  %v1246 = vmul.f32 %v1192, %v1218
  %v1247 = vmul.f32 %v1196, %v1218
  %v1248 = vmul.f32 %v1200, %v1218
  %v1249 = vmul.f32 %v1204, %v1218
  %v1250 = vmul.f32 %v1208, %v1218
  %v1251 = vmul.f32 %v1212, %v1218
  %v1252 = vadd.f32 %v990, %v1220
  %v1253 = vadd.f32 %v991, %v1221
  %v1254 = vadd.f32 %v992, %v1222
  %v1255 = vadd.f32 %v993, %v1223
  %v1256 = vadd.f32 %v994, %v1224
  %v1257 = vadd.f32 %v995, %v1225
  %v1258 = vadd.f32 %v996, %v1226
  %v1259 = vadd.f32 %v997, %v1227
  %v1260 = vadd.f32 %v998, %v1228
  %v1261 = vadd.f32 %v999, %v1229
  %v1262 = vadd.f32 %v1000, %v1230
  %v1263 = vadd.f32 %v1001, %v1231
  %v1264 = vadd.f32 %v1002, %v1232
  %v1265 = vadd.f32 %v1003, %v1233
  %v1266 = vadd.f32 %v1004, %v1234
  %v1267 = vadd.f32 %v1005, %v1235
  %v1268 = vadd.f32 %v1006, %v1236
  %v1269 = vadd.f32 %v1007, %v1237
  %v1270 = vadd.f32 %v1008, %v1238
  %v1271 = vadd.f32 %v1009, %v1239
  %v1272 = vadd.f32 %v1010, %v1240
  %v1273 = vadd.f32 %v1011, %v1241
  %v1274 = vadd.f32 %v1012, %v1242
  %v1275 = vadd.f32 %v1013, %v1243
  %v1276 = vadd.f32 %v1014, %v1244
  %v1277 = vadd.f32 %v1015, %v1245
  %v1278 = vadd.f32 %v1016, %v1246
  %v1279 = vadd.f32 %v1017, %v1247
  %v1280 = vadd.f32 %v1018, %v1248
  %v1281 = vadd.f32 %v1019, %v1249
  %v1282 = vadd.f32 %v1020, %v1250
  %v1283 = vadd.f32 %v1021, %v1251
  %v1284 = vmul.f32 %v1088, %v694
  %v1285 = vmul.f32 %v1092, %v694
  %v1286 = vmul.f32 %v1096, %v694
  %v1287 = vmul.f32 %v1100, %v694
  %v1288 = vmul.f32 %v1104, %v694
  %v1289 = vmul.f32 %v1108, %v694
  %v1290 = vmul.f32 %v1112, %v694
  %v1291 = vmul.f32 %v1116, %v694
  %v1292 = vmul.f32 %v1120, %v694
  %v1293 = vmul.f32 %v1124, %v694
  %v1294 = vmul.f32 %v1128, %v694
  %v1295 = vmul.f32 %v1132, %v694
  %v1296 = vmul.f32 %v1136, %v694
  %v1297 = vmul.f32 %v1140, %v694
  %v1298 = vmul.f32 %v1144, %v694
  %v1299 = vmul.f32 %v1148, %v694
  %v1300 = vmul.f32 %v1152, %v694
  %v1301 = vmul.f32 %v1156, %v694
  %v1302 = vmul.f32 %v1160, %v694
  %v1303 = vmul.f32 %v1164, %v694
  %v1304 = vmul.f32 %v1168, %v694
  %v1305 = vmul.f32 %v1172, %v694
  %v1306 = vmul.f32 %v1176, %v694
  %v1307 = vmul.f32 %v1180, %v694
  %v1308 = vmul.f32 %v1184, %v694
  %v1309 = vmul.f32 %v1188, %v694
  %v1310 = vmul.f32 %v1192, %v694
  %v1311 = vmul.f32 %v1196, %v694
  %v1312 = vmul.f32 %v1200, %v694
  %v1313 = vmul.f32 %v1204, %v694
  %v1314 = vmul.f32 %v1208, %v694
  %v1315 = vmul.f32 %v1212, %v694
  %v1316 = vadd.f32 %v1054, %v1284
  %v1317 = vadd.f32 %v1055, %v1285
  %v1318 = vadd.f32 %v1056, %v1286
  %v1319 = vadd.f32 %v1057, %v1287
  %v1320 = vadd.f32 %v1058, %v1288
  %v1321 = vadd.f32 %v1059, %v1289
  %v1322 = vadd.f32 %v1060, %v1290
  %v1323 = vadd.f32 %v1061, %v1291
  %v1324 = vadd.f32 %v1062, %v1292
  %v1325 = vadd.f32 %v1063, %v1293
  %v1326 = vadd.f32 %v1064, %v1294
  %v1327 = vadd.f32 %v1065, %v1295
  %v1328 = vadd.f32 %v1066, %v1296
  %v1329 = vadd.f32 %v1067, %v1297
  %v1330 = vadd.f32 %v1068, %v1298
  %v1331 = vadd.f32 %v1069, %v1299
  %v1332 = vadd.f32 %v1070, %v1300
  %v1333 = vadd.f32 %v1071, %v1301
  %v1334 = vadd.f32 %v1072, %v1302
  %v1335 = vadd.f32 %v1073, %v1303
  %v1336 = vadd.f32 %v1074, %v1304
  %v1337 = vadd.f32 %v1075, %v1305
  %v1338 = vadd.f32 %v1076, %v1306
  %v1339 = vadd.f32 %v1077, %v1307
  %v1340 = vadd.f32 %v1078, %v1308
  %v1341 = vadd.f32 %v1079, %v1309
  %v1342 = vadd.f32 %v1080, %v1310
  %v1343 = vadd.f32 %v1081, %v1311
  %v1344 = vadd.f32 %v1082, %v1312
  %v1345 = vadd.f32 %v1083, %v1313
  %v1346 = vadd.f32 %v1084, %v1314
  %v1347 = vadd.f32 %v1085, %v1315
  %v1348 = vmul.f32 %v1088, %v298
  %v1349 = vmul.f32 %v1092, %v298
  %v1350 = vmul.f32 %v1096, %v298
  %v1351 = vmul.f32 %v1100, %v298
  %v1352 = vmul.f32 %v1104, %v298
  %v1353 = vmul.f32 %v1108, %v298
  %v1354 = vmul.f32 %v1112, %v298
  %v1355 = vmul.f32 %v1116, %v298
  %v1356 = vmul.f32 %v1120, %v298
  %v1357 = vmul.f32 %v1124, %v298
  %v1358 = vmul.f32 %v1128, %v298
  %v1359 = vmul.f32 %v1132, %v298
  %v1360 = vmul.f32 %v1136, %v298
  %v1361 = vmul.f32 %v1140, %v298
  %v1362 = vmul.f32 %v1144, %v298
  %v1363 = vmul.f32 %v1148, %v298
  %v1364 = vmul.f32 %v1152, %v298
  %v1365 = vmul.f32 %v1156, %v298
  %v1366 = vmul.f32 %v1160, %v298
  %v1367 = vmul.f32 %v1164, %v298
  %v1368 = vmul.f32 %v1168, %v298
  %v1369 = vmul.f32 %v1172, %v298
  %v1370 = vmul.f32 %v1176, %v298
  %v1371 = vmul.f32 %v1180, %v298
  %v1372 = vmul.f32 %v1184, %v298
  %v1373 = vmul.f32 %v1188, %v298
  %v1374 = vmul.f32 %v1192, %v298
  %v1375 = vmul.f32 %v1196, %v298
  %v1376 = vmul.f32 %v1200, %v298
  %v1377 = vmul.f32 %v1204, %v298
  %v1378 = vmul.f32 %v1208, %v298
  %v1379 = vmul.f32 %v1212, %v298
  %v1380 = vadd.f32 %v164, %v1348
  %v1381 = vadd.f32 %v164, %v1349
  %v1382 = vadd.f32 %v164, %v1350
  %v1383 = vadd.f32 %v164, %v1351
  %v1384 = vadd.f32 %v164, %v1352
  %v1385 = vadd.f32 %v164, %v1353
  %v1386 = vadd.f32 %v164, %v1354
  %v1387 = vadd.f32 %v164, %v1355
  %v1388 = vadd.f32 %v164, %v1356
  %v1389 = vadd.f32 %v164, %v1357
  %v1390 = vadd.f32 %v164, %v1358
  %v1391 = vadd.f32 %v164, %v1359
  %v1392 = vadd.f32 %v164, %v1360
  %v1393 = vadd.f32 %v164, %v1361
  %v1394 = vadd.f32 %v164, %v1362
  %v1395 = vadd.f32 %v164, %v1363
  %v1396 = vadd.f32 %v164, %v1364
  %v1397 = vadd.f32 %v164, %v1365
  %v1398 = vadd.f32 %v164, %v1366
  %v1399 = vadd.f32 %v164, %v1367
  %v1400 = vadd.f32 %v164, %v1368
  %v1401 = vadd.f32 %v164, %v1369
  %v1402 = vadd.f32 %v164, %v1370
  %v1403 = vadd.f32 %v164, %v1371
  %v1404 = vadd.f32 %v164, %v1372
  %v1405 = vadd.f32 %v164, %v1373
  %v1406 = vadd.f32 %v164, %v1374
  %v1407 = vadd.f32 %v164, %v1375
  %v1408 = vadd.f32 %v164, %v1376
  %v1409 = vadd.f32 %v164, %v1377
  %v1410 = vadd.f32 %v164, %v1378
  %v1411 = vadd.f32 %v164, %v1379
  %1412 = vset.pattern.permute.xlu0 5
  %1413 = vperm.xlu0 %1412, %v32
  %v1414 = vpop.permute.xlu0 %1413
  %1416 = vset.pattern.permute.xlu0 5
  %1417 = vperm.xlu0 %1416, %v33
  %v1418 = vpop.permute.xlu0 %1417
  %1420 = vset.pattern.permute.xlu0 5
  %1421 = vperm.xlu0 %1420, %v34
  %v1422 = vpop.permute.xlu0 %1421
  %1424 = vset.pattern.permute.xlu0 5
  %1425 = vperm.xlu0 %1424, %v35
  %v1426 = vpop.permute.xlu0 %1425
  %1428 = vset.pattern.permute.xlu0 5
  %1429 = vperm.xlu0 %1428, %v36
  %v1430 = vpop.permute.xlu0 %1429
  %1432 = vset.pattern.permute.xlu0 5
  %1433 = vperm.xlu0 %1432, %v37
  %v1434 = vpop.permute.xlu0 %1433
  %1436 = vset.pattern.permute.xlu0 5
  %1437 = vperm.xlu0 %1436, %v38
  %v1438 = vpop.permute.xlu0 %1437
  %1440 = vset.pattern.permute.xlu0 5
  %1441 = vperm.xlu0 %1440, %v39
  %v1442 = vpop.permute.xlu0 %1441
  %1444 = vset.pattern.permute.xlu0 5
  %1445 = vperm.xlu0 %1444, %v40
  %v1446 = vpop.permute.xlu0 %1445
  %1448 = vset.pattern.permute.xlu0 5
  %1449 = vperm.xlu0 %1448, %v41
  %v1450 = vpop.permute.xlu0 %1449
  %1452 = vset.pattern.permute.xlu0 5
  %1453 = vperm.xlu0 %1452, %v42
  %v1454 = vpop.permute.xlu0 %1453
  %1456 = vset.pattern.permute.xlu0 5
  %1457 = vperm.xlu0 %1456, %v43
  %v1458 = vpop.permute.xlu0 %1457
  %1460 = vset.pattern.permute.xlu0 5
  %1461 = vperm.xlu0 %1460, %v44
  %v1462 = vpop.permute.xlu0 %1461
  %1464 = vset.pattern.permute.xlu0 5
  %1465 = vperm.xlu0 %1464, %v45
  %v1466 = vpop.permute.xlu0 %1465
  %1468 = vset.pattern.permute.xlu0 5
  %1469 = vperm.xlu0 %1468, %v46
  %v1470 = vpop.permute.xlu0 %1469
  %1472 = vset.pattern.permute.xlu0 5
  %1473 = vperm.xlu0 %1472, %v47
  %v1474 = vpop.permute.xlu0 %1473
  %1476 = vset.pattern.permute.xlu0 5
  %1477 = vperm.xlu0 %1476, %v48
  %v1478 = vpop.permute.xlu0 %1477
  %1480 = vset.pattern.permute.xlu0 5
  %1481 = vperm.xlu0 %1480, %v49
  %v1482 = vpop.permute.xlu0 %1481
  %1484 = vset.pattern.permute.xlu0 5
  %1485 = vperm.xlu0 %1484, %v50
  %v1486 = vpop.permute.xlu0 %1485
  %1488 = vset.pattern.permute.xlu0 5
  %1489 = vperm.xlu0 %1488, %v51
  %v1490 = vpop.permute.xlu0 %1489
  %1492 = vset.pattern.permute.xlu0 5
  %1493 = vperm.xlu0 %1492, %v52
  %v1494 = vpop.permute.xlu0 %1493
  %1496 = vset.pattern.permute.xlu0 5
  %1497 = vperm.xlu0 %1496, %v53
  %v1498 = vpop.permute.xlu0 %1497
  %1500 = vset.pattern.permute.xlu0 5
  %1501 = vperm.xlu0 %1500, %v54
  %v1502 = vpop.permute.xlu0 %1501
  %1504 = vset.pattern.permute.xlu0 5
  %1505 = vperm.xlu0 %1504, %v55
  %v1506 = vpop.permute.xlu0 %1505
  %1508 = vset.pattern.permute.xlu0 5
  %1509 = vperm.xlu0 %1508, %v56
  %v1510 = vpop.permute.xlu0 %1509
  %1512 = vset.pattern.permute.xlu0 5
  %1513 = vperm.xlu0 %1512, %v57
  %v1514 = vpop.permute.xlu0 %1513
  %1516 = vset.pattern.permute.xlu0 5
  %1517 = vperm.xlu0 %1516, %v58
  %v1518 = vpop.permute.xlu0 %1517
  %1520 = vset.pattern.permute.xlu0 5
  %1521 = vperm.xlu0 %1520, %v59
  %v1522 = vpop.permute.xlu0 %1521
  %1524 = vset.pattern.permute.xlu0 5
  %1525 = vperm.xlu0 %1524, %v60
  %v1526 = vpop.permute.xlu0 %1525
  %1528 = vset.pattern.permute.xlu0 5
  %1529 = vperm.xlu0 %1528, %v61
  %v1530 = vpop.permute.xlu0 %1529
  %1532 = vset.pattern.permute.xlu0 5
  %1533 = vperm.xlu0 %1532, %v62
  %v1534 = vpop.permute.xlu0 %1533
  %1536 = vset.pattern.permute.xlu0 5
  %1537 = vperm.xlu0 %1536, %v63
  %v1538 = vpop.permute.xlu0 %1537
  %v1541 = vlaneseq
  %v1542 = vshrl.u32 %v1541, 7
  %v1543 = vsub.s32 0, %v1542
  %v1544 = vrot.slane %v158, %v1543
  %v1546 = vmul.f32 %v1414, %v1544
  %v1547 = vmul.f32 %v1418, %v1544
  %v1548 = vmul.f32 %v1422, %v1544
  %v1549 = vmul.f32 %v1426, %v1544
  %v1550 = vmul.f32 %v1430, %v1544
  %v1551 = vmul.f32 %v1434, %v1544
  %v1552 = vmul.f32 %v1438, %v1544
  %v1553 = vmul.f32 %v1442, %v1544
  %v1554 = vmul.f32 %v1446, %v1544
  %v1555 = vmul.f32 %v1450, %v1544
  %v1556 = vmul.f32 %v1454, %v1544
  %v1557 = vmul.f32 %v1458, %v1544
  %v1558 = vmul.f32 %v1462, %v1544
  %v1559 = vmul.f32 %v1466, %v1544
  %v1560 = vmul.f32 %v1470, %v1544
  %v1561 = vmul.f32 %v1474, %v1544
  %v1562 = vmul.f32 %v1478, %v1544
  %v1563 = vmul.f32 %v1482, %v1544
  %v1564 = vmul.f32 %v1486, %v1544
  %v1565 = vmul.f32 %v1490, %v1544
  %v1566 = vmul.f32 %v1494, %v1544
  %v1567 = vmul.f32 %v1498, %v1544
  %v1568 = vmul.f32 %v1502, %v1544
  %v1569 = vmul.f32 %v1506, %v1544
  %v1570 = vmul.f32 %v1510, %v1544
  %v1571 = vmul.f32 %v1514, %v1544
  %v1572 = vmul.f32 %v1518, %v1544
  %v1573 = vmul.f32 %v1522, %v1544
  %v1574 = vmul.f32 %v1526, %v1544
  %v1575 = vmul.f32 %v1530, %v1544
  %v1576 = vmul.f32 %v1534, %v1544
  %v1577 = vmul.f32 %v1538, %v1544
  %v1578 = vadd.f32 %v1252, %v1546
  %v1579 = vadd.f32 %v1253, %v1547
  %v1580 = vadd.f32 %v1254, %v1548
  %v1581 = vadd.f32 %v1255, %v1549
  %v1582 = vadd.f32 %v1256, %v1550
  %v1583 = vadd.f32 %v1257, %v1551
  %v1584 = vadd.f32 %v1258, %v1552
  %v1585 = vadd.f32 %v1259, %v1553
  %v1586 = vadd.f32 %v1260, %v1554
  %v1587 = vadd.f32 %v1261, %v1555
  %v1588 = vadd.f32 %v1262, %v1556
  %v1589 = vadd.f32 %v1263, %v1557
  %v1590 = vadd.f32 %v1264, %v1558
  %v1591 = vadd.f32 %v1265, %v1559
  %v1592 = vadd.f32 %v1266, %v1560
  %v1593 = vadd.f32 %v1267, %v1561
  %v1594 = vadd.f32 %v1268, %v1562
  %v1595 = vadd.f32 %v1269, %v1563
  %v1596 = vadd.f32 %v1270, %v1564
  %v1597 = vadd.f32 %v1271, %v1565
  %v1598 = vadd.f32 %v1272, %v1566
  %v1599 = vadd.f32 %v1273, %v1567
  %v1600 = vadd.f32 %v1274, %v1568
  %v1601 = vadd.f32 %v1275, %v1569
  %v1602 = vadd.f32 %v1276, %v1570
  %v1603 = vadd.f32 %v1277, %v1571
  %v1604 = vadd.f32 %v1278, %v1572
  %v1605 = vadd.f32 %v1279, %v1573
  %v1606 = vadd.f32 %v1280, %v1574
  %v1607 = vadd.f32 %v1281, %v1575
  %v1608 = vadd.f32 %v1282, %v1576
  %v1609 = vadd.f32 %v1283, %v1577
  %v1610 = vmul.f32 %v1414, %v956
  %v1611 = vmul.f32 %v1418, %v956
  %v1612 = vmul.f32 %v1422, %v956
  %v1613 = vmul.f32 %v1426, %v956
  %v1614 = vmul.f32 %v1430, %v956
  %v1615 = vmul.f32 %v1434, %v956
  %v1616 = vmul.f32 %v1438, %v956
  %v1617 = vmul.f32 %v1442, %v956
  %v1618 = vmul.f32 %v1446, %v956
  %v1619 = vmul.f32 %v1450, %v956
  %v1620 = vmul.f32 %v1454, %v956
  %v1621 = vmul.f32 %v1458, %v956
  %v1622 = vmul.f32 %v1462, %v956
  %v1623 = vmul.f32 %v1466, %v956
  %v1624 = vmul.f32 %v1470, %v956
  %v1625 = vmul.f32 %v1474, %v956
  %v1626 = vmul.f32 %v1478, %v956
  %v1627 = vmul.f32 %v1482, %v956
  %v1628 = vmul.f32 %v1486, %v956
  %v1629 = vmul.f32 %v1490, %v956
  %v1630 = vmul.f32 %v1494, %v956
  %v1631 = vmul.f32 %v1498, %v956
  %v1632 = vmul.f32 %v1502, %v956
  %v1633 = vmul.f32 %v1506, %v956
  %v1634 = vmul.f32 %v1510, %v956
  %v1635 = vmul.f32 %v1514, %v956
  %v1636 = vmul.f32 %v1518, %v956
  %v1637 = vmul.f32 %v1522, %v956
  %v1638 = vmul.f32 %v1526, %v956
  %v1639 = vmul.f32 %v1530, %v956
  %v1640 = vmul.f32 %v1534, %v956
  %v1641 = vmul.f32 %v1538, %v956
  %v1642 = vadd.f32 %v1316, %v1610
  %v1643 = vadd.f32 %v1317, %v1611
  %v1644 = vadd.f32 %v1318, %v1612
  %v1645 = vadd.f32 %v1319, %v1613
  %v1646 = vadd.f32 %v1320, %v1614
  %v1647 = vadd.f32 %v1321, %v1615
  %v1648 = vadd.f32 %v1322, %v1616
  %v1649 = vadd.f32 %v1323, %v1617
  %v1650 = vadd.f32 %v1324, %v1618
  %v1651 = vadd.f32 %v1325, %v1619
  %v1652 = vadd.f32 %v1326, %v1620
  %v1653 = vadd.f32 %v1327, %v1621
  %v1654 = vadd.f32 %v1328, %v1622
  %v1655 = vadd.f32 %v1329, %v1623
  %v1656 = vadd.f32 %v1330, %v1624
  %v1657 = vadd.f32 %v1331, %v1625
  %v1658 = vadd.f32 %v1332, %v1626
  %v1659 = vadd.f32 %v1333, %v1627
  %v1660 = vadd.f32 %v1334, %v1628
  %v1661 = vadd.f32 %v1335, %v1629
  %v1662 = vadd.f32 %v1336, %v1630
  %v1663 = vadd.f32 %v1337, %v1631
  %v1664 = vadd.f32 %v1338, %v1632
  %v1665 = vadd.f32 %v1339, %v1633
  %v1666 = vadd.f32 %v1340, %v1634
  %v1667 = vadd.f32 %v1341, %v1635
  %v1668 = vadd.f32 %v1342, %v1636
  %v1669 = vadd.f32 %v1343, %v1637
  %v1670 = vadd.f32 %v1344, %v1638
  %v1671 = vadd.f32 %v1345, %v1639
  %v1672 = vadd.f32 %v1346, %v1640
  %v1673 = vadd.f32 %v1347, %v1641
  %v1674 = vmul.f32 %v1414, %v496
  %v1675 = vmul.f32 %v1418, %v496
  %v1676 = vmul.f32 %v1422, %v496
  %v1677 = vmul.f32 %v1426, %v496
  %v1678 = vmul.f32 %v1430, %v496
  %v1679 = vmul.f32 %v1434, %v496
  %v1680 = vmul.f32 %v1438, %v496
  %v1681 = vmul.f32 %v1442, %v496
  %v1682 = vmul.f32 %v1446, %v496
  %v1683 = vmul.f32 %v1450, %v496
  %v1684 = vmul.f32 %v1454, %v496
  %v1685 = vmul.f32 %v1458, %v496
  %v1686 = vmul.f32 %v1462, %v496
  %v1687 = vmul.f32 %v1466, %v496
  %v1688 = vmul.f32 %v1470, %v496
  %v1689 = vmul.f32 %v1474, %v496
  %v1690 = vmul.f32 %v1478, %v496
  %v1691 = vmul.f32 %v1482, %v496
  %v1692 = vmul.f32 %v1486, %v496
  %v1693 = vmul.f32 %v1490, %v496
  %v1694 = vmul.f32 %v1494, %v496
  %v1695 = vmul.f32 %v1498, %v496
  %v1696 = vmul.f32 %v1502, %v496
  %v1697 = vmul.f32 %v1506, %v496
  %v1698 = vmul.f32 %v1510, %v496
  %v1699 = vmul.f32 %v1514, %v496
  %v1700 = vmul.f32 %v1518, %v496
  %v1701 = vmul.f32 %v1522, %v496
  %v1702 = vmul.f32 %v1526, %v496
  %v1703 = vmul.f32 %v1530, %v496
  %v1704 = vmul.f32 %v1534, %v496
  %v1705 = vmul.f32 %v1538, %v496
  %v1706 = vadd.f32 %v1380, %v1674
  %v1707 = vadd.f32 %v1381, %v1675
  %v1708 = vadd.f32 %v1382, %v1676
  %v1709 = vadd.f32 %v1383, %v1677
  %v1710 = vadd.f32 %v1384, %v1678
  %v1711 = vadd.f32 %v1385, %v1679
  %v1712 = vadd.f32 %v1386, %v1680
  %v1713 = vadd.f32 %v1387, %v1681
  %v1714 = vadd.f32 %v1388, %v1682
  %v1715 = vadd.f32 %v1389, %v1683
  %v1716 = vadd.f32 %v1390, %v1684
  %v1717 = vadd.f32 %v1391, %v1685
  %v1718 = vadd.f32 %v1392, %v1686
  %v1719 = vadd.f32 %v1393, %v1687
  %v1720 = vadd.f32 %v1394, %v1688
  %v1721 = vadd.f32 %v1395, %v1689
  %v1722 = vadd.f32 %v1396, %v1690
  %v1723 = vadd.f32 %v1397, %v1691
  %v1724 = vadd.f32 %v1398, %v1692
  %v1725 = vadd.f32 %v1399, %v1693
  %v1726 = vadd.f32 %v1400, %v1694
  %v1727 = vadd.f32 %v1401, %v1695
  %v1728 = vadd.f32 %v1402, %v1696
  %v1729 = vadd.f32 %v1403, %v1697
  %v1730 = vadd.f32 %v1404, %v1698
  %v1731 = vadd.f32 %v1405, %v1699
  %v1732 = vadd.f32 %v1406, %v1700
  %v1733 = vadd.f32 %v1407, %v1701
  %v1734 = vadd.f32 %v1408, %v1702
  %v1735 = vadd.f32 %v1409, %v1703
  %v1736 = vadd.f32 %v1410, %v1704
  %v1737 = vadd.f32 %v1411, %v1705
  %1738 = vset.pattern.permute.xlu0 6
  %1739 = vperm.xlu0 %1738, %v32
  %v1740 = vpop.permute.xlu0 %1739
  %1742 = vset.pattern.permute.xlu0 6
  %1743 = vperm.xlu0 %1742, %v33
  %v1744 = vpop.permute.xlu0 %1743
  %1746 = vset.pattern.permute.xlu0 6
  %1747 = vperm.xlu0 %1746, %v34
  %v1748 = vpop.permute.xlu0 %1747
  %1750 = vset.pattern.permute.xlu0 6
  %1751 = vperm.xlu0 %1750, %v35
  %v1752 = vpop.permute.xlu0 %1751
  %1754 = vset.pattern.permute.xlu0 6
  %1755 = vperm.xlu0 %1754, %v36
  %v1756 = vpop.permute.xlu0 %1755
  %1758 = vset.pattern.permute.xlu0 6
  %1759 = vperm.xlu0 %1758, %v37
  %v1760 = vpop.permute.xlu0 %1759
  %1762 = vset.pattern.permute.xlu0 6
  %1763 = vperm.xlu0 %1762, %v38
  %v1764 = vpop.permute.xlu0 %1763
  %1766 = vset.pattern.permute.xlu0 6
  %1767 = vperm.xlu0 %1766, %v39
  %v1768 = vpop.permute.xlu0 %1767
  %1770 = vset.pattern.permute.xlu0 6
  %1771 = vperm.xlu0 %1770, %v40
  %v1772 = vpop.permute.xlu0 %1771
  %1774 = vset.pattern.permute.xlu0 6
  %1775 = vperm.xlu0 %1774, %v41
  %v1776 = vpop.permute.xlu0 %1775
  %1778 = vset.pattern.permute.xlu0 6
  %1779 = vperm.xlu0 %1778, %v42
  %v1780 = vpop.permute.xlu0 %1779
  %1782 = vset.pattern.permute.xlu0 6
  %1783 = vperm.xlu0 %1782, %v43
  %v1784 = vpop.permute.xlu0 %1783
  %1786 = vset.pattern.permute.xlu0 6
  %1787 = vperm.xlu0 %1786, %v44
  %v1788 = vpop.permute.xlu0 %1787
  %1790 = vset.pattern.permute.xlu0 6
  %1791 = vperm.xlu0 %1790, %v45
  %v1792 = vpop.permute.xlu0 %1791
  %1794 = vset.pattern.permute.xlu0 6
  %1795 = vperm.xlu0 %1794, %v46
  %v1796 = vpop.permute.xlu0 %1795
  %1798 = vset.pattern.permute.xlu0 6
  %1799 = vperm.xlu0 %1798, %v47
  %v1800 = vpop.permute.xlu0 %1799
  %1802 = vset.pattern.permute.xlu0 6
  %1803 = vperm.xlu0 %1802, %v48
  %v1804 = vpop.permute.xlu0 %1803
  %1806 = vset.pattern.permute.xlu0 6
  %1807 = vperm.xlu0 %1806, %v49
  %v1808 = vpop.permute.xlu0 %1807
  %1810 = vset.pattern.permute.xlu0 6
  %1811 = vperm.xlu0 %1810, %v50
  %v1812 = vpop.permute.xlu0 %1811
  %1814 = vset.pattern.permute.xlu0 6
  %1815 = vperm.xlu0 %1814, %v51
  %v1816 = vpop.permute.xlu0 %1815
  %1818 = vset.pattern.permute.xlu0 6
  %1819 = vperm.xlu0 %1818, %v52
  %v1820 = vpop.permute.xlu0 %1819
  %1822 = vset.pattern.permute.xlu0 6
  %1823 = vperm.xlu0 %1822, %v53
  %v1824 = vpop.permute.xlu0 %1823
  %1826 = vset.pattern.permute.xlu0 6
  %1827 = vperm.xlu0 %1826, %v54
  %v1828 = vpop.permute.xlu0 %1827
  %1830 = vset.pattern.permute.xlu0 6
  %1831 = vperm.xlu0 %1830, %v55
  %v1832 = vpop.permute.xlu0 %1831
  %1834 = vset.pattern.permute.xlu0 6
  %1835 = vperm.xlu0 %1834, %v56
  %v1836 = vpop.permute.xlu0 %1835
  %1838 = vset.pattern.permute.xlu0 6
  %1839 = vperm.xlu0 %1838, %v57
  %v1840 = vpop.permute.xlu0 %1839
  %1842 = vset.pattern.permute.xlu0 6
  %1843 = vperm.xlu0 %1842, %v58
  %v1844 = vpop.permute.xlu0 %1843
  %1846 = vset.pattern.permute.xlu0 6
  %1847 = vperm.xlu0 %1846, %v59
  %v1848 = vpop.permute.xlu0 %1847
  %1850 = vset.pattern.permute.xlu0 6
  %1851 = vperm.xlu0 %1850, %v60
  %v1852 = vpop.permute.xlu0 %1851
  %1854 = vset.pattern.permute.xlu0 6
  %1855 = vperm.xlu0 %1854, %v61
  %v1856 = vpop.permute.xlu0 %1855
  %1858 = vset.pattern.permute.xlu0 6
  %1859 = vperm.xlu0 %1858, %v62
  %v1860 = vpop.permute.xlu0 %1859
  %1862 = vset.pattern.permute.xlu0 6
  %1863 = vperm.xlu0 %1862, %v63
  %v1864 = vpop.permute.xlu0 %1863
  %v1866 = vmul.f32 %v1740, %v1218
  %v1867 = vmul.f32 %v1744, %v1218
  %v1868 = vmul.f32 %v1748, %v1218
  %v1869 = vmul.f32 %v1752, %v1218
  %v1870 = vmul.f32 %v1756, %v1218
  %v1871 = vmul.f32 %v1760, %v1218
  %v1872 = vmul.f32 %v1764, %v1218
  %v1873 = vmul.f32 %v1768, %v1218
  %v1874 = vmul.f32 %v1772, %v1218
  %v1875 = vmul.f32 %v1776, %v1218
  %v1876 = vmul.f32 %v1780, %v1218
  %v1877 = vmul.f32 %v1784, %v1218
  %v1878 = vmul.f32 %v1788, %v1218
  %v1879 = vmul.f32 %v1792, %v1218
  %v1880 = vmul.f32 %v1796, %v1218
  %v1881 = vmul.f32 %v1800, %v1218
  %v1882 = vmul.f32 %v1804, %v1218
  %v1883 = vmul.f32 %v1808, %v1218
  %v1884 = vmul.f32 %v1812, %v1218
  %v1885 = vmul.f32 %v1816, %v1218
  %v1886 = vmul.f32 %v1820, %v1218
  %v1887 = vmul.f32 %v1824, %v1218
  %v1888 = vmul.f32 %v1828, %v1218
  %v1889 = vmul.f32 %v1832, %v1218
  %v1890 = vmul.f32 %v1836, %v1218
  %v1891 = vmul.f32 %v1840, %v1218
  %v1892 = vmul.f32 %v1844, %v1218
  %v1893 = vmul.f32 %v1848, %v1218
  %v1894 = vmul.f32 %v1852, %v1218
  %v1895 = vmul.f32 %v1856, %v1218
  %v1896 = vmul.f32 %v1860, %v1218
  %v1897 = vmul.f32 %v1864, %v1218
  %v1898 = vadd.f32 %v1642, %v1866
  %v1899 = vadd.f32 %v1643, %v1867
  %v1900 = vadd.f32 %v1644, %v1868
  %v1901 = vadd.f32 %v1645, %v1869
  %v1902 = vadd.f32 %v1646, %v1870
  %v1903 = vadd.f32 %v1647, %v1871
  %v1904 = vadd.f32 %v1648, %v1872
  %v1905 = vadd.f32 %v1649, %v1873
  %v1906 = vadd.f32 %v1650, %v1874
  %v1907 = vadd.f32 %v1651, %v1875
  %v1908 = vadd.f32 %v1652, %v1876
  %v1909 = vadd.f32 %v1653, %v1877
  %v1910 = vadd.f32 %v1654, %v1878
  %v1911 = vadd.f32 %v1655, %v1879
  %v1912 = vadd.f32 %v1656, %v1880
  %v1913 = vadd.f32 %v1657, %v1881
  %v1914 = vadd.f32 %v1658, %v1882
  %v1915 = vadd.f32 %v1659, %v1883
  %v1916 = vadd.f32 %v1660, %v1884
  %v1917 = vadd.f32 %v1661, %v1885
  %v1918 = vadd.f32 %v1662, %v1886
  %v1919 = vadd.f32 %v1663, %v1887
  %v1920 = vadd.f32 %v1664, %v1888
  %v1921 = vadd.f32 %v1665, %v1889
  %v1922 = vadd.f32 %v1666, %v1890
  %v1923 = vadd.f32 %v1667, %v1891
  %v1924 = vadd.f32 %v1668, %v1892
  %v1925 = vadd.f32 %v1669, %v1893
  %v1926 = vadd.f32 %v1670, %v1894
  %v1927 = vadd.f32 %v1671, %v1895
  %v1928 = vadd.f32 %v1672, %v1896
  %v1929 = vadd.f32 %v1673, %v1897
  %v1930 = vmul.f32 %v1740, %v694
  %v1931 = vmul.f32 %v1744, %v694
  %v1932 = vmul.f32 %v1748, %v694
  %v1933 = vmul.f32 %v1752, %v694
  %v1934 = vmul.f32 %v1756, %v694
  %v1935 = vmul.f32 %v1760, %v694
  %v1936 = vmul.f32 %v1764, %v694
  %v1937 = vmul.f32 %v1768, %v694
  %v1938 = vmul.f32 %v1772, %v694
  %v1939 = vmul.f32 %v1776, %v694
  %v1940 = vmul.f32 %v1780, %v694
  %v1941 = vmul.f32 %v1784, %v694
  %v1942 = vmul.f32 %v1788, %v694
  %v1943 = vmul.f32 %v1792, %v694
  %v1944 = vmul.f32 %v1796, %v694
  %v1945 = vmul.f32 %v1800, %v694
  %v1946 = vmul.f32 %v1804, %v694
  %v1947 = vmul.f32 %v1808, %v694
  %v1948 = vmul.f32 %v1812, %v694
  %v1949 = vmul.f32 %v1816, %v694
  %v1950 = vmul.f32 %v1820, %v694
  %v1951 = vmul.f32 %v1824, %v694
  %v1952 = vmul.f32 %v1828, %v694
  %v1953 = vmul.f32 %v1832, %v694
  %v1954 = vmul.f32 %v1836, %v694
  %v1955 = vmul.f32 %v1840, %v694
  %v1956 = vmul.f32 %v1844, %v694
  %v1957 = vmul.f32 %v1848, %v694
  %v1958 = vmul.f32 %v1852, %v694
  %v1959 = vmul.f32 %v1856, %v694
  %v1960 = vmul.f32 %v1860, %v694
  %v1961 = vmul.f32 %v1864, %v694
  %v1962 = vadd.f32 %v1706, %v1930
  %v1963 = vadd.f32 %v1707, %v1931
  %v1964 = vadd.f32 %v1708, %v1932
  %v1965 = vadd.f32 %v1709, %v1933
  %v1966 = vadd.f32 %v1710, %v1934
  %v1967 = vadd.f32 %v1711, %v1935
  %v1968 = vadd.f32 %v1712, %v1936
  %v1969 = vadd.f32 %v1713, %v1937
  %v1970 = vadd.f32 %v1714, %v1938
  %v1971 = vadd.f32 %v1715, %v1939
  %v1972 = vadd.f32 %v1716, %v1940
  %v1973 = vadd.f32 %v1717, %v1941
  %v1974 = vadd.f32 %v1718, %v1942
  %v1975 = vadd.f32 %v1719, %v1943
  %v1976 = vadd.f32 %v1720, %v1944
  %v1977 = vadd.f32 %v1721, %v1945
  %v1978 = vadd.f32 %v1722, %v1946
  %v1979 = vadd.f32 %v1723, %v1947
  %v1980 = vadd.f32 %v1724, %v1948
  %v1981 = vadd.f32 %v1725, %v1949
  %v1982 = vadd.f32 %v1726, %v1950
  %v1983 = vadd.f32 %v1727, %v1951
  %v1984 = vadd.f32 %v1728, %v1952
  %v1985 = vadd.f32 %v1729, %v1953
  %v1986 = vadd.f32 %v1730, %v1954
  %v1987 = vadd.f32 %v1731, %v1955
  %v1988 = vadd.f32 %v1732, %v1956
  %v1989 = vadd.f32 %v1733, %v1957
  %v1990 = vadd.f32 %v1734, %v1958
  %v1991 = vadd.f32 %v1735, %v1959
  %v1992 = vadd.f32 %v1736, %v1960
  %v1993 = vadd.f32 %v1737, %v1961
  %v1994 = vmul.f32 %v1740, %v298
  %v1995 = vmul.f32 %v1744, %v298
  %v1996 = vmul.f32 %v1748, %v298
  %v1997 = vmul.f32 %v1752, %v298
  %v1998 = vmul.f32 %v1756, %v298
  %v1999 = vmul.f32 %v1760, %v298
  %v2000 = vmul.f32 %v1764, %v298
  %v2001 = vmul.f32 %v1768, %v298
  %v2002 = vmul.f32 %v1772, %v298
  %v2003 = vmul.f32 %v1776, %v298
  %v2004 = vmul.f32 %v1780, %v298
  %v2005 = vmul.f32 %v1784, %v298
  %v2006 = vmul.f32 %v1788, %v298
  %v2007 = vmul.f32 %v1792, %v298
  %v2008 = vmul.f32 %v1796, %v298
  %v2009 = vmul.f32 %v1800, %v298
  %v2010 = vmul.f32 %v1804, %v298
  %v2011 = vmul.f32 %v1808, %v298
  %v2012 = vmul.f32 %v1812, %v298
  %v2013 = vmul.f32 %v1816, %v298
  %v2014 = vmul.f32 %v1820, %v298
  %v2015 = vmul.f32 %v1824, %v298
  %v2016 = vmul.f32 %v1828, %v298
  %v2017 = vmul.f32 %v1832, %v298
  %v2018 = vmul.f32 %v1836, %v298
  %v2019 = vmul.f32 %v1840, %v298
  %v2020 = vmul.f32 %v1844, %v298
  %v2021 = vmul.f32 %v1848, %v298
  %v2022 = vmul.f32 %v1852, %v298
  %v2023 = vmul.f32 %v1856, %v298
  %v2024 = vmul.f32 %v1860, %v298
  %v2025 = vmul.f32 %v1864, %v298
  %v2026 = vadd.f32 %v164, %v1994
  %v2027 = vadd.f32 %v164, %v1995
  %v2028 = vadd.f32 %v164, %v1996
  %v2029 = vadd.f32 %v164, %v1997
  %v2030 = vadd.f32 %v164, %v1998
  %v2031 = vadd.f32 %v164, %v1999
  %v2032 = vadd.f32 %v164, %v2000
  %v2033 = vadd.f32 %v164, %v2001
  %v2034 = vadd.f32 %v164, %v2002
  %v2035 = vadd.f32 %v164, %v2003
  %v2036 = vadd.f32 %v164, %v2004
  %v2037 = vadd.f32 %v164, %v2005
  %v2038 = vadd.f32 %v164, %v2006
  %v2039 = vadd.f32 %v164, %v2007
  %v2040 = vadd.f32 %v164, %v2008
  %v2041 = vadd.f32 %v164, %v2009
  %v2042 = vadd.f32 %v164, %v2010
  %v2043 = vadd.f32 %v164, %v2011
  %v2044 = vadd.f32 %v164, %v2012
  %v2045 = vadd.f32 %v164, %v2013
  %v2046 = vadd.f32 %v164, %v2014
  %v2047 = vadd.f32 %v164, %v2015
  %v2048 = vadd.f32 %v164, %v2016
  %v2049 = vadd.f32 %v164, %v2017
  %v2050 = vadd.f32 %v164, %v2018
  %v2051 = vadd.f32 %v164, %v2019
  %v2052 = vadd.f32 %v164, %v2020
  %v2053 = vadd.f32 %v164, %v2021
  %v2054 = vadd.f32 %v164, %v2022
  %v2055 = vadd.f32 %v164, %v2023
  %v2056 = vadd.f32 %v164, %v2024
  %v2057 = vadd.f32 %v164, %v2025
  %2058 = vset.pattern.permute.xlu0 7
  %2059 = vperm.xlu0 %2058, %v32
  %v2060 = vpop.permute.xlu0 %2059
  %2062 = vset.pattern.permute.xlu0 7
  %2063 = vperm.xlu0 %2062, %v33
  %v2064 = vpop.permute.xlu0 %2063
  %2066 = vset.pattern.permute.xlu0 7
  %2067 = vperm.xlu0 %2066, %v34
  %v2068 = vpop.permute.xlu0 %2067
  %2070 = vset.pattern.permute.xlu0 7
  %2071 = vperm.xlu0 %2070, %v35
  %v2072 = vpop.permute.xlu0 %2071
  %2074 = vset.pattern.permute.xlu0 7
  %2075 = vperm.xlu0 %2074, %v36
  %v2076 = vpop.permute.xlu0 %2075
  %2078 = vset.pattern.permute.xlu0 7
  %2079 = vperm.xlu0 %2078, %v37
  %v2080 = vpop.permute.xlu0 %2079
  %2082 = vset.pattern.permute.xlu0 7
  %2083 = vperm.xlu0 %2082, %v38
  %v2084 = vpop.permute.xlu0 %2083
  %2086 = vset.pattern.permute.xlu0 7
  %2087 = vperm.xlu0 %2086, %v39
  %v2088 = vpop.permute.xlu0 %2087
  %2090 = vset.pattern.permute.xlu0 7
  %2091 = vperm.xlu0 %2090, %v40
  %v2092 = vpop.permute.xlu0 %2091
  %2094 = vset.pattern.permute.xlu0 7
  %2095 = vperm.xlu0 %2094, %v41
  %v2096 = vpop.permute.xlu0 %2095
  %2098 = vset.pattern.permute.xlu0 7
  %2099 = vperm.xlu0 %2098, %v42
  %v2100 = vpop.permute.xlu0 %2099
  %2102 = vset.pattern.permute.xlu0 7
  %2103 = vperm.xlu0 %2102, %v43
  %v2104 = vpop.permute.xlu0 %2103
  %2106 = vset.pattern.permute.xlu0 7
  %2107 = vperm.xlu0 %2106, %v44
  %v2108 = vpop.permute.xlu0 %2107
  %2110 = vset.pattern.permute.xlu0 7
  %2111 = vperm.xlu0 %2110, %v45
  %v2112 = vpop.permute.xlu0 %2111
  %2114 = vset.pattern.permute.xlu0 7
  %2115 = vperm.xlu0 %2114, %v46
  %v2116 = vpop.permute.xlu0 %2115
  %2118 = vset.pattern.permute.xlu0 7
  %2119 = vperm.xlu0 %2118, %v47
  %v2120 = vpop.permute.xlu0 %2119
  %2122 = vset.pattern.permute.xlu0 7
  %2123 = vperm.xlu0 %2122, %v48
  %v2124 = vpop.permute.xlu0 %2123
  %2126 = vset.pattern.permute.xlu0 7
  %2127 = vperm.xlu0 %2126, %v49
  %v2128 = vpop.permute.xlu0 %2127
  %2130 = vset.pattern.permute.xlu0 7
  %2131 = vperm.xlu0 %2130, %v50
  %v2132 = vpop.permute.xlu0 %2131
  %2134 = vset.pattern.permute.xlu0 7
  %2135 = vperm.xlu0 %2134, %v51
  %v2136 = vpop.permute.xlu0 %2135
  %2138 = vset.pattern.permute.xlu0 7
  %2139 = vperm.xlu0 %2138, %v52
  %v2140 = vpop.permute.xlu0 %2139
  %2142 = vset.pattern.permute.xlu0 7
  %2143 = vperm.xlu0 %2142, %v53
  %v2144 = vpop.permute.xlu0 %2143
  %2146 = vset.pattern.permute.xlu0 7
  %2147 = vperm.xlu0 %2146, %v54
  %v2148 = vpop.permute.xlu0 %2147
  %2150 = vset.pattern.permute.xlu0 7
  %2151 = vperm.xlu0 %2150, %v55
  %v2152 = vpop.permute.xlu0 %2151
  %2154 = vset.pattern.permute.xlu0 7
  %2155 = vperm.xlu0 %2154, %v56
  %v2156 = vpop.permute.xlu0 %2155
  %2158 = vset.pattern.permute.xlu0 7
  %2159 = vperm.xlu0 %2158, %v57
  %v2160 = vpop.permute.xlu0 %2159
  %2162 = vset.pattern.permute.xlu0 7
  %2163 = vperm.xlu0 %2162, %v58
  %v2164 = vpop.permute.xlu0 %2163
  %2166 = vset.pattern.permute.xlu0 7
  %2167 = vperm.xlu0 %2166, %v59
  %v2168 = vpop.permute.xlu0 %2167
  %2170 = vset.pattern.permute.xlu0 7
  %2171 = vperm.xlu0 %2170, %v60
  %v2172 = vpop.permute.xlu0 %2171
  %2174 = vset.pattern.permute.xlu0 7
  %2175 = vperm.xlu0 %2174, %v61
  %v2176 = vpop.permute.xlu0 %2175
  %2178 = vset.pattern.permute.xlu0 7
  %2179 = vperm.xlu0 %2178, %v62
  %v2180 = vpop.permute.xlu0 %2179
  %2182 = vset.pattern.permute.xlu0 7
  %2183 = vperm.xlu0 %2182, %v63
  %v2184 = vpop.permute.xlu0 %2183
  %v2186 = vmul.f32 %v2060, %v1544
  %v2187 = vmul.f32 %v2064, %v1544
  %v2188 = vmul.f32 %v2068, %v1544
  %v2189 = vmul.f32 %v2072, %v1544
  %v2190 = vmul.f32 %v2076, %v1544
  %v2191 = vmul.f32 %v2080, %v1544
  %v2192 = vmul.f32 %v2084, %v1544
  %v2193 = vmul.f32 %v2088, %v1544
  %v2194 = vmul.f32 %v2092, %v1544
  %v2195 = vmul.f32 %v2096, %v1544
  %v2196 = vmul.f32 %v2100, %v1544
  %v2197 = vmul.f32 %v2104, %v1544
  %v2198 = vmul.f32 %v2108, %v1544
  %v2199 = vmul.f32 %v2112, %v1544
  %v2200 = vmul.f32 %v2116, %v1544
  %v2201 = vmul.f32 %v2120, %v1544
  %v2202 = vmul.f32 %v2124, %v1544
  %v2203 = vmul.f32 %v2128, %v1544
  %v2204 = vmul.f32 %v2132, %v1544
  %v2205 = vmul.f32 %v2136, %v1544
  %v2206 = vmul.f32 %v2140, %v1544
  %v2207 = vmul.f32 %v2144, %v1544
  %v2208 = vmul.f32 %v2148, %v1544
  %v2209 = vmul.f32 %v2152, %v1544
  %v2210 = vmul.f32 %v2156, %v1544
  %v2211 = vmul.f32 %v2160, %v1544
  %v2212 = vmul.f32 %v2164, %v1544
  %v2213 = vmul.f32 %v2168, %v1544
  %v2214 = vmul.f32 %v2172, %v1544
  %v2215 = vmul.f32 %v2176, %v1544
  %v2216 = vmul.f32 %v2180, %v1544
  %v2217 = vmul.f32 %v2184, %v1544
  %v2218 = vadd.f32 %v1898, %v2186
  %v2219 = vadd.f32 %v1899, %v2187
  %v2220 = vadd.f32 %v1900, %v2188
  %v2221 = vadd.f32 %v1901, %v2189
  %v2222 = vadd.f32 %v1902, %v2190
  %v2223 = vadd.f32 %v1903, %v2191
  %v2224 = vadd.f32 %v1904, %v2192
  %v2225 = vadd.f32 %v1905, %v2193
  %v2226 = vadd.f32 %v1906, %v2194
  %v2227 = vadd.f32 %v1907, %v2195
  %v2228 = vadd.f32 %v1908, %v2196
  %v2229 = vadd.f32 %v1909, %v2197
  %v2230 = vadd.f32 %v1910, %v2198
  %v2231 = vadd.f32 %v1911, %v2199
  %v2232 = vadd.f32 %v1912, %v2200
  %v2233 = vadd.f32 %v1913, %v2201
  %v2234 = vadd.f32 %v1914, %v2202
  %v2235 = vadd.f32 %v1915, %v2203
  %v2236 = vadd.f32 %v1916, %v2204
  %v2237 = vadd.f32 %v1917, %v2205
  %v2238 = vadd.f32 %v1918, %v2206
  %v2239 = vadd.f32 %v1919, %v2207
  %v2240 = vadd.f32 %v1920, %v2208
  %v2241 = vadd.f32 %v1921, %v2209
  %v2242 = vadd.f32 %v1922, %v2210
  %v2243 = vadd.f32 %v1923, %v2211
  %v2244 = vadd.f32 %v1924, %v2212
  %v2245 = vadd.f32 %v1925, %v2213
  %v2246 = vadd.f32 %v1926, %v2214
  %v2247 = vadd.f32 %v1927, %v2215
  %v2248 = vadd.f32 %v1928, %v2216
  %v2249 = vadd.f32 %v1929, %v2217
  %v2250 = vmul.f32 %v2060, %v956
  %v2251 = vmul.f32 %v2064, %v956
  %v2252 = vmul.f32 %v2068, %v956
  %v2253 = vmul.f32 %v2072, %v956
  %v2254 = vmul.f32 %v2076, %v956
  %v2255 = vmul.f32 %v2080, %v956
  %v2256 = vmul.f32 %v2084, %v956
  %v2257 = vmul.f32 %v2088, %v956
  %v2258 = vmul.f32 %v2092, %v956
  %v2259 = vmul.f32 %v2096, %v956
  %v2260 = vmul.f32 %v2100, %v956
  %v2261 = vmul.f32 %v2104, %v956
  %v2262 = vmul.f32 %v2108, %v956
  %v2263 = vmul.f32 %v2112, %v956
  %v2264 = vmul.f32 %v2116, %v956
  %v2265 = vmul.f32 %v2120, %v956
  %v2266 = vmul.f32 %v2124, %v956
  %v2267 = vmul.f32 %v2128, %v956
  %v2268 = vmul.f32 %v2132, %v956
  %v2269 = vmul.f32 %v2136, %v956
  %v2270 = vmul.f32 %v2140, %v956
  %v2271 = vmul.f32 %v2144, %v956
  %v2272 = vmul.f32 %v2148, %v956
  %v2273 = vmul.f32 %v2152, %v956
  %v2274 = vmul.f32 %v2156, %v956
  %v2275 = vmul.f32 %v2160, %v956
  %v2276 = vmul.f32 %v2164, %v956
  %v2277 = vmul.f32 %v2168, %v956
  %v2278 = vmul.f32 %v2172, %v956
  %v2279 = vmul.f32 %v2176, %v956
  %v2280 = vmul.f32 %v2180, %v956
  %v2281 = vmul.f32 %v2184, %v956
  %v2282 = vadd.f32 %v1962, %v2250
  %v2283 = vadd.f32 %v1963, %v2251
  %v2284 = vadd.f32 %v1964, %v2252
  %v2285 = vadd.f32 %v1965, %v2253
  %v2286 = vadd.f32 %v1966, %v2254
  %v2287 = vadd.f32 %v1967, %v2255
  %v2288 = vadd.f32 %v1968, %v2256
  %v2289 = vadd.f32 %v1969, %v2257
  %v2290 = vadd.f32 %v1970, %v2258
  %v2291 = vadd.f32 %v1971, %v2259
  %v2292 = vadd.f32 %v1972, %v2260
  %v2293 = vadd.f32 %v1973, %v2261
  %v2294 = vadd.f32 %v1974, %v2262
  %v2295 = vadd.f32 %v1975, %v2263
  %v2296 = vadd.f32 %v1976, %v2264
  %v2297 = vadd.f32 %v1977, %v2265
  %v2298 = vadd.f32 %v1978, %v2266
  %v2299 = vadd.f32 %v1979, %v2267
  %v2300 = vadd.f32 %v1980, %v2268
  %v2301 = vadd.f32 %v1981, %v2269
  %v2302 = vadd.f32 %v1982, %v2270
  %v2303 = vadd.f32 %v1983, %v2271
  %v2304 = vadd.f32 %v1984, %v2272
  %v2305 = vadd.f32 %v1985, %v2273
  %v2306 = vadd.f32 %v1986, %v2274
  %v2307 = vadd.f32 %v1987, %v2275
  %v2308 = vadd.f32 %v1988, %v2276
  %v2309 = vadd.f32 %v1989, %v2277
  %v2310 = vadd.f32 %v1990, %v2278
  %v2311 = vadd.f32 %v1991, %v2279
  %v2312 = vadd.f32 %v1992, %v2280
  %v2313 = vadd.f32 %v1993, %v2281
  %v2314 = vmul.f32 %v2060, %v496
  %v2315 = vmul.f32 %v2064, %v496
  %v2316 = vmul.f32 %v2068, %v496
  %v2317 = vmul.f32 %v2072, %v496
  %v2318 = vmul.f32 %v2076, %v496
  %v2319 = vmul.f32 %v2080, %v496
  %v2320 = vmul.f32 %v2084, %v496
  %v2321 = vmul.f32 %v2088, %v496
  %v2322 = vmul.f32 %v2092, %v496
  %v2323 = vmul.f32 %v2096, %v496
  %v2324 = vmul.f32 %v2100, %v496
  %v2325 = vmul.f32 %v2104, %v496
  %v2326 = vmul.f32 %v2108, %v496
  %v2327 = vmul.f32 %v2112, %v496
  %v2328 = vmul.f32 %v2116, %v496
  %v2329 = vmul.f32 %v2120, %v496
  %v2330 = vmul.f32 %v2124, %v496
  %v2331 = vmul.f32 %v2128, %v496
  %v2332 = vmul.f32 %v2132, %v496
  %v2333 = vmul.f32 %v2136, %v496
  %v2334 = vmul.f32 %v2140, %v496
  %v2335 = vmul.f32 %v2144, %v496
  %v2336 = vmul.f32 %v2148, %v496
  %v2337 = vmul.f32 %v2152, %v496
  %v2338 = vmul.f32 %v2156, %v496
  %v2339 = vmul.f32 %v2160, %v496
  %v2340 = vmul.f32 %v2164, %v496
  %v2341 = vmul.f32 %v2168, %v496
  %v2342 = vmul.f32 %v2172, %v496
  %v2343 = vmul.f32 %v2176, %v496
  %v2344 = vmul.f32 %v2180, %v496
  %v2345 = vmul.f32 %v2184, %v496
  %v2346 = vadd.f32 %v2026, %v2314
  %v2347 = vadd.f32 %v2027, %v2315
  %v2348 = vadd.f32 %v2028, %v2316
  %v2349 = vadd.f32 %v2029, %v2317
  %v2350 = vadd.f32 %v2030, %v2318
  %v2351 = vadd.f32 %v2031, %v2319
  %v2352 = vadd.f32 %v2032, %v2320
  %v2353 = vadd.f32 %v2033, %v2321
  %v2354 = vadd.f32 %v2034, %v2322
  %v2355 = vadd.f32 %v2035, %v2323
  %v2356 = vadd.f32 %v2036, %v2324
  %v2357 = vadd.f32 %v2037, %v2325
  %v2358 = vadd.f32 %v2038, %v2326
  %v2359 = vadd.f32 %v2039, %v2327
  %v2360 = vadd.f32 %v2040, %v2328
  %v2361 = vadd.f32 %v2041, %v2329
  %v2362 = vadd.f32 %v2042, %v2330
  %v2363 = vadd.f32 %v2043, %v2331
  %v2364 = vadd.f32 %v2044, %v2332
  %v2365 = vadd.f32 %v2045, %v2333
  %v2366 = vadd.f32 %v2046, %v2334
  %v2367 = vadd.f32 %v2047, %v2335
  %v2368 = vadd.f32 %v2048, %v2336
  %v2369 = vadd.f32 %v2049, %v2337
  %v2370 = vadd.f32 %v2050, %v2338
  %v2371 = vadd.f32 %v2051, %v2339
  %v2372 = vadd.f32 %v2052, %v2340
  %v2373 = vadd.f32 %v2053, %v2341
  %v2374 = vadd.f32 %v2054, %v2342
  %v2375 = vadd.f32 %v2055, %v2343
  %v2376 = vadd.f32 %v2056, %v2344
  %v2377 = vadd.f32 %v2057, %v2345
  %2378 = vset.pattern.permute.xlu0 0
  %2379 = vperm.xlu0 %2378, %v99
  %v2380 = vpop.permute.xlu0 %2379
  %2382 = vset.pattern.permute.xlu0 0
  %2383 = vperm.xlu0 %2382, %v101
  %v2384 = vpop.permute.xlu0 %2383
  %2386 = vset.pattern.permute.xlu0 0
  %2387 = vperm.xlu0 %2386, %v103
  %v2388 = vpop.permute.xlu0 %2387
  %2390 = vset.pattern.permute.xlu0 0
  %2391 = vperm.xlu0 %2390, %v106
  %v2392 = vpop.permute.xlu0 %2391
  %2394 = vset.pattern.permute.xlu0 0
  %2395 = vperm.xlu0 %2394, %v108
  %v2396 = vpop.permute.xlu0 %2395
  %2398 = vset.pattern.permute.xlu0 0
  %2399 = vperm.xlu0 %2398, %v110
  %v2400 = vpop.permute.xlu0 %2399
  %2402 = vset.pattern.permute.xlu0 0
  %2403 = vperm.xlu0 %2402, %v113
  %v2404 = vpop.permute.xlu0 %2403
  %2406 = vset.pattern.permute.xlu0 0
  %2407 = vperm.xlu0 %2406, %v115
  %v2408 = vpop.permute.xlu0 %2407
  %2410 = vset.pattern.permute.xlu0 0
  %2411 = vperm.xlu0 %2410, %v117
  %v2412 = vpop.permute.xlu0 %2411
  %2414 = vset.pattern.permute.xlu0 0
  %2415 = vperm.xlu0 %2414, %v120
  %v2416 = vpop.permute.xlu0 %2415
  %2418 = vset.pattern.permute.xlu0 0
  %2419 = vperm.xlu0 %2418, %v122
  %v2420 = vpop.permute.xlu0 %2419
  %2422 = vset.pattern.permute.xlu0 0
  %2423 = vperm.xlu0 %2422, %v124
  %v2424 = vpop.permute.xlu0 %2423
  %2426 = vset.pattern.permute.xlu0 0
  %2427 = vperm.xlu0 %2426, %v127
  %v2428 = vpop.permute.xlu0 %2427
  %2430 = vset.pattern.permute.xlu0 0
  %2431 = vperm.xlu0 %2430, %v129
  %v2432 = vpop.permute.xlu0 %2431
  %2434 = vset.pattern.permute.xlu0 0
  %2435 = vperm.xlu0 %2434, %v131
  %v2436 = vpop.permute.xlu0 %2435
  %2438 = vset.pattern.permute.xlu0 0
  %2439 = vperm.xlu0 %2438, %v134
  %v2440 = vpop.permute.xlu0 %2439
  %2442 = vset.pattern.permute.xlu0 0
  %2443 = vperm.xlu0 %2442, %v136
  %v2444 = vpop.permute.xlu0 %2443
  %2446 = vset.pattern.permute.xlu0 0
  %2447 = vperm.xlu0 %2446, %v138
  %v2448 = vpop.permute.xlu0 %2447
  %2450 = vset.pattern.permute.xlu0 0
  %2451 = vperm.xlu0 %2450, %v141
  %v2452 = vpop.permute.xlu0 %2451
  %2454 = vset.pattern.permute.xlu0 0
  %2455 = vperm.xlu0 %2454, %v143
  %v2456 = vpop.permute.xlu0 %2455
  %2458 = vset.pattern.permute.xlu0 0
  %2459 = vperm.xlu0 %2458, %v145
  %v2460 = vpop.permute.xlu0 %2459
  %2462 = vset.pattern.permute.xlu0 0
  %2463 = vperm.xlu0 %2462, %v148
  %v2464 = vpop.permute.xlu0 %2463
  %2466 = vset.pattern.permute.xlu0 0
  %2467 = vperm.xlu0 %2466, %v150
  %v2468 = vpop.permute.xlu0 %2467
  %2470 = vset.pattern.permute.xlu0 0
  %2471 = vperm.xlu0 %2470, %v152
  %v2472 = vpop.permute.xlu0 %2471
  %v2474 = vmul.f32 %v2380, %v1218
  %v2475 = vmul.f32 %v2384, %v1218
  %v2476 = vmul.f32 %v2388, %v1218
  %v2477 = vmul.f32 %v180, %v1218
  %v2478 = vmul.f32 %v2392, %v1218
  %v2479 = vmul.f32 %v2396, %v1218
  %v2480 = vmul.f32 %v2400, %v1218
  %v2481 = vmul.f32 %v196, %v1218
  %v2482 = vmul.f32 %v2404, %v1218
  %v2483 = vmul.f32 %v2408, %v1218
  %v2484 = vmul.f32 %v2412, %v1218
  %v2485 = vmul.f32 %v212, %v1218
  %v2486 = vmul.f32 %v2416, %v1218
  %v2487 = vmul.f32 %v2420, %v1218
  %v2488 = vmul.f32 %v2424, %v1218
  %v2489 = vmul.f32 %v228, %v1218
  %v2490 = vmul.f32 %v2428, %v1218
  %v2491 = vmul.f32 %v2432, %v1218
  %v2492 = vmul.f32 %v2436, %v1218
  %v2493 = vmul.f32 %v244, %v1218
  %v2494 = vmul.f32 %v2440, %v1218
  %v2495 = vmul.f32 %v2444, %v1218
  %v2496 = vmul.f32 %v2448, %v1218
  %v2497 = vmul.f32 %v260, %v1218
  %v2498 = vmul.f32 %v2452, %v1218
  %v2499 = vmul.f32 %v2456, %v1218
  %v2500 = vmul.f32 %v2460, %v1218
  %v2501 = vmul.f32 %v276, %v1218
  %v2502 = vmul.f32 %v2464, %v1218
  %v2503 = vmul.f32 %v2468, %v1218
  %v2504 = vmul.f32 %v2472, %v1218
  %v2505 = vmul.f32 %v292, %v1218
  %v2506 = vadd.f32 %v2282, %v2474
  %v2507 = vadd.f32 %v2283, %v2475
  %v2508 = vadd.f32 %v2284, %v2476
  %v2509 = vadd.f32 %v2285, %v2477
  %v2510 = vadd.f32 %v2286, %v2478
  %v2511 = vadd.f32 %v2287, %v2479
  %v2512 = vadd.f32 %v2288, %v2480
  %v2513 = vadd.f32 %v2289, %v2481
  %v2514 = vadd.f32 %v2290, %v2482
  %v2515 = vadd.f32 %v2291, %v2483
  %v2516 = vadd.f32 %v2292, %v2484
  %v2517 = vadd.f32 %v2293, %v2485
  %v2518 = vadd.f32 %v2294, %v2486
  %v2519 = vadd.f32 %v2295, %v2487
  %v2520 = vadd.f32 %v2296, %v2488
  %v2521 = vadd.f32 %v2297, %v2489
  %v2522 = vadd.f32 %v2298, %v2490
  %v2523 = vadd.f32 %v2299, %v2491
  %v2524 = vadd.f32 %v2300, %v2492
  %v2525 = vadd.f32 %v2301, %v2493
  %v2526 = vadd.f32 %v2302, %v2494
  %v2527 = vadd.f32 %v2303, %v2495
  %v2528 = vadd.f32 %v2304, %v2496
  %v2529 = vadd.f32 %v2305, %v2497
  %v2530 = vadd.f32 %v2306, %v2498
  %v2531 = vadd.f32 %v2307, %v2499
  %v2532 = vadd.f32 %v2308, %v2500
  %v2533 = vadd.f32 %v2309, %v2501
  %v2534 = vadd.f32 %v2310, %v2502
  %v2535 = vadd.f32 %v2311, %v2503
  %v2536 = vadd.f32 %v2312, %v2504
  %v2537 = vadd.f32 %v2313, %v2505
  %v2538 = vmul.f32 %v2380, %v694
  %v2539 = vmul.f32 %v2384, %v694
  %v2540 = vmul.f32 %v2388, %v694
  %v2541 = vmul.f32 %v180, %v694
  %v2542 = vmul.f32 %v2392, %v694
  %v2543 = vmul.f32 %v2396, %v694
  %v2544 = vmul.f32 %v2400, %v694
  %v2545 = vmul.f32 %v196, %v694
  %v2546 = vmul.f32 %v2404, %v694
  %v2547 = vmul.f32 %v2408, %v694
  %v2548 = vmul.f32 %v2412, %v694
  %v2549 = vmul.f32 %v212, %v694
  %v2550 = vmul.f32 %v2416, %v694
  %v2551 = vmul.f32 %v2420, %v694
  %v2552 = vmul.f32 %v2424, %v694
  %v2553 = vmul.f32 %v228, %v694
  %v2554 = vmul.f32 %v2428, %v694
  %v2555 = vmul.f32 %v2432, %v694
  %v2556 = vmul.f32 %v2436, %v694
  %v2557 = vmul.f32 %v244, %v694
  %v2558 = vmul.f32 %v2440, %v694
  %v2559 = vmul.f32 %v2444, %v694
  %v2560 = vmul.f32 %v2448, %v694
  %v2561 = vmul.f32 %v260, %v694
  %v2562 = vmul.f32 %v2452, %v694
  %v2563 = vmul.f32 %v2456, %v694
  %v2564 = vmul.f32 %v2460, %v694
  %v2565 = vmul.f32 %v276, %v694
  %v2566 = vmul.f32 %v2464, %v694
  %v2567 = vmul.f32 %v2468, %v694
  %v2568 = vmul.f32 %v2472, %v694
  %v2569 = vmul.f32 %v292, %v694
  %v2570 = vadd.f32 %v2346, %v2538
  %v2571 = vadd.f32 %v2347, %v2539
  %v2572 = vadd.f32 %v2348, %v2540
  %v2573 = vadd.f32 %v2349, %v2541
  %v2574 = vadd.f32 %v2350, %v2542
  %v2575 = vadd.f32 %v2351, %v2543
  %v2576 = vadd.f32 %v2352, %v2544
  %v2577 = vadd.f32 %v2353, %v2545
  %v2578 = vadd.f32 %v2354, %v2546
  %v2579 = vadd.f32 %v2355, %v2547
  %v2580 = vadd.f32 %v2356, %v2548
  %v2581 = vadd.f32 %v2357, %v2549
  %v2582 = vadd.f32 %v2358, %v2550
  %v2583 = vadd.f32 %v2359, %v2551
  %v2584 = vadd.f32 %v2360, %v2552
  %v2585 = vadd.f32 %v2361, %v2553
  %v2586 = vadd.f32 %v2362, %v2554
  %v2587 = vadd.f32 %v2363, %v2555
  %v2588 = vadd.f32 %v2364, %v2556
  %v2589 = vadd.f32 %v2365, %v2557
  %v2590 = vadd.f32 %v2366, %v2558
  %v2591 = vadd.f32 %v2367, %v2559
  %v2592 = vadd.f32 %v2368, %v2560
  %v2593 = vadd.f32 %v2369, %v2561
  %v2594 = vadd.f32 %v2370, %v2562
  %v2595 = vadd.f32 %v2371, %v2563
  %v2596 = vadd.f32 %v2372, %v2564
  %v2597 = vadd.f32 %v2373, %v2565
  %v2598 = vadd.f32 %v2374, %v2566
  %v2599 = vadd.f32 %v2375, %v2567
  %v2600 = vadd.f32 %v2376, %v2568
  %v2601 = vadd.f32 %v2377, %v2569
  %2602 = vset.pattern.permute.xlu0 1
  %2603 = vperm.xlu0 %2602, %v99
  %v2604 = vpop.permute.xlu0 %2603
  %2606 = vset.pattern.permute.xlu0 1
  %2607 = vperm.xlu0 %2606, %v101
  %v2608 = vpop.permute.xlu0 %2607
  %2610 = vset.pattern.permute.xlu0 1
  %2611 = vperm.xlu0 %2610, %v103
  %v2612 = vpop.permute.xlu0 %2611
  %2614 = vset.pattern.permute.xlu0 1
  %2615 = vperm.xlu0 %2614, %v106
  %v2616 = vpop.permute.xlu0 %2615
  %2618 = vset.pattern.permute.xlu0 1
  %2619 = vperm.xlu0 %2618, %v108
  %v2620 = vpop.permute.xlu0 %2619
  %2622 = vset.pattern.permute.xlu0 1
  %2623 = vperm.xlu0 %2622, %v110
  %v2624 = vpop.permute.xlu0 %2623
  %2626 = vset.pattern.permute.xlu0 1
  %2627 = vperm.xlu0 %2626, %v113
  %v2628 = vpop.permute.xlu0 %2627
  %2630 = vset.pattern.permute.xlu0 1
  %2631 = vperm.xlu0 %2630, %v115
  %v2632 = vpop.permute.xlu0 %2631
  %2634 = vset.pattern.permute.xlu0 1
  %2635 = vperm.xlu0 %2634, %v117
  %v2636 = vpop.permute.xlu0 %2635
  %2638 = vset.pattern.permute.xlu0 1
  %2639 = vperm.xlu0 %2638, %v120
  %v2640 = vpop.permute.xlu0 %2639
  %2642 = vset.pattern.permute.xlu0 1
  %2643 = vperm.xlu0 %2642, %v122
  %v2644 = vpop.permute.xlu0 %2643
  %2646 = vset.pattern.permute.xlu0 1
  %2647 = vperm.xlu0 %2646, %v124
  %v2648 = vpop.permute.xlu0 %2647
  %2650 = vset.pattern.permute.xlu0 1
  %2651 = vperm.xlu0 %2650, %v127
  %v2652 = vpop.permute.xlu0 %2651
  %2654 = vset.pattern.permute.xlu0 1
  %2655 = vperm.xlu0 %2654, %v129
  %v2656 = vpop.permute.xlu0 %2655
  %2658 = vset.pattern.permute.xlu0 1
  %2659 = vperm.xlu0 %2658, %v131
  %v2660 = vpop.permute.xlu0 %2659
  %2662 = vset.pattern.permute.xlu0 1
  %2663 = vperm.xlu0 %2662, %v134
  %v2664 = vpop.permute.xlu0 %2663
  %2666 = vset.pattern.permute.xlu0 1
  %2667 = vperm.xlu0 %2666, %v136
  %v2668 = vpop.permute.xlu0 %2667
  %2670 = vset.pattern.permute.xlu0 1
  %2671 = vperm.xlu0 %2670, %v138
  %v2672 = vpop.permute.xlu0 %2671
  %2674 = vset.pattern.permute.xlu0 1
  %2675 = vperm.xlu0 %2674, %v141
  %v2676 = vpop.permute.xlu0 %2675
  %2678 = vset.pattern.permute.xlu0 1
  %2679 = vperm.xlu0 %2678, %v143
  %v2680 = vpop.permute.xlu0 %2679
  %2682 = vset.pattern.permute.xlu0 1
  %2683 = vperm.xlu0 %2682, %v145
  %v2684 = vpop.permute.xlu0 %2683
  %2686 = vset.pattern.permute.xlu0 1
  %2687 = vperm.xlu0 %2686, %v148
  %v2688 = vpop.permute.xlu0 %2687
  %2690 = vset.pattern.permute.xlu0 1
  %2691 = vperm.xlu0 %2690, %v150
  %v2692 = vpop.permute.xlu0 %2691
  %2694 = vset.pattern.permute.xlu0 1
  %2695 = vperm.xlu0 %2694, %v152
  %v2696 = vpop.permute.xlu0 %2695
  %v2698 = vmul.f32 %v2604, %v1544
  %v2699 = vmul.f32 %v2608, %v1544
  %v2700 = vmul.f32 %v2612, %v1544
  %v2701 = vmul.f32 %v378, %v1544
  %v2702 = vmul.f32 %v2616, %v1544
  %v2703 = vmul.f32 %v2620, %v1544
  %v2704 = vmul.f32 %v2624, %v1544
  %v2705 = vmul.f32 %v394, %v1544
  %v2706 = vmul.f32 %v2628, %v1544
  %v2707 = vmul.f32 %v2632, %v1544
  %v2708 = vmul.f32 %v2636, %v1544
  %v2709 = vmul.f32 %v410, %v1544
  %v2710 = vmul.f32 %v2640, %v1544
  %v2711 = vmul.f32 %v2644, %v1544
  %v2712 = vmul.f32 %v2648, %v1544
  %v2713 = vmul.f32 %v426, %v1544
  %v2714 = vmul.f32 %v2652, %v1544
  %v2715 = vmul.f32 %v2656, %v1544
  %v2716 = vmul.f32 %v2660, %v1544
  %v2717 = vmul.f32 %v442, %v1544
  %v2718 = vmul.f32 %v2664, %v1544
  %v2719 = vmul.f32 %v2668, %v1544
  %v2720 = vmul.f32 %v2672, %v1544
  %v2721 = vmul.f32 %v458, %v1544
  %v2722 = vmul.f32 %v2676, %v1544
  %v2723 = vmul.f32 %v2680, %v1544
  %v2724 = vmul.f32 %v2684, %v1544
  %v2725 = vmul.f32 %v474, %v1544
  %v2726 = vmul.f32 %v2688, %v1544
  %v2727 = vmul.f32 %v2692, %v1544
  %v2728 = vmul.f32 %v2696, %v1544
  %v2729 = vmul.f32 %v490, %v1544
  %v2730 = vadd.f32 %v2506, %v2698
  %v2731 = vadd.f32 %v2507, %v2699
  %v2732 = vadd.f32 %v2508, %v2700
  %v2733 = vadd.f32 %v2509, %v2701
  %v2734 = vadd.f32 %v2510, %v2702
  %v2735 = vadd.f32 %v2511, %v2703
  %v2736 = vadd.f32 %v2512, %v2704
  %v2737 = vadd.f32 %v2513, %v2705
  %v2738 = vadd.f32 %v2514, %v2706
  %v2739 = vadd.f32 %v2515, %v2707
  %v2740 = vadd.f32 %v2516, %v2708
  %v2741 = vadd.f32 %v2517, %v2709
  %v2742 = vadd.f32 %v2518, %v2710
  %v2743 = vadd.f32 %v2519, %v2711
  %v2744 = vadd.f32 %v2520, %v2712
  %v2745 = vadd.f32 %v2521, %v2713
  %v2746 = vadd.f32 %v2522, %v2714
  %v2747 = vadd.f32 %v2523, %v2715
  %v2748 = vadd.f32 %v2524, %v2716
  %v2749 = vadd.f32 %v2525, %v2717
  %v2750 = vadd.f32 %v2526, %v2718
  %v2751 = vadd.f32 %v2527, %v2719
  %v2752 = vadd.f32 %v2528, %v2720
  %v2753 = vadd.f32 %v2529, %v2721
  %v2754 = vadd.f32 %v2530, %v2722
  %v2755 = vadd.f32 %v2531, %v2723
  %v2756 = vadd.f32 %v2532, %v2724
  %v2757 = vadd.f32 %v2533, %v2725
  %v2758 = vadd.f32 %v2534, %v2726
  %v2759 = vadd.f32 %v2535, %v2727
  %v2760 = vadd.f32 %v2536, %v2728
  %v2761 = vadd.f32 %v2537, %v2729
  %v2762 = vmul.f32 %v2604, %v956
  %v2763 = vmul.f32 %v2608, %v956
  %v2764 = vmul.f32 %v2612, %v956
  %v2765 = vmul.f32 %v378, %v956
  %v2766 = vmul.f32 %v2616, %v956
  %v2767 = vmul.f32 %v2620, %v956
  %v2768 = vmul.f32 %v2624, %v956
  %v2769 = vmul.f32 %v394, %v956
  %v2770 = vmul.f32 %v2628, %v956
  %v2771 = vmul.f32 %v2632, %v956
  %v2772 = vmul.f32 %v2636, %v956
  %v2773 = vmul.f32 %v410, %v956
  %v2774 = vmul.f32 %v2640, %v956
  %v2775 = vmul.f32 %v2644, %v956
  %v2776 = vmul.f32 %v2648, %v956
  %v2777 = vmul.f32 %v426, %v956
  %v2778 = vmul.f32 %v2652, %v956
  %v2779 = vmul.f32 %v2656, %v956
  %v2780 = vmul.f32 %v2660, %v956
  %v2781 = vmul.f32 %v442, %v956
  %v2782 = vmul.f32 %v2664, %v956
  %v2783 = vmul.f32 %v2668, %v956
  %v2784 = vmul.f32 %v2672, %v956
  %v2785 = vmul.f32 %v458, %v956
  %v2786 = vmul.f32 %v2676, %v956
  %v2787 = vmul.f32 %v2680, %v956
  %v2788 = vmul.f32 %v2684, %v956
  %v2789 = vmul.f32 %v474, %v956
  %v2790 = vmul.f32 %v2688, %v956
  %v2791 = vmul.f32 %v2692, %v956
  %v2792 = vmul.f32 %v2696, %v956
  %v2793 = vmul.f32 %v490, %v956
  %v2794 = vadd.f32 %v2570, %v2762
  %v2795 = vadd.f32 %v2571, %v2763
  %v2796 = vadd.f32 %v2572, %v2764
  %v2797 = vadd.f32 %v2573, %v2765
  %v2798 = vadd.f32 %v2574, %v2766
  %v2799 = vadd.f32 %v2575, %v2767
  %v2800 = vadd.f32 %v2576, %v2768
  %v2801 = vadd.f32 %v2577, %v2769
  %v2802 = vadd.f32 %v2578, %v2770
  %v2803 = vadd.f32 %v2579, %v2771
  %v2804 = vadd.f32 %v2580, %v2772
  %v2805 = vadd.f32 %v2581, %v2773
  %v2806 = vadd.f32 %v2582, %v2774
  %v2807 = vadd.f32 %v2583, %v2775
  %v2808 = vadd.f32 %v2584, %v2776
  %v2809 = vadd.f32 %v2585, %v2777
  %v2810 = vadd.f32 %v2586, %v2778
  %v2811 = vadd.f32 %v2587, %v2779
  %v2812 = vadd.f32 %v2588, %v2780
  %v2813 = vadd.f32 %v2589, %v2781
  %v2814 = vadd.f32 %v2590, %v2782
  %v2815 = vadd.f32 %v2591, %v2783
  %v2816 = vadd.f32 %v2592, %v2784
  %v2817 = vadd.f32 %v2593, %v2785
  %v2818 = vadd.f32 %v2594, %v2786
  %v2819 = vadd.f32 %v2595, %v2787
  %v2820 = vadd.f32 %v2596, %v2788
  %v2821 = vadd.f32 %v2597, %v2789
  %v2822 = vadd.f32 %v2598, %v2790
  %v2823 = vadd.f32 %v2599, %v2791
  %v2824 = vadd.f32 %v2600, %v2792
  %v2825 = vadd.f32 %v2601, %v2793
  %2826 = vset.pattern.permute.xlu0 2
  %2827 = vperm.xlu0 %2826, %v99
  %v2828 = vpop.permute.xlu0 %2827
  %2830 = vset.pattern.permute.xlu0 2
  %2831 = vperm.xlu0 %2830, %v101
  %v2832 = vpop.permute.xlu0 %2831
  %2834 = vset.pattern.permute.xlu0 2
  %2835 = vperm.xlu0 %2834, %v103
  %v2836 = vpop.permute.xlu0 %2835
  %2838 = vset.pattern.permute.xlu0 2
  %2839 = vperm.xlu0 %2838, %v106
  %v2840 = vpop.permute.xlu0 %2839
  %2842 = vset.pattern.permute.xlu0 2
  %2843 = vperm.xlu0 %2842, %v108
  %v2844 = vpop.permute.xlu0 %2843
  %2846 = vset.pattern.permute.xlu0 2
  %2847 = vperm.xlu0 %2846, %v110
  %v2848 = vpop.permute.xlu0 %2847
  %2850 = vset.pattern.permute.xlu0 2
  %2851 = vperm.xlu0 %2850, %v113
  %v2852 = vpop.permute.xlu0 %2851
  %2854 = vset.pattern.permute.xlu0 2
  %2855 = vperm.xlu0 %2854, %v115
  %v2856 = vpop.permute.xlu0 %2855
  %2858 = vset.pattern.permute.xlu0 2
  %2859 = vperm.xlu0 %2858, %v117
  %v2860 = vpop.permute.xlu0 %2859
  %2862 = vset.pattern.permute.xlu0 2
  %2863 = vperm.xlu0 %2862, %v120
  %v2864 = vpop.permute.xlu0 %2863
  %2866 = vset.pattern.permute.xlu0 2
  %2867 = vperm.xlu0 %2866, %v122
  %v2868 = vpop.permute.xlu0 %2867
  %2870 = vset.pattern.permute.xlu0 2
  %2871 = vperm.xlu0 %2870, %v124
  %v2872 = vpop.permute.xlu0 %2871
  %2874 = vset.pattern.permute.xlu0 2
  %2875 = vperm.xlu0 %2874, %v127
  %v2876 = vpop.permute.xlu0 %2875
  %2878 = vset.pattern.permute.xlu0 2
  %2879 = vperm.xlu0 %2878, %v129
  %v2880 = vpop.permute.xlu0 %2879
  %2882 = vset.pattern.permute.xlu0 2
  %2883 = vperm.xlu0 %2882, %v131
  %v2884 = vpop.permute.xlu0 %2883
  %2886 = vset.pattern.permute.xlu0 2
  %2887 = vperm.xlu0 %2886, %v134
  %v2888 = vpop.permute.xlu0 %2887
  %2890 = vset.pattern.permute.xlu0 2
  %2891 = vperm.xlu0 %2890, %v136
  %v2892 = vpop.permute.xlu0 %2891
  %2894 = vset.pattern.permute.xlu0 2
  %2895 = vperm.xlu0 %2894, %v138
  %v2896 = vpop.permute.xlu0 %2895
  %2898 = vset.pattern.permute.xlu0 2
  %2899 = vperm.xlu0 %2898, %v141
  %v2900 = vpop.permute.xlu0 %2899
  %2902 = vset.pattern.permute.xlu0 2
  %2903 = vperm.xlu0 %2902, %v143
  %v2904 = vpop.permute.xlu0 %2903
  %2906 = vset.pattern.permute.xlu0 2
  %2907 = vperm.xlu0 %2906, %v145
  %v2908 = vpop.permute.xlu0 %2907
  %2910 = vset.pattern.permute.xlu0 2
  %2911 = vperm.xlu0 %2910, %v148
  %v2912 = vpop.permute.xlu0 %2911
  %2914 = vset.pattern.permute.xlu0 2
  %2915 = vperm.xlu0 %2914, %v150
  %v2916 = vpop.permute.xlu0 %2915
  %2918 = vset.pattern.permute.xlu0 2
  %2919 = vperm.xlu0 %2918, %v152
  %v2920 = vpop.permute.xlu0 %2919
  %v2922 = vmul.f32 %v2828, %v1218
  %v2923 = vmul.f32 %v2832, %v1218
  %v2924 = vmul.f32 %v2836, %v1218
  %v2925 = vmul.f32 %v576, %v1218
  %v2926 = vmul.f32 %v2840, %v1218
  %v2927 = vmul.f32 %v2844, %v1218
  %v2928 = vmul.f32 %v2848, %v1218
  %v2929 = vmul.f32 %v592, %v1218
  %v2930 = vmul.f32 %v2852, %v1218
  %v2931 = vmul.f32 %v2856, %v1218
  %v2932 = vmul.f32 %v2860, %v1218
  %v2933 = vmul.f32 %v608, %v1218
  %v2934 = vmul.f32 %v2864, %v1218
  %v2935 = vmul.f32 %v2868, %v1218
  %v2936 = vmul.f32 %v2872, %v1218
  %v2937 = vmul.f32 %v624, %v1218
  %v2938 = vmul.f32 %v2876, %v1218
  %v2939 = vmul.f32 %v2880, %v1218
  %v2940 = vmul.f32 %v2884, %v1218
  %v2941 = vmul.f32 %v640, %v1218
  %v2942 = vmul.f32 %v2888, %v1218
  %v2943 = vmul.f32 %v2892, %v1218
  %v2944 = vmul.f32 %v2896, %v1218
  %v2945 = vmul.f32 %v656, %v1218
  %v2946 = vmul.f32 %v2900, %v1218
  %v2947 = vmul.f32 %v2904, %v1218
  %v2948 = vmul.f32 %v2908, %v1218
  %v2949 = vmul.f32 %v672, %v1218
  %v2950 = vmul.f32 %v2912, %v1218
  %v2951 = vmul.f32 %v2916, %v1218
  %v2952 = vmul.f32 %v2920, %v1218
  %v2953 = vmul.f32 %v688, %v1218
  %v2954 = vadd.f32 %v2794, %v2922
  %v2955 = vadd.f32 %v2795, %v2923
  %v2956 = vadd.f32 %v2796, %v2924
  %v2957 = vadd.f32 %v2797, %v2925
  %v2958 = vadd.f32 %v2798, %v2926
  %v2959 = vadd.f32 %v2799, %v2927
  %v2960 = vadd.f32 %v2800, %v2928
  %v2961 = vadd.f32 %v2801, %v2929
  %v2962 = vadd.f32 %v2802, %v2930
  %v2963 = vadd.f32 %v2803, %v2931
  %v2964 = vadd.f32 %v2804, %v2932
  %v2965 = vadd.f32 %v2805, %v2933
  %v2966 = vadd.f32 %v2806, %v2934
  %v2967 = vadd.f32 %v2807, %v2935
  %v2968 = vadd.f32 %v2808, %v2936
  %v2969 = vadd.f32 %v2809, %v2937
  %v2970 = vadd.f32 %v2810, %v2938
  %v2971 = vadd.f32 %v2811, %v2939
  %v2972 = vadd.f32 %v2812, %v2940
  %v2973 = vadd.f32 %v2813, %v2941
  %v2974 = vadd.f32 %v2814, %v2942
  %v2975 = vadd.f32 %v2815, %v2943
  %v2976 = vadd.f32 %v2816, %v2944
  %v2977 = vadd.f32 %v2817, %v2945
  %v2978 = vadd.f32 %v2818, %v2946
  %v2979 = vadd.f32 %v2819, %v2947
  %v2980 = vadd.f32 %v2820, %v2948
  %v2981 = vadd.f32 %v2821, %v2949
  %v2982 = vadd.f32 %v2822, %v2950
  %v2983 = vadd.f32 %v2823, %v2951
  %v2984 = vadd.f32 %v2824, %v2952
  %v2985 = vadd.f32 %v2825, %v2953
  %2986 = vset.pattern.permute.xlu0 3
  %2987 = vperm.xlu0 %2986, %v99
  %v2988 = vpop.permute.xlu0 %2987
  %2990 = vset.pattern.permute.xlu0 3
  %2991 = vperm.xlu0 %2990, %v101
  %v2992 = vpop.permute.xlu0 %2991
  %2994 = vset.pattern.permute.xlu0 3
  %2995 = vperm.xlu0 %2994, %v103
  %v2996 = vpop.permute.xlu0 %2995
  %2998 = vset.pattern.permute.xlu0 3
  %2999 = vperm.xlu0 %2998, %v106
  %v3000 = vpop.permute.xlu0 %2999
  %3002 = vset.pattern.permute.xlu0 3
  %3003 = vperm.xlu0 %3002, %v108
  %v3004 = vpop.permute.xlu0 %3003
  %3006 = vset.pattern.permute.xlu0 3
  %3007 = vperm.xlu0 %3006, %v110
  %v3008 = vpop.permute.xlu0 %3007
  %3010 = vset.pattern.permute.xlu0 3
  %3011 = vperm.xlu0 %3010, %v113
  %v3012 = vpop.permute.xlu0 %3011
  %3014 = vset.pattern.permute.xlu0 3
  %3015 = vperm.xlu0 %3014, %v115
  %v3016 = vpop.permute.xlu0 %3015
  %3018 = vset.pattern.permute.xlu0 3
  %3019 = vperm.xlu0 %3018, %v117
  %v3020 = vpop.permute.xlu0 %3019
  %3022 = vset.pattern.permute.xlu0 3
  %3023 = vperm.xlu0 %3022, %v120
  %v3024 = vpop.permute.xlu0 %3023
  %3026 = vset.pattern.permute.xlu0 3
  %3027 = vperm.xlu0 %3026, %v122
  %v3028 = vpop.permute.xlu0 %3027
  %3030 = vset.pattern.permute.xlu0 3
  %3031 = vperm.xlu0 %3030, %v124
  %v3032 = vpop.permute.xlu0 %3031
  %3034 = vset.pattern.permute.xlu0 3
  %3035 = vperm.xlu0 %3034, %v127
  %v3036 = vpop.permute.xlu0 %3035
  %3038 = vset.pattern.permute.xlu0 3
  %3039 = vperm.xlu0 %3038, %v129
  %v3040 = vpop.permute.xlu0 %3039
  %3042 = vset.pattern.permute.xlu0 3
  %3043 = vperm.xlu0 %3042, %v131
  %v3044 = vpop.permute.xlu0 %3043
  %3046 = vset.pattern.permute.xlu0 3
  %3047 = vperm.xlu0 %3046, %v134
  %v3048 = vpop.permute.xlu0 %3047
  %3050 = vset.pattern.permute.xlu0 3
  %3051 = vperm.xlu0 %3050, %v136
  %v3052 = vpop.permute.xlu0 %3051
  %3054 = vset.pattern.permute.xlu0 3
  %3055 = vperm.xlu0 %3054, %v138
  %v3056 = vpop.permute.xlu0 %3055
  %3058 = vset.pattern.permute.xlu0 3
  %3059 = vperm.xlu0 %3058, %v141
  %v3060 = vpop.permute.xlu0 %3059
  %3062 = vset.pattern.permute.xlu0 3
  %3063 = vperm.xlu0 %3062, %v143
  %v3064 = vpop.permute.xlu0 %3063
  %3066 = vset.pattern.permute.xlu0 3
  %3067 = vperm.xlu0 %3066, %v145
  %v3068 = vpop.permute.xlu0 %3067
  %3070 = vset.pattern.permute.xlu0 3
  %3071 = vperm.xlu0 %3070, %v148
  %v3072 = vpop.permute.xlu0 %3071
  %3074 = vset.pattern.permute.xlu0 3
  %3075 = vperm.xlu0 %3074, %v150
  %v3076 = vpop.permute.xlu0 %3075
  %3078 = vset.pattern.permute.xlu0 3
  %3079 = vperm.xlu0 %3078, %v152
  %v3080 = vpop.permute.xlu0 %3079
  %v3082 = vmul.f32 %v2988, %v1544
  %v3083 = vmul.f32 %v2992, %v1544
  %v3084 = vmul.f32 %v2996, %v1544
  %v3085 = vmul.f32 %v838, %v1544
  %v3086 = vmul.f32 %v3000, %v1544
  %v3087 = vmul.f32 %v3004, %v1544
  %v3088 = vmul.f32 %v3008, %v1544
  %v3089 = vmul.f32 %v854, %v1544
  %v3090 = vmul.f32 %v3012, %v1544
  %v3091 = vmul.f32 %v3016, %v1544
  %v3092 = vmul.f32 %v3020, %v1544
  %v3093 = vmul.f32 %v870, %v1544
  %v3094 = vmul.f32 %v3024, %v1544
  %v3095 = vmul.f32 %v3028, %v1544
  %v3096 = vmul.f32 %v3032, %v1544
  %v3097 = vmul.f32 %v886, %v1544
  %v3098 = vmul.f32 %v3036, %v1544
  %v3099 = vmul.f32 %v3040, %v1544
  %v3100 = vmul.f32 %v3044, %v1544
  %v3101 = vmul.f32 %v902, %v1544
  %v3102 = vmul.f32 %v3048, %v1544
  %v3103 = vmul.f32 %v3052, %v1544
  %v3104 = vmul.f32 %v3056, %v1544
  %v3105 = vmul.f32 %v918, %v1544
  %v3106 = vmul.f32 %v3060, %v1544
  %v3107 = vmul.f32 %v3064, %v1544
  %v3108 = vmul.f32 %v3068, %v1544
  %v3109 = vmul.f32 %v934, %v1544
  %v3110 = vmul.f32 %v3072, %v1544
  %v3111 = vmul.f32 %v3076, %v1544
  %v3112 = vmul.f32 %v3080, %v1544
  %v3113 = vmul.f32 %v950, %v1544
  %v3114 = vadd.f32 %v2954, %v3082
  %v3115 = vadd.f32 %v2955, %v3083
  %v3116 = vadd.f32 %v2956, %v3084
  %v3117 = vadd.f32 %v2957, %v3085
  %v3118 = vadd.f32 %v2958, %v3086
  %v3119 = vadd.f32 %v2959, %v3087
  %v3120 = vadd.f32 %v2960, %v3088
  %v3121 = vadd.f32 %v2961, %v3089
  %v3122 = vadd.f32 %v2962, %v3090
  %v3123 = vadd.f32 %v2963, %v3091
  %v3124 = vadd.f32 %v2964, %v3092
  %v3125 = vadd.f32 %v2965, %v3093
  %v3126 = vadd.f32 %v2966, %v3094
  %v3127 = vadd.f32 %v2967, %v3095
  %v3128 = vadd.f32 %v2968, %v3096
  %v3129 = vadd.f32 %v2969, %v3097
  %v3130 = vadd.f32 %v2970, %v3098
  %v3131 = vadd.f32 %v2971, %v3099
  %v3132 = vadd.f32 %v2972, %v3100
  %v3133 = vadd.f32 %v2973, %v3101
  %v3134 = vadd.f32 %v2974, %v3102
  %v3135 = vadd.f32 %v2975, %v3103
  %v3136 = vadd.f32 %v2976, %v3104
  %v3137 = vadd.f32 %v2977, %v3105
  %v3138 = vadd.f32 %v2978, %v3106
  %v3139 = vadd.f32 %v2979, %v3107
  %v3140 = vadd.f32 %v2980, %v3108
  %v3141 = vadd.f32 %v2981, %v3109
  %v3142 = vadd.f32 %v2982, %v3110
  %v3143 = vadd.f32 %v2983, %v3111
  %v3144 = vadd.f32 %v2984, %v3112
  %v3145 = vadd.f32 %v2985, %v3113
  %v3146 = vmax.f32 %v1578, 0.0
  %v3147 = vmax.f32 %v1579, 0.0
  %v3148 = vmax.f32 %v1580, 0.0
  %v3149 = vmax.f32 %v1581, 0.0
  %v3150 = vmax.f32 %v1582, 0.0
  %v3151 = vmax.f32 %v1583, 0.0
  %v3152 = vmax.f32 %v1584, 0.0
  %v3153 = vmax.f32 %v1585, 0.0
  %v3154 = vmax.f32 %v1586, 0.0
  %v3155 = vmax.f32 %v1587, 0.0
  %v3156 = vmax.f32 %v1588, 0.0
  %v3157 = vmax.f32 %v1589, 0.0
  %v3158 = vmax.f32 %v1590, 0.0
  %v3159 = vmax.f32 %v1591, 0.0
  %v3160 = vmax.f32 %v1592, 0.0
  %v3161 = vmax.f32 %v1593, 0.0
  %v3162 = vmax.f32 %v1594, 0.0
  %v3163 = vmax.f32 %v1595, 0.0
  %v3164 = vmax.f32 %v1596, 0.0
  %v3165 = vmax.f32 %v1597, 0.0
  %v3166 = vmax.f32 %v1598, 0.0
  %v3167 = vmax.f32 %v1599, 0.0
  %v3168 = vmax.f32 %v1600, 0.0
  %v3169 = vmax.f32 %v1601, 0.0
  %v3170 = vmax.f32 %v1602, 0.0
  %v3171 = vmax.f32 %v1603, 0.0
  %v3172 = vmax.f32 %v1604, 0.0
  %v3173 = vmax.f32 %v1605, 0.0
  %v3174 = vmax.f32 %v1606, 0.0
  %v3175 = vmax.f32 %v1607, 0.0
  %v3176 = vmax.f32 %v1608, 0.0
  %v3177 = vmax.f32 %v1609, 0.0
  %v3178 = vmax.f32 %v2218, 0.0
  %v3179 = vmax.f32 %v2219, 0.0
  %v3180 = vmax.f32 %v2220, 0.0
  %v3181 = vmax.f32 %v2221, 0.0
  %v3182 = vmax.f32 %v2222, 0.0
  %v3183 = vmax.f32 %v2223, 0.0
  %v3184 = vmax.f32 %v2224, 0.0
  %v3185 = vmax.f32 %v2225, 0.0
  %v3186 = vmax.f32 %v2226, 0.0
  %v3187 = vmax.f32 %v2227, 0.0
  %v3188 = vmax.f32 %v2228, 0.0
  %v3189 = vmax.f32 %v2229, 0.0
  %v3190 = vmax.f32 %v2230, 0.0
  %v3191 = vmax.f32 %v2231, 0.0
  %v3192 = vmax.f32 %v2232, 0.0
  %v3193 = vmax.f32 %v2233, 0.0
  %v3194 = vmax.f32 %v2234, 0.0
  %v3195 = vmax.f32 %v2235, 0.0
  %v3196 = vmax.f32 %v2236, 0.0
  %v3197 = vmax.f32 %v2237, 0.0
  %v3198 = vmax.f32 %v2238, 0.0
  %v3199 = vmax.f32 %v2239, 0.0
  %v3200 = vmax.f32 %v2240, 0.0
  %v3201 = vmax.f32 %v2241, 0.0
  %v3202 = vmax.f32 %v2242, 0.0
  %v3203 = vmax.f32 %v2243, 0.0
  %v3204 = vmax.f32 %v2244, 0.0
  %v3205 = vmax.f32 %v2245, 0.0
  %v3206 = vmax.f32 %v2246, 0.0
  %v3207 = vmax.f32 %v2247, 0.0
  %v3208 = vmax.f32 %v2248, 0.0
  %v3209 = vmax.f32 %v2249, 0.0
  %v3210 = vmax.f32 %v2730, 0.0
  %v3211 = vmax.f32 %v2731, 0.0
  %v3212 = vmax.f32 %v2732, 0.0
  %v3213 = vmax.f32 %v2733, 0.0
  %v3214 = vmax.f32 %v2734, 0.0
  %v3215 = vmax.f32 %v2735, 0.0
  %v3216 = vmax.f32 %v2736, 0.0
  %v3217 = vmax.f32 %v2737, 0.0
  %v3218 = vmax.f32 %v2738, 0.0
  %v3219 = vmax.f32 %v2739, 0.0
  %v3220 = vmax.f32 %v2740, 0.0
  %v3221 = vmax.f32 %v2741, 0.0
  %v3222 = vmax.f32 %v2742, 0.0
  %v3223 = vmax.f32 %v2743, 0.0
  %v3224 = vmax.f32 %v2744, 0.0
  %v3225 = vmax.f32 %v2745, 0.0
  %v3226 = vmax.f32 %v2746, 0.0
  %v3227 = vmax.f32 %v2747, 0.0
  %v3228 = vmax.f32 %v2748, 0.0
  %v3229 = vmax.f32 %v2749, 0.0
  %v3230 = vmax.f32 %v2750, 0.0
  %v3231 = vmax.f32 %v2751, 0.0
  %v3232 = vmax.f32 %v2752, 0.0
  %v3233 = vmax.f32 %v2753, 0.0
  %v3234 = vmax.f32 %v2754, 0.0
  %v3235 = vmax.f32 %v2755, 0.0
  %v3236 = vmax.f32 %v2756, 0.0
  %v3237 = vmax.f32 %v2757, 0.0
  %v3238 = vmax.f32 %v2758, 0.0
  %v3239 = vmax.f32 %v2759, 0.0
  %v3240 = vmax.f32 %v2760, 0.0
  %v3241 = vmax.f32 %v2761, 0.0
  %v3242 = vmax.f32 %v3114, 0.0
  %v3243 = vmax.f32 %v3115, 0.0
  %v3244 = vmax.f32 %v3116, 0.0
  %v3245 = vmax.f32 %v3117, 0.0
  %v3246 = vmax.f32 %v3118, 0.0
  %v3247 = vmax.f32 %v3119, 0.0
  %v3248 = vmax.f32 %v3120, 0.0
  %v3249 = vmax.f32 %v3121, 0.0
  %v3250 = vmax.f32 %v3122, 0.0
  %v3251 = vmax.f32 %v3123, 0.0
  %v3252 = vmax.f32 %v3124, 0.0
  %v3253 = vmax.f32 %v3125, 0.0
  %v3254 = vmax.f32 %v3126, 0.0
  %v3255 = vmax.f32 %v3127, 0.0
  %v3256 = vmax.f32 %v3128, 0.0
  %v3257 = vmax.f32 %v3129, 0.0
  %v3258 = vmax.f32 %v3130, 0.0
  %v3259 = vmax.f32 %v3131, 0.0
  %v3260 = vmax.f32 %v3132, 0.0
  %v3261 = vmax.f32 %v3133, 0.0
  %v3262 = vmax.f32 %v3134, 0.0
  %v3263 = vmax.f32 %v3135, 0.0
  %v3264 = vmax.f32 %v3136, 0.0
  %v3265 = vmax.f32 %v3137, 0.0
  %v3266 = vmax.f32 %v3138, 0.0
  %v3267 = vmax.f32 %v3139, 0.0
  %v3268 = vmax.f32 %v3140, 0.0
  %v3269 = vmax.f32 %v3141, 0.0
  %v3270 = vmax.f32 %v3142, 0.0
  %v3271 = vmax.f32 %v3143, 0.0
  %v3272 = vmax.f32 %v3144, 0.0
  %v3273 = vmax.f32 %v3145, 0.0
  %v3274 = vmax.f32 %v3146, %v3178
  %v3275 = vmax.f32 %v3147, %v3179
  %v3276 = vmax.f32 %v3148, %v3180
  %v3277 = vmax.f32 %v3149, %v3181
  %v3278 = vmax.f32 %v3150, %v3182
  %v3279 = vmax.f32 %v3151, %v3183
  %v3280 = vmax.f32 %v3152, %v3184
  %v3281 = vmax.f32 %v3153, %v3185
  %v3282 = vmax.f32 %v3154, %v3186
  %v3283 = vmax.f32 %v3155, %v3187
  %v3284 = vmax.f32 %v3156, %v3188
  %v3285 = vmax.f32 %v3157, %v3189
  %v3286 = vmax.f32 %v3158, %v3190
  %v3287 = vmax.f32 %v3159, %v3191
  %v3288 = vmax.f32 %v3160, %v3192
  %v3289 = vmax.f32 %v3161, %v3193
  %v3290 = vmax.f32 %v3162, %v3194
  %v3291 = vmax.f32 %v3163, %v3195
  %v3292 = vmax.f32 %v3164, %v3196
  %v3293 = vmax.f32 %v3165, %v3197
  %v3294 = vmax.f32 %v3166, %v3198
  %v3295 = vmax.f32 %v3167, %v3199
  %v3296 = vmax.f32 %v3168, %v3200
  %v3297 = vmax.f32 %v3169, %v3201
  %v3298 = vmax.f32 %v3170, %v3202
  %v3299 = vmax.f32 %v3171, %v3203
  %v3300 = vmax.f32 %v3172, %v3204
  %v3301 = vmax.f32 %v3173, %v3205
  %v3302 = vmax.f32 %v3174, %v3206
  %v3303 = vmax.f32 %v3175, %v3207
  %v3304 = vmax.f32 %v3176, %v3208
  %v3305 = vmax.f32 %v3177, %v3209
  %v3306 = vmax.f32 %v3210, %v3242
  %v3307 = vmax.f32 %v3211, %v3243
  %v3308 = vmax.f32 %v3212, %v3244
  %v3309 = vmax.f32 %v3213, %v3245
  %v3310 = vmax.f32 %v3214, %v3246
  %v3311 = vmax.f32 %v3215, %v3247
  %v3312 = vmax.f32 %v3216, %v3248
  %v3313 = vmax.f32 %v3217, %v3249
  %v3314 = vmax.f32 %v3218, %v3250
  %v3315 = vmax.f32 %v3219, %v3251
  %v3316 = vmax.f32 %v3220, %v3252
  %v3317 = vmax.f32 %v3221, %v3253
  %v3318 = vmax.f32 %v3222, %v3254
  %v3319 = vmax.f32 %v3223, %v3255
  %v3320 = vmax.f32 %v3224, %v3256
  %v3321 = vmax.f32 %v3225, %v3257
  %v3322 = vmax.f32 %v3226, %v3258
  %v3323 = vmax.f32 %v3227, %v3259
  %v3324 = vmax.f32 %v3228, %v3260
  %v3325 = vmax.f32 %v3229, %v3261
  %v3326 = vmax.f32 %v3230, %v3262
  %v3327 = vmax.f32 %v3231, %v3263
  %v3328 = vmax.f32 %v3232, %v3264
  %v3329 = vmax.f32 %v3233, %v3265
  %v3330 = vmax.f32 %v3234, %v3266
  %v3331 = vmax.f32 %v3235, %v3267
  %v3332 = vmax.f32 %v3236, %v3268
  %v3333 = vmax.f32 %v3237, %v3269
  %v3334 = vmax.f32 %v3238, %v3270
  %v3335 = vmax.f32 %v3239, %v3271
  %v3336 = vmax.f32 %v3240, %v3272
  %v3337 = vmax.f32 %v3241, %v3273
  %3370 = vrot.lane.b32.xlu0 %v3306, 64
  %v3371 = vpop.permute.xlu0 %3370
  %3372 = vrot.lane.b32.xlu0 %v3307, 64
  %v3373 = vpop.permute.xlu0 %3372
  %3374 = vrot.lane.b32.xlu0 %v3308, 64
  %v3375 = vpop.permute.xlu0 %3374
  %3376 = vrot.lane.b32.xlu0 %v3309, 64
  %v3377 = vpop.permute.xlu0 %3376
  %3378 = vrot.lane.b32.xlu0 %v3310, 64
  %v3379 = vpop.permute.xlu0 %3378
  %3380 = vrot.lane.b32.xlu0 %v3311, 64
  %v3381 = vpop.permute.xlu0 %3380
  %3382 = vrot.lane.b32.xlu0 %v3312, 64
  %v3383 = vpop.permute.xlu0 %3382
  %3384 = vrot.lane.b32.xlu0 %v3313, 64
  %v3385 = vpop.permute.xlu0 %3384
  %3386 = vrot.lane.b32.xlu0 %v3314, 64
  %v3387 = vpop.permute.xlu0 %3386
  %3388 = vrot.lane.b32.xlu0 %v3315, 64
  %v3389 = vpop.permute.xlu0 %3388
  %3390 = vrot.lane.b32.xlu0 %v3316, 64
  %v3391 = vpop.permute.xlu0 %3390
  %3392 = vrot.lane.b32.xlu0 %v3317, 64
  %v3393 = vpop.permute.xlu0 %3392
  %3394 = vrot.lane.b32.xlu0 %v3318, 64
  %v3395 = vpop.permute.xlu0 %3394
  %3396 = vrot.lane.b32.xlu0 %v3319, 64
  %v3397 = vpop.permute.xlu0 %3396
  %3398 = vrot.lane.b32.xlu0 %v3320, 64
  %v3399 = vpop.permute.xlu0 %3398
  %3400 = vrot.lane.b32.xlu0 %v3321, 64
  %v3401 = vpop.permute.xlu0 %3400
  %3402 = vrot.lane.b32.xlu0 %v3322, 64
  %v3403 = vpop.permute.xlu0 %3402
  %3404 = vrot.lane.b32.xlu0 %v3323, 64
  %v3405 = vpop.permute.xlu0 %3404
  %3406 = vrot.lane.b32.xlu0 %v3324, 64
  %v3407 = vpop.permute.xlu0 %3406
  %3408 = vrot.lane.b32.xlu0 %v3325, 64
  %v3409 = vpop.permute.xlu0 %3408
  %3410 = vrot.lane.b32.xlu0 %v3326, 64
  %v3411 = vpop.permute.xlu0 %3410
  %3412 = vrot.lane.b32.xlu0 %v3327, 64
  %v3413 = vpop.permute.xlu0 %3412
  %3414 = vrot.lane.b32.xlu0 %v3328, 64
  %v3415 = vpop.permute.xlu0 %3414
  %3416 = vrot.lane.b32.xlu0 %v3329, 64
  %v3417 = vpop.permute.xlu0 %3416
  %3418 = vrot.lane.b32.xlu0 %v3330, 64
  %v3419 = vpop.permute.xlu0 %3418
  %3420 = vrot.lane.b32.xlu0 %v3331, 64
  %v3421 = vpop.permute.xlu0 %3420
  %3422 = vrot.lane.b32.xlu0 %v3332, 64
  %v3423 = vpop.permute.xlu0 %3422
  %3424 = vrot.lane.b32.xlu0 %v3333, 64
  %v3425 = vpop.permute.xlu0 %3424
  %3426 = vrot.lane.b32.xlu0 %v3334, 64
  %v3427 = vpop.permute.xlu0 %3426
  %3428 = vrot.lane.b32.xlu0 %v3335, 64
  %v3429 = vpop.permute.xlu0 %3428
  %3430 = vrot.lane.b32.xlu0 %v3336, 64
  %v3431 = vpop.permute.xlu0 %3430
  %3432 = vrot.lane.b32.xlu0 %v3337, 64
  %v3433 = vpop.permute.xlu0 %3432
  %vm3466 = vcmask 523264
  %v3467 = vsel %vm3466, %v3274, %v3371
  %v3468 = vsel %vm3466, %v3275, %v3373
  %v3469 = vsel %vm3466, %v3276, %v3375
  %v3470 = vsel %vm3466, %v3277, %v3377
  %v3471 = vsel %vm3466, %v3278, %v3379
  %v3472 = vsel %vm3466, %v3279, %v3381
  %v3473 = vsel %vm3466, %v3280, %v3383
  %v3474 = vsel %vm3466, %v3281, %v3385
  %v3475 = vsel %vm3466, %v3282, %v3387
  %v3476 = vsel %vm3466, %v3283, %v3389
  %v3477 = vsel %vm3466, %v3284, %v3391
  %v3478 = vsel %vm3466, %v3285, %v3393
  %v3479 = vsel %vm3466, %v3286, %v3395
  %v3480 = vsel %vm3466, %v3287, %v3397
  %v3481 = vsel %vm3466, %v3288, %v3399
  %v3482 = vsel %vm3466, %v3289, %v3401
  %v3483 = vsel %vm3466, %v3290, %v3403
  %v3484 = vsel %vm3466, %v3291, %v3405
  %v3485 = vsel %vm3466, %v3292, %v3407
  %v3486 = vsel %vm3466, %v3293, %v3409
  %v3487 = vsel %vm3466, %v3294, %v3411
  %v3488 = vsel %vm3466, %v3295, %v3413
  %v3489 = vsel %vm3466, %v3296, %v3415
  %v3490 = vsel %vm3466, %v3297, %v3417
  %v3491 = vsel %vm3466, %v3298, %v3419
  %v3492 = vsel %vm3466, %v3299, %v3421
  %v3493 = vsel %vm3466, %v3300, %v3423
  %v3494 = vsel %vm3466, %v3301, %v3425
  %v3495 = vsel %vm3466, %v3302, %v3427
  %v3496 = vsel %vm3466, %v3303, %v3429
  %v3497 = vsel %vm3466, %v3304, %v3431
  %v3498 = vsel %vm3466, %v3305, %v3433
  %v3531 = vrot.slane %v3467, 1
  %v3532 = vrot.slane %v3468, 1
  %v3533 = vsel %vm96, %v3531, %v3532
  %v3534 = vrot.slane %v3469, 1
  %v3535 = vsel %vm96, %v3532, %v3534
  %v3536 = vrot.slane %v3470, 1
  %v3537 = vsel %vm96, %v3534, %v3536
  %v3538 = vrot.slane %v3471, 1
  %v3539 = vrot.slane %v3472, 1
  %v3540 = vsel %vm96, %v3538, %v3539
  %v3541 = vrot.slane %v3473, 1
  %v3542 = vsel %vm96, %v3539, %v3541
  %v3543 = vrot.slane %v3474, 1
  %v3544 = vsel %vm96, %v3541, %v3543
  %v3545 = vrot.slane %v3475, 1
  %v3546 = vrot.slane %v3476, 1
  %v3547 = vsel %vm96, %v3545, %v3546
  %v3548 = vrot.slane %v3477, 1
  %v3549 = vsel %vm96, %v3546, %v3548
  %v3550 = vrot.slane %v3478, 1
  %v3551 = vsel %vm96, %v3548, %v3550
  %v3552 = vrot.slane %v3479, 1
  %v3553 = vrot.slane %v3480, 1
  %v3554 = vsel %vm96, %v3552, %v3553
  %v3555 = vrot.slane %v3481, 1
  %v3556 = vsel %vm96, %v3553, %v3555
  %v3557 = vrot.slane %v3482, 1
  %v3558 = vsel %vm96, %v3555, %v3557
  %v3559 = vrot.slane %v3483, 1
  %v3560 = vrot.slane %v3484, 1
  %v3561 = vsel %vm96, %v3559, %v3560
  %v3562 = vrot.slane %v3485, 1
  %v3563 = vsel %vm96, %v3560, %v3562
  %v3564 = vrot.slane %v3486, 1
  %v3565 = vsel %vm96, %v3562, %v3564
  %v3566 = vrot.slane %v3487, 1
  %v3567 = vrot.slane %v3488, 1
  %v3568 = vsel %vm96, %v3566, %v3567
  %v3569 = vrot.slane %v3489, 1
  %v3570 = vsel %vm96, %v3567, %v3569
  %v3571 = vrot.slane %v3490, 1
  %v3572 = vsel %vm96, %v3569, %v3571
  %v3573 = vrot.slane %v3491, 1
  %v3574 = vrot.slane %v3492, 1
  %v3575 = vsel %vm96, %v3573, %v3574
  %v3576 = vrot.slane %v3493, 1
  %v3577 = vsel %vm96, %v3574, %v3576
  %v3578 = vrot.slane %v3494, 1
  %v3579 = vsel %vm96, %v3576, %v3578
  %v3580 = vrot.slane %v3495, 1
  %v3581 = vrot.slane %v3496, 1
  %v3582 = vsel %vm96, %v3580, %v3581
  %v3583 = vrot.slane %v3497, 1
  %v3584 = vsel %vm96, %v3581, %v3583
  %v3585 = vrot.slane %v3498, 1
  %v3586 = vsel %vm96, %v3583, %v3585
  %3587 = vrot.lane.b32.xlu0 %v3467, 64
  %v3588 = vpop.permute.xlu0 %3587
  %3589 = vrot.lane.b32.xlu0 %v3468, 64
  %v3590 = vpop.permute.xlu0 %3589
  %3591 = vrot.lane.b32.xlu0 %v3469, 64
  %v3592 = vpop.permute.xlu0 %3591
  %3593 = vrot.lane.b32.xlu0 %v3471, 64
  %v3594 = vpop.permute.xlu0 %3593
  %3595 = vrot.lane.b32.xlu0 %v3472, 64
  %v3596 = vpop.permute.xlu0 %3595
  %3597 = vrot.lane.b32.xlu0 %v3473, 64
  %v3598 = vpop.permute.xlu0 %3597
  %3599 = vrot.lane.b32.xlu0 %v3475, 64
  %v3600 = vpop.permute.xlu0 %3599
  %3601 = vrot.lane.b32.xlu0 %v3476, 64
  %v3602 = vpop.permute.xlu0 %3601
  %3603 = vrot.lane.b32.xlu0 %v3477, 64
  %v3604 = vpop.permute.xlu0 %3603
  %3605 = vrot.lane.b32.xlu0 %v3479, 64
  %v3606 = vpop.permute.xlu0 %3605
  %3607 = vrot.lane.b32.xlu0 %v3480, 64
  %v3608 = vpop.permute.xlu0 %3607
  %3609 = vrot.lane.b32.xlu0 %v3481, 64
  %v3610 = vpop.permute.xlu0 %3609
  %3611 = vrot.lane.b32.xlu0 %v3483, 64
  %v3612 = vpop.permute.xlu0 %3611
  %3613 = vrot.lane.b32.xlu0 %v3484, 64
  %v3614 = vpop.permute.xlu0 %3613
  %3615 = vrot.lane.b32.xlu0 %v3485, 64
  %v3616 = vpop.permute.xlu0 %3615
  %3617 = vrot.lane.b32.xlu0 %v3487, 64
  %v3618 = vpop.permute.xlu0 %3617
  %3619 = vrot.lane.b32.xlu0 %v3488, 64
  %v3620 = vpop.permute.xlu0 %3619
  %3621 = vrot.lane.b32.xlu0 %v3489, 64
  %v3622 = vpop.permute.xlu0 %3621
  %3623 = vrot.lane.b32.xlu0 %v3491, 64
  %v3624 = vpop.permute.xlu0 %3623
  %3625 = vrot.lane.b32.xlu0 %v3492, 64
  %v3626 = vpop.permute.xlu0 %3625
  %3627 = vrot.lane.b32.xlu0 %v3493, 64
  %v3628 = vpop.permute.xlu0 %3627
  %3629 = vrot.lane.b32.xlu0 %v3495, 64
  %v3630 = vpop.permute.xlu0 %3629
  %3631 = vrot.lane.b32.xlu0 %v3496, 64
  %v3632 = vpop.permute.xlu0 %3631
  %3633 = vrot.lane.b32.xlu0 %v3497, 64
  %v3634 = vpop.permute.xlu0 %3633
  %3659 = vrot.lane.b32.xlu0 %v3533, 64
  %v3660 = vpop.permute.xlu0 %3659
  %3661 = vrot.lane.b32.xlu0 %v3535, 64
  %v3662 = vpop.permute.xlu0 %3661
  %3663 = vrot.lane.b32.xlu0 %v3537, 64
  %v3664 = vpop.permute.xlu0 %3663
  %3665 = vrot.lane.b32.xlu0 %v3540, 64
  %v3666 = vpop.permute.xlu0 %3665
  %3667 = vrot.lane.b32.xlu0 %v3542, 64
  %v3668 = vpop.permute.xlu0 %3667
  %3669 = vrot.lane.b32.xlu0 %v3544, 64
  %v3670 = vpop.permute.xlu0 %3669
  %3671 = vrot.lane.b32.xlu0 %v3547, 64
  %v3672 = vpop.permute.xlu0 %3671
  %3673 = vrot.lane.b32.xlu0 %v3549, 64
  %v3674 = vpop.permute.xlu0 %3673
  %3675 = vrot.lane.b32.xlu0 %v3551, 64
  %v3676 = vpop.permute.xlu0 %3675
  %3677 = vrot.lane.b32.xlu0 %v3554, 64
  %v3678 = vpop.permute.xlu0 %3677
  %3679 = vrot.lane.b32.xlu0 %v3556, 64
  %v3680 = vpop.permute.xlu0 %3679
  %3681 = vrot.lane.b32.xlu0 %v3558, 64
  %v3682 = vpop.permute.xlu0 %3681
  %3683 = vrot.lane.b32.xlu0 %v3561, 64
  %v3684 = vpop.permute.xlu0 %3683
  %3685 = vrot.lane.b32.xlu0 %v3563, 64
  %v3686 = vpop.permute.xlu0 %3685
  %3687 = vrot.lane.b32.xlu0 %v3565, 64
  %v3688 = vpop.permute.xlu0 %3687
  %3689 = vrot.lane.b32.xlu0 %v3568, 64
  %v3690 = vpop.permute.xlu0 %3689
  %3691 = vrot.lane.b32.xlu0 %v3570, 64
  %v3692 = vpop.permute.xlu0 %3691
  %3693 = vrot.lane.b32.xlu0 %v3572, 64
  %v3694 = vpop.permute.xlu0 %3693
  %3695 = vrot.lane.b32.xlu0 %v3575, 64
  %v3696 = vpop.permute.xlu0 %3695
  %3697 = vrot.lane.b32.xlu0 %v3577, 64
  %v3698 = vpop.permute.xlu0 %3697
  %3699 = vrot.lane.b32.xlu0 %v3579, 64
  %v3700 = vpop.permute.xlu0 %3699
  %3701 = vrot.lane.b32.xlu0 %v3582, 64
  %v3702 = vpop.permute.xlu0 %3701
  %3703 = vrot.lane.b32.xlu0 %v3584, 64
  %v3704 = vpop.permute.xlu0 %3703
  %3705 = vrot.lane.b32.xlu0 %v3586, 64
  %v3706 = vpop.permute.xlu0 %3705
  %v3731 = vsel %vm3466, %v3588, %v3660
  %v3732 = vsel %vm3466, %v3590, %v3662
  %v3733 = vsel %vm3466, %v3592, %v3664
  %v3734 = vsel %vm3466, %v3594, %v3666
  %v3735 = vsel %vm3466, %v3596, %v3668
  %v3736 = vsel %vm3466, %v3598, %v3670
  %v3737 = vsel %vm3466, %v3600, %v3672
  %v3738 = vsel %vm3466, %v3602, %v3674
  %v3739 = vsel %vm3466, %v3604, %v3676
  %v3740 = vsel %vm3466, %v3606, %v3678
  %v3741 = vsel %vm3466, %v3608, %v3680
  %v3742 = vsel %vm3466, %v3610, %v3682
  %v3743 = vsel %vm3466, %v3612, %v3684
  %v3744 = vsel %vm3466, %v3614, %v3686
  %v3745 = vsel %vm3466, %v3616, %v3688
  %v3746 = vsel %vm3466, %v3618, %v3690
  %v3747 = vsel %vm3466, %v3620, %v3692
  %v3748 = vsel %vm3466, %v3622, %v3694
  %v3749 = vsel %vm3466, %v3624, %v3696
  %v3750 = vsel %vm3466, %v3626, %v3698
  %v3751 = vsel %vm3466, %v3628, %v3700
  %v3752 = vsel %vm3466, %v3630, %v3702
  %v3753 = vsel %vm3466, %v3632, %v3704
  %v3754 = vsel %vm3466, %v3634, %v3706
  %v3755 = vld [vmem:[%s3] sm:$0xff]
  %v3756 = vld [vmem:[%s3 + $0x8] sm:$0xff]
  %v3757 = vld [vmem:[%s3 + $0x10] sm:$0xff]
  %v3758 = vld [vmem:[%s3 + $0x18] sm:$0xff]
  %v3759 = vld [vmem:[%s3 + $0x20] sm:$0xff]
  %v3760 = vld [vmem:[%s3 + $0x28] sm:$0xff]
  %v3761 = vld [vmem:[%s3 + $0x30] sm:$0xff]
  %v3762 = vld [vmem:[%s3 + $0x38] sm:$0xff]
  %v3763 = vld [vmem:[%s3 + $0x40] sm:$0xff]
  %v3764 = vld [vmem:[%s3 + $0x48] sm:$0xff]
  %v3765 = vld [vmem:[%s3 + $0x50] sm:$0xff]
  %v3766 = vld [vmem:[%s3 + $0x58] sm:$0xff]
  %v3767 = vld [vmem:[%s3 + $0x60] sm:$0xff]
  %v3768 = vld [vmem:[%s3 + $0x68] sm:$0xff]
  %v3769 = vld [vmem:[%s3 + $0x70] sm:$0xff]
  %v3770 = vld [vmem:[%s3 + $0x78] sm:$0xff]
  %v3771 = vld [vmem:[%s3 + $0x80] sm:$0xff]
  %v3772 = vld [vmem:[%s3 + $0x88] sm:$0xff]
  %v3773 = vld [vmem:[%s3 + $0x90] sm:$0xff]
  %v3774 = vld [vmem:[%s3 + $0x98] sm:$0xff]
  %v3775 = vld [vmem:[%s3 + $0xa0] sm:$0xff]
  %v3776 = vld [vmem:[%s3 + $0xa8] sm:$0xff]
  %v3777 = vld [vmem:[%s3 + $0xb0] sm:$0xff]
  %v3778 = vld [vmem:[%s3 + $0xb8] sm:$0xff]
  %v3779 = vld [vmem:[%s4] sm:$0x1]
  %v3781 = vlaneseq
  %v3782 = vshrl.u32 %v3781, 7
  %v3783 = vsub.s32 0, %v3782
  %v3784 = vrot.slane %v3779, %v3783
  %v3786 = vsel %vm3466, %v3533, 0
  %v3788 = vsel %vm3466, %v3535, 0
  %v3790 = vsel %vm3466, %v3537, 0
  %v3792 = vsel %vm3466, %v3540, 0
  %v3794 = vsel %vm3466, %v3542, 0
  %v3796 = vsel %vm3466, %v3544, 0
  %v3798 = vsel %vm3466, %v3547, 0
  %v3800 = vsel %vm3466, %v3549, 0
  %v3802 = vsel %vm3466, %v3551, 0
  %v3804 = vsel %vm3466, %v3554, 0
  %v3806 = vsel %vm3466, %v3556, 0
  %v3808 = vsel %vm3466, %v3558, 0
  %v3810 = vsel %vm3466, %v3561, 0
  %v3812 = vsel %vm3466, %v3563, 0
  %v3814 = vsel %vm3466, %v3565, 0
  %v3816 = vsel %vm3466, %v3568, 0
  %v3818 = vsel %vm3466, %v3570, 0
  %v3820 = vsel %vm3466, %v3572, 0
  %v3822 = vsel %vm3466, %v3575, 0
  %v3824 = vsel %vm3466, %v3577, 0
  %v3826 = vsel %vm3466, %v3579, 0
  %v3828 = vsel %vm3466, %v3582, 0
  %v3830 = vsel %vm3466, %v3584, 0
  %v3832 = vsel %vm3466, %v3586, 0
  %3834 = vmatprep.subr.mxu0 0.0
  %3835 = vmatpush1.msra.mxu0 %v3770
  %3836 = vmatprep.subr.mxu0 0.0
  %3837 = vmatpush1.msra.mxu0 %v3769
  %3838 = vmatprep.subr.mxu0 0.0
  %3839 = vmatpush1.msra.mxu0 %v3768
  %3840 = vmatprep.subr.mxu0 0.0
  %3841 = vmatpush1.msra.mxu0 %v3767
  %3842 = vmatprep.subr.mxu0 0.0
  %3843 = vmatpush1.msra.mxu0 %v3766
  %3844 = vmatprep.subr.mxu0 0.0
  %3845 = vmatpush1.msra.mxu0 %v3765
  %3846 = vmatprep.subr.mxu0 0.0
  %3847 = vmatpush1.msra.mxu0 %v3764
  %3848 = vmatprep.subr.mxu0 0.0
  %3849 = vmatpush1.msra.mxu0 %v3763
  %3850 = vmatprep.subr.mxu0 0.0
  %3851 = vmatpush1.msra.mxu0 %v3762
  %3852 = vmatprep.subr.mxu0 0.0
  %3853 = vmatpush1.msra.mxu0 %v3761
  %3854 = vmatprep.subr.mxu0 0.0
  %3855 = vmatpush1.msra.mxu0 %v3760
  %3856 = vmatprep.subr.mxu0 0.0
  %3857 = vmatpush1.msra.mxu0 %v3759
  %3858 = vmatprep.subr.mxu0 0.0
  %3859 = vmatpush1.msra.mxu0 %v3758
  %3860 = vmatprep.subr.mxu0 0.0
  %3861 = vmatpush1.msra.mxu0 %v3757
  %3862 = vmatprep.subr.mxu0 0.0
  %3863 = vmatpush1.msra.mxu0 %v3756
  %3864 = vmatprep.subr.mxu0 0.0
  %3865 = vmatpush1.msra.mxu0 %v3755
  %3866 = vmatprep.subr.mxu0 0.0
  %3867 = vmatpush2.msra.mxu0 0.0
  %3868 = vmatprep.subr.mxu0 0.0
  %3869 = vmatpush2.msra.mxu0 0.0
  %3870 = vmatprep.subr.mxu0 0.0
  %3871 = vmatpush2.msra.mxu0 0.0
  %3872 = vmatprep.subr.mxu0 0.0
  %3873 = vmatpush2.msra.mxu0 0.0
  %3874 = vmatprep.subr.mxu0 0.0
  %3875 = vmatpush2.msra.mxu0 0.0
  %3876 = vmatprep.subr.mxu0 0.0
  %3877 = vmatpush2.msra.mxu0 0.0
  %3878 = vmatprep.subr.mxu0 0.0
  %3879 = vmatpush2.msra.mxu0 0.0
  %3880 = vmatprep.subr.mxu0 0.0
  %3881 = vmatpush2.msra.mxu0 0.0
  %3882 = vmatprep.subr.mxu0 0.0
  %3883 = vmatpush2.msra.mxu0 %v3778
  %3884 = vmatprep.subr.mxu0 0.0
  %3885 = vmatpush2.msra.mxu0 %v3777
  %3886 = vmatprep.subr.mxu0 0.0
  %3887 = vmatpush2.msra.mxu0 %v3776
  %3888 = vmatprep.subr.mxu0 0.0
  %3889 = vmatpush2.msra.mxu0 %v3775
  %3890 = vmatprep.subr.mxu0 0.0
  %3891 = vmatpush2.msra.mxu0 %v3774
  %3892 = vmatprep.subr.mxu0 0.0
  %3893 = vmatpush2.msra.mxu0 %v3773
  %3894 = vmatprep.subr.mxu0 0.0
  %3895 = vmatpush2.msra.mxu0 %v3772
  %3896 = vmatprep.subr.mxu0 0.0
  %3897 = vmatpush2.msra.mxu0 %v3771
  %3898 = vmatprep.mubr.f32.mxu0 %v3786
  %3899 = vmatmul.mubr.f32.gmra.mxu0 %v3467
  %v3900 = vpop.f32.mrf.mxu0
  %v3901 = vadd.f32 %v3784, %v3900
  %v3902 = vpop.f32.mrf.mxu0
  %3903 = vmatprep.mubr.f32.mxu0 %v3788
  %3904 = vmatmul.mubr.f32.gmra.mxu0 %v3468
  %v3905 = vpop.f32.mrf.mxu0
  %v3906 = vadd.f32 %v3784, %v3905
  %v3907 = vpop.f32.mrf.mxu0
  %3908 = vmatprep.mubr.f32.mxu0 %v3790
  %3909 = vmatmul.mubr.f32.gmra.mxu0 %v3469
  %v3910 = vpop.f32.mrf.mxu0
  %v3911 = vadd.f32 %v3784, %v3910
  %v3912 = vpop.f32.mrf.mxu0
  %3913 = vmatprep.mubr.f32.mxu0 %v3792
  %3914 = vmatmul.mubr.f32.gmra.mxu0 %v3471
  %v3915 = vpop.f32.mrf.mxu0
  %v3916 = vadd.f32 %v3784, %v3915
  %v3917 = vpop.f32.mrf.mxu0
  %3918 = vmatprep.mubr.f32.mxu0 %v3794
  %3919 = vmatmul.mubr.f32.gmra.mxu0 %v3472
  %v3920 = vpop.f32.mrf.mxu0
  %v3921 = vadd.f32 %v3784, %v3920
  %v3922 = vpop.f32.mrf.mxu0
  %3923 = vmatprep.mubr.f32.mxu0 %v3796
  %3924 = vmatmul.mubr.f32.gmra.mxu0 %v3473
  %v3925 = vpop.f32.mrf.mxu0
  %v3926 = vadd.f32 %v3784, %v3925
  %v3927 = vpop.f32.mrf.mxu0
  %3928 = vmatprep.mubr.f32.mxu0 %v3798
  %3929 = vmatmul.mubr.f32.gmra.mxu0 %v3475
  %v3930 = vpop.f32.mrf.mxu0
  %v3931 = vadd.f32 %v3784, %v3930
  %v3932 = vpop.f32.mrf.mxu0
  %3933 = vmatprep.mubr.f32.mxu0 %v3800
  %3934 = vmatmul.mubr.f32.gmra.mxu0 %v3476
  %v3935 = vpop.f32.mrf.mxu0
  %v3936 = vadd.f32 %v3784, %v3935
  %v3937 = vpop.f32.mrf.mxu0
  %3938 = vmatprep.mubr.f32.mxu0 %v3802
  %3939 = vmatmul.mubr.f32.gmra.mxu0 %v3477
  %v3940 = vpop.f32.mrf.mxu0
  %v3941 = vadd.f32 %v3784, %v3940
  %v3942 = vpop.f32.mrf.mxu0
  %3943 = vmatprep.mubr.f32.mxu0 %v3804
  %3944 = vmatmul.mubr.f32.gmra.mxu0 %v3479
  %v3945 = vpop.f32.mrf.mxu0
  %v3946 = vadd.f32 %v3784, %v3945
  %v3947 = vpop.f32.mrf.mxu0
  %3948 = vmatprep.mubr.f32.mxu0 %v3806
  %3949 = vmatmul.mubr.f32.gmra.mxu0 %v3480
  %v3950 = vpop.f32.mrf.mxu0
  %v3951 = vadd.f32 %v3784, %v3950
  %v3952 = vpop.f32.mrf.mxu0
  %3953 = vmatprep.mubr.f32.mxu0 %v3808
  %3954 = vmatmul.mubr.f32.gmra.mxu0 %v3481
  %v3955 = vpop.f32.mrf.mxu0
  %v3956 = vadd.f32 %v3784, %v3955
  %v3957 = vpop.f32.mrf.mxu0
  %3958 = vmatprep.mubr.f32.mxu0 %v3810
  %3959 = vmatmul.mubr.f32.gmra.mxu0 %v3483
  %v3960 = vpop.f32.mrf.mxu0
  %v3961 = vadd.f32 %v3784, %v3960
  %v3962 = vpop.f32.mrf.mxu0
  %3963 = vmatprep.mubr.f32.mxu0 %v3812
  %3964 = vmatmul.mubr.f32.gmra.mxu0 %v3484
  %v3965 = vpop.f32.mrf.mxu0
  %v3966 = vadd.f32 %v3784, %v3965
  %v3967 = vpop.f32.mrf.mxu0
  %3968 = vmatprep.mubr.f32.mxu0 %v3814
  %3969 = vmatmul.mubr.f32.gmra.mxu0 %v3485
  %v3970 = vpop.f32.mrf.mxu0
  %v3971 = vadd.f32 %v3784, %v3970
  %v3972 = vpop.f32.mrf.mxu0
  %3973 = vmatprep.mubr.f32.mxu0 %v3816
  %3974 = vmatmul.mubr.f32.gmra.mxu0 %v3487
  %v3975 = vpop.f32.mrf.mxu0
  %v3976 = vadd.f32 %v3784, %v3975
  %v3977 = vpop.f32.mrf.mxu0
  %3978 = vmatprep.mubr.f32.mxu0 %v3818
  %3979 = vmatmul.mubr.f32.gmra.mxu0 %v3488
  %v3980 = vpop.f32.mrf.mxu0
  %v3981 = vadd.f32 %v3784, %v3980
  %v3982 = vpop.f32.mrf.mxu0
  %3983 = vmatprep.mubr.f32.mxu0 %v3820
  %3984 = vmatmul.mubr.f32.gmra.mxu0 %v3489
  %v3985 = vpop.f32.mrf.mxu0
  %v3986 = vadd.f32 %v3784, %v3985
  %v3987 = vpop.f32.mrf.mxu0
  %3988 = vmatprep.mubr.f32.mxu0 %v3822
  %3989 = vmatmul.mubr.f32.gmra.mxu0 %v3491
  %v3990 = vpop.f32.mrf.mxu0
  %v3991 = vadd.f32 %v3784, %v3990
  %v3992 = vpop.f32.mrf.mxu0
  %3993 = vmatprep.mubr.f32.mxu0 %v3824
  %3994 = vmatmul.mubr.f32.gmra.mxu0 %v3492
  %v3995 = vpop.f32.mrf.mxu0
  %v3996 = vadd.f32 %v3784, %v3995
  %v3997 = vpop.f32.mrf.mxu0
  %3998 = vmatprep.mubr.f32.mxu0 %v3826
  %3999 = vmatmul.mubr.f32.gmra.mxu0 %v3493
  %v4000 = vpop.f32.mrf.mxu0
  %v4001 = vadd.f32 %v3784, %v4000
  %v4002 = vpop.f32.mrf.mxu0
  %4003 = vmatprep.mubr.f32.mxu0 %v3828
  %4004 = vmatmul.mubr.f32.gmra.mxu0 %v3495
  %v4005 = vpop.f32.mrf.mxu0
  %v4006 = vadd.f32 %v3784, %v4005
  %v4007 = vpop.f32.mrf.mxu0
  %4008 = vmatprep.mubr.f32.mxu0 %v3830
  %4009 = vmatmul.mubr.f32.gmra.mxu0 %v3496
  %v4010 = vpop.f32.mrf.mxu0
  %v4011 = vadd.f32 %v3784, %v4010
  %v4012 = vpop.f32.mrf.mxu0
  %4013 = vmatprep.mubr.f32.mxu0 %v3832
  %4014 = vmatmul.mubr.f32.gmra.mxu0 %v3497
  %v4015 = vpop.f32.mrf.mxu0
  %v4016 = vadd.f32 %v3784, %v4015
  %v4017 = vpop.f32.mrf.mxu0
  %4018 = vdwg.mxu0
  %v4019 = vmax.f32 %v3901, 0.0
  %v4020 = vmax.f32 %v3906, 0.0
  %v4021 = vmax.f32 %v3911, 0.0
  %v4022 = vmax.f32 %v3916, 0.0
  %v4023 = vmax.f32 %v3921, 0.0
  %v4024 = vmax.f32 %v3926, 0.0
  %v4025 = vmax.f32 %v3931, 0.0
  %v4026 = vmax.f32 %v3936, 0.0
  %v4027 = vmax.f32 %v3941, 0.0
  %v4028 = vmax.f32 %v3946, 0.0
  %v4029 = vmax.f32 %v3951, 0.0
  %v4030 = vmax.f32 %v3956, 0.0
  %v4031 = vmax.f32 %v3961, 0.0
  %v4032 = vmax.f32 %v3966, 0.0
  %v4033 = vmax.f32 %v3971, 0.0
  %v4034 = vmax.f32 %v3976, 0.0
  %v4035 = vmax.f32 %v3981, 0.0
  %v4036 = vmax.f32 %v3986, 0.0
  %v4037 = vmax.f32 %v3991, 0.0
  %v4038 = vmax.f32 %v3996, 0.0
  %v4039 = vmax.f32 %v4001, 0.0
  %v4040 = vmax.f32 %v4006, 0.0
  %v4041 = vmax.f32 %v4011, 0.0
  %v4042 = vmax.f32 %v4016, 0.0
  %v4043 = vsel %vm3466, %v3660, 0
  %v4045 = vsel %vm3466, %v3662, 0
  %v4047 = vsel %vm3466, %v3664, 0
  %v4049 = vsel %vm3466, %v3666, 0
  %v4051 = vsel %vm3466, %v3668, 0
  %v4053 = vsel %vm3466, %v3670, 0
  %v4055 = vsel %vm3466, %v3672, 0
  %v4057 = vsel %vm3466, %v3674, 0
  %v4059 = vsel %vm3466, %v3676, 0
  %v4061 = vsel %vm3466, %v3678, 0
  %v4063 = vsel %vm3466, %v3680, 0
  %v4065 = vsel %vm3466, %v3682, 0
  %v4067 = vsel %vm3466, %v3684, 0
  %v4069 = vsel %vm3466, %v3686, 0
  %v4071 = vsel %vm3466, %v3688, 0
  %v4073 = vsel %vm3466, %v3690, 0
  %v4075 = vsel %vm3466, %v3692, 0
  %v4077 = vsel %vm3466, %v3694, 0
  %v4079 = vsel %vm3466, %v3696, 0
  %v4081 = vsel %vm3466, %v3698, 0
  %v4083 = vsel %vm3466, %v3700, 0
  %v4085 = vsel %vm3466, %v3702, 0
  %v4087 = vsel %vm3466, %v3704, 0
  %v4089 = vsel %vm3466, %v3706, 0
  %4091 = vmatprep.subr.mxu0 0.0
  %4092 = vmatpush1.msra.mxu0 %v3770
  %4093 = vmatprep.subr.mxu0 0.0
  %4094 = vmatpush1.msra.mxu0 %v3769
  %4095 = vmatprep.subr.mxu0 0.0
  %4096 = vmatpush1.msra.mxu0 %v3768
  %4097 = vmatprep.subr.mxu0 0.0
  %4098 = vmatpush1.msra.mxu0 %v3767
  %4099 = vmatprep.subr.mxu0 0.0
  %4100 = vmatpush1.msra.mxu0 %v3766
  %4101 = vmatprep.subr.mxu0 0.0
  %4102 = vmatpush1.msra.mxu0 %v3765
  %4103 = vmatprep.subr.mxu0 0.0
  %4104 = vmatpush1.msra.mxu0 %v3764
  %4105 = vmatprep.subr.mxu0 0.0
  %4106 = vmatpush1.msra.mxu0 %v3763
  %4107 = vmatprep.subr.mxu0 0.0
  %4108 = vmatpush1.msra.mxu0 %v3762
  %4109 = vmatprep.subr.mxu0 0.0
  %4110 = vmatpush1.msra.mxu0 %v3761
  %4111 = vmatprep.subr.mxu0 0.0
  %4112 = vmatpush1.msra.mxu0 %v3760
  %4113 = vmatprep.subr.mxu0 0.0
  %4114 = vmatpush1.msra.mxu0 %v3759
  %4115 = vmatprep.subr.mxu0 0.0
  %4116 = vmatpush1.msra.mxu0 %v3758
  %4117 = vmatprep.subr.mxu0 0.0
  %4118 = vmatpush1.msra.mxu0 %v3757
  %4119 = vmatprep.subr.mxu0 0.0
  %4120 = vmatpush1.msra.mxu0 %v3756
  %4121 = vmatprep.subr.mxu0 0.0
  %4122 = vmatpush1.msra.mxu0 %v3755
  %4123 = vmatprep.subr.mxu0 0.0
  %4124 = vmatpush2.msra.mxu0 0.0
  %4125 = vmatprep.subr.mxu0 0.0
  %4126 = vmatpush2.msra.mxu0 0.0
  %4127 = vmatprep.subr.mxu0 0.0
  %4128 = vmatpush2.msra.mxu0 0.0
  %4129 = vmatprep.subr.mxu0 0.0
  %4130 = vmatpush2.msra.mxu0 0.0
  %4131 = vmatprep.subr.mxu0 0.0
  %4132 = vmatpush2.msra.mxu0 0.0
  %4133 = vmatprep.subr.mxu0 0.0
  %4134 = vmatpush2.msra.mxu0 0.0
  %4135 = vmatprep.subr.mxu0 0.0
  %4136 = vmatpush2.msra.mxu0 0.0
  %4137 = vmatprep.subr.mxu0 0.0
  %4138 = vmatpush2.msra.mxu0 0.0
  %4139 = vmatprep.subr.mxu0 0.0
  %4140 = vmatpush2.msra.mxu0 %v3778
  %4141 = vmatprep.subr.mxu0 0.0
  %4142 = vmatpush2.msra.mxu0 %v3777
  %4143 = vmatprep.subr.mxu0 0.0
  %4144 = vmatpush2.msra.mxu0 %v3776
  %4145 = vmatprep.subr.mxu0 0.0
  %4146 = vmatpush2.msra.mxu0 %v3775
  %4147 = vmatprep.subr.mxu0 0.0
  %4148 = vmatpush2.msra.mxu0 %v3774
  %4149 = vmatprep.subr.mxu0 0.0
  %4150 = vmatpush2.msra.mxu0 %v3773
  %4151 = vmatprep.subr.mxu0 0.0
  %4152 = vmatpush2.msra.mxu0 %v3772
  %4153 = vmatprep.subr.mxu0 0.0
  %4154 = vmatpush2.msra.mxu0 %v3771
  %4155 = vmatprep.mubr.f32.mxu0 %v4043
  %4156 = vmatmul.mubr.f32.gmra.mxu0 %v3731
  %v4157 = vpop.f32.mrf.mxu0
  %v4158 = vadd.f32 %v3784, %v4157
  %v4159 = vpop.f32.mrf.mxu0
  %4160 = vmatprep.mubr.f32.mxu0 %v4045
  %4161 = vmatmul.mubr.f32.gmra.mxu0 %v3732
  %v4162 = vpop.f32.mrf.mxu0
  %v4163 = vadd.f32 %v3784, %v4162
  %v4164 = vpop.f32.mrf.mxu0
  %4165 = vmatprep.mubr.f32.mxu0 %v4047
  %4166 = vmatmul.mubr.f32.gmra.mxu0 %v3733
  %v4167 = vpop.f32.mrf.mxu0
  %v4168 = vadd.f32 %v3784, %v4167
  %v4169 = vpop.f32.mrf.mxu0
  %4170 = vmatprep.mubr.f32.mxu0 %v4049
  %4171 = vmatmul.mubr.f32.gmra.mxu0 %v3734
  %v4172 = vpop.f32.mrf.mxu0
  %v4173 = vadd.f32 %v3784, %v4172
  %v4174 = vpop.f32.mrf.mxu0
  %4175 = vmatprep.mubr.f32.mxu0 %v4051
  %4176 = vmatmul.mubr.f32.gmra.mxu0 %v3735
  %v4177 = vpop.f32.mrf.mxu0
  %v4178 = vadd.f32 %v3784, %v4177
  %v4179 = vpop.f32.mrf.mxu0
  %4180 = vmatprep.mubr.f32.mxu0 %v4053
  %4181 = vmatmul.mubr.f32.gmra.mxu0 %v3736
  %v4182 = vpop.f32.mrf.mxu0
  %v4183 = vadd.f32 %v3784, %v4182
  %v4184 = vpop.f32.mrf.mxu0
  %4185 = vmatprep.mubr.f32.mxu0 %v4055
  %4186 = vmatmul.mubr.f32.gmra.mxu0 %v3737
  %v4187 = vpop.f32.mrf.mxu0
  %v4188 = vadd.f32 %v3784, %v4187
  %v4189 = vpop.f32.mrf.mxu0
  %4190 = vmatprep.mubr.f32.mxu0 %v4057
  %4191 = vmatmul.mubr.f32.gmra.mxu0 %v3738
  %v4192 = vpop.f32.mrf.mxu0
  %v4193 = vadd.f32 %v3784, %v4192
  %v4194 = vpop.f32.mrf.mxu0
  %4195 = vmatprep.mubr.f32.mxu0 %v4059
  %4196 = vmatmul.mubr.f32.gmra.mxu0 %v3739
  %v4197 = vpop.f32.mrf.mxu0
  %v4198 = vadd.f32 %v3784, %v4197
  %v4199 = vpop.f32.mrf.mxu0
  %4200 = vmatprep.mubr.f32.mxu0 %v4061
  %4201 = vmatmul.mubr.f32.gmra.mxu0 %v3740
  %v4202 = vpop.f32.mrf.mxu0
  %v4203 = vadd.f32 %v3784, %v4202
  %v4204 = vpop.f32.mrf.mxu0
  %4205 = vmatprep.mubr.f32.mxu0 %v4063
  %4206 = vmatmul.mubr.f32.gmra.mxu0 %v3741
  %v4207 = vpop.f32.mrf.mxu0
  %v4208 = vadd.f32 %v3784, %v4207
  %v4209 = vpop.f32.mrf.mxu0
  %4210 = vmatprep.mubr.f32.mxu0 %v4065
  %4211 = vmatmul.mubr.f32.gmra.mxu0 %v3742
  %v4212 = vpop.f32.mrf.mxu0
  %v4213 = vadd.f32 %v3784, %v4212
  %v4214 = vpop.f32.mrf.mxu0
  %4215 = vmatprep.mubr.f32.mxu0 %v4067
  %4216 = vmatmul.mubr.f32.gmra.mxu0 %v3743
  %v4217 = vpop.f32.mrf.mxu0
  %v4218 = vadd.f32 %v3784, %v4217
  %v4219 = vpop.f32.mrf.mxu0
  %4220 = vmatprep.mubr.f32.mxu0 %v4069
  %4221 = vmatmul.mubr.f32.gmra.mxu0 %v3744
  %v4222 = vpop.f32.mrf.mxu0
  %v4223 = vadd.f32 %v3784, %v4222
  %v4224 = vpop.f32.mrf.mxu0
  %4225 = vmatprep.mubr.f32.mxu0 %v4071
  %4226 = vmatmul.mubr.f32.gmra.mxu0 %v3745
  %v4227 = vpop.f32.mrf.mxu0
  %v4228 = vadd.f32 %v3784, %v4227
  %v4229 = vpop.f32.mrf.mxu0
  %4230 = vmatprep.mubr.f32.mxu0 %v4073
  %4231 = vmatmul.mubr.f32.gmra.mxu0 %v3746
  %v4232 = vpop.f32.mrf.mxu0
  %v4233 = vadd.f32 %v3784, %v4232
  %v4234 = vpop.f32.mrf.mxu0
  %4235 = vmatprep.mubr.f32.mxu0 %v4075
  %4236 = vmatmul.mubr.f32.gmra.mxu0 %v3747
  %v4237 = vpop.f32.mrf.mxu0
  %v4238 = vadd.f32 %v3784, %v4237
  %v4239 = vpop.f32.mrf.mxu0
  %4240 = vmatprep.mubr.f32.mxu0 %v4077
  %4241 = vmatmul.mubr.f32.gmra.mxu0 %v3748
  %v4242 = vpop.f32.mrf.mxu0
  %v4243 = vadd.f32 %v3784, %v4242
  %v4244 = vpop.f32.mrf.mxu0
  %4245 = vmatprep.mubr.f32.mxu0 %v4079
  %4246 = vmatmul.mubr.f32.gmra.mxu0 %v3749
  %v4247 = vpop.f32.mrf.mxu0
  %v4248 = vadd.f32 %v3784, %v4247
  %v4249 = vpop.f32.mrf.mxu0
  %4250 = vmatprep.mubr.f32.mxu0 %v4081
  %4251 = vmatmul.mubr.f32.gmra.mxu0 %v3750
  %v4252 = vpop.f32.mrf.mxu0
  %v4253 = vadd.f32 %v3784, %v4252
  %v4254 = vpop.f32.mrf.mxu0
  %4255 = vmatprep.mubr.f32.mxu0 %v4083
  %4256 = vmatmul.mubr.f32.gmra.mxu0 %v3751
  %v4257 = vpop.f32.mrf.mxu0
  %v4258 = vadd.f32 %v3784, %v4257
  %v4259 = vpop.f32.mrf.mxu0
  %4260 = vmatprep.mubr.f32.mxu0 %v4085
  %4261 = vmatmul.mubr.f32.gmra.mxu0 %v3752
  %v4262 = vpop.f32.mrf.mxu0
  %v4263 = vadd.f32 %v3784, %v4262
  %v4264 = vpop.f32.mrf.mxu0
  %4265 = vmatprep.mubr.f32.mxu0 %v4087
  %4266 = vmatmul.mubr.f32.gmra.mxu0 %v3753
  %v4267 = vpop.f32.mrf.mxu0
  %v4268 = vadd.f32 %v3784, %v4267
  %v4269 = vpop.f32.mrf.mxu0
  %4270 = vmatprep.mubr.f32.mxu0 %v4089
  %4271 = vmatmul.mubr.f32.gmra.mxu0 %v3754
  %v4272 = vpop.f32.mrf.mxu0
  %v4273 = vadd.f32 %v3784, %v4272
  %v4274 = vpop.f32.mrf.mxu0
  %4275 = vdwg.mxu0
  %v4276 = vmax.f32 %v4158, 0.0
  %v4277 = vmax.f32 %v4163, 0.0
  %v4278 = vmax.f32 %v4168, 0.0
  %v4279 = vmax.f32 %v4173, 0.0
  %v4280 = vmax.f32 %v4178, 0.0
  %v4281 = vmax.f32 %v4183, 0.0
  %v4282 = vmax.f32 %v4188, 0.0
  %v4283 = vmax.f32 %v4193, 0.0
  %v4284 = vmax.f32 %v4198, 0.0
  %v4285 = vmax.f32 %v4203, 0.0
  %v4286 = vmax.f32 %v4208, 0.0
  %v4287 = vmax.f32 %v4213, 0.0
  %v4288 = vmax.f32 %v4218, 0.0
  %v4289 = vmax.f32 %v4223, 0.0
  %v4290 = vmax.f32 %v4228, 0.0
  %v4291 = vmax.f32 %v4233, 0.0
  %v4292 = vmax.f32 %v4238, 0.0
  %v4293 = vmax.f32 %v4243, 0.0
  %v4294 = vmax.f32 %v4248, 0.0
  %v4295 = vmax.f32 %v4253, 0.0
  %v4296 = vmax.f32 %v4258, 0.0
  %v4297 = vmax.f32 %v4263, 0.0
  %v4298 = vmax.f32 %v4268, 0.0
  %v4299 = vmax.f32 %v4273, 0.0
  %v4300 = vmax.f32 %v4019, %v4276
  %v4301 = vmax.f32 %v4020, %v4277
  %v4302 = vmax.f32 %v4021, %v4278
  %v4303 = vmax.f32 %v4022, %v4279
  %v4304 = vmax.f32 %v4023, %v4280
  %v4305 = vmax.f32 %v4024, %v4281
  %v4306 = vmax.f32 %v4025, %v4282
  %v4307 = vmax.f32 %v4026, %v4283
  %v4308 = vmax.f32 %v4027, %v4284
  %v4309 = vmax.f32 %v4028, %v4285
  %v4310 = vmax.f32 %v4029, %v4286
  %v4311 = vmax.f32 %v4030, %v4287
  %v4312 = vmax.f32 %v4031, %v4288
  %v4313 = vmax.f32 %v4032, %v4289
  %v4314 = vmax.f32 %v4033, %v4290
  %v4315 = vmax.f32 %v4034, %v4291
  %v4316 = vmax.f32 %v4035, %v4292
  %v4317 = vmax.f32 %v4036, %v4293
  %v4318 = vmax.f32 %v4037, %v4294
  %v4319 = vmax.f32 %v4038, %v4295
  %v4320 = vmax.f32 %v4039, %v4296
  %v4321 = vmax.f32 %v4040, %v4297
  %v4322 = vmax.f32 %v4041, %v4298
  %v4323 = vmax.f32 %v4042, %v4299
  %v4324 = vld [vmem:[%s5] sm:$0xff]
  %v4325 = vld [vmem:[%s5 + $0x8] sm:$0xff]
  %v4326 = vld [vmem:[%s5 + $0x10] sm:$0xff]
  %v4327 = vld [vmem:[%s5 + $0x18] sm:$0xff]
  %v4328 = vld [vmem:[%s5 + $0x20] sm:$0xff]
  %v4329 = vld [vmem:[%s5 + $0x28] sm:$0xff]
  %v4330 = vld [vmem:[%s5 + $0x30] sm:$0xff]
  %v4331 = vld [vmem:[%s5 + $0x38] sm:$0xff]
  %v4332 = vld [vmem:[%s5 + $0x40] sm:$0xff]
  %v4333 = vld [vmem:[%s5 + $0x48] sm:$0xff]
  %v4334 = vld [vmem:[%s5 + $0x50] sm:$0xff]
  %v4335 = vld [vmem:[%s5 + $0x58] sm:$0xff]
  %v4336 = vld [vmem:[%s5 + $0x60] sm:$0xff]
  %v4337 = vld [vmem:[%s5 + $0x68] sm:$0xff]
  %v4338 = vld [vmem:[%s5 + $0x70] sm:$0xff]
  %v4339 = vld [vmem:[%s5 + $0x78] sm:$0xff]
  %v4340 = vld [vmem:[%s5 + $0x80] sm:$0xff]
  %v4341 = vld [vmem:[%s5 + $0x88] sm:$0xff]
  %v4342 = vld [vmem:[%s5 + $0x90] sm:$0xff]
  %v4343 = vld [vmem:[%s5 + $0x98] sm:$0xff]
  %v4344 = vld [vmem:[%s5 + $0xa0] sm:$0xff]
  %v4345 = vld [vmem:[%s5 + $0xa8] sm:$0xff]
  %v4346 = vld [vmem:[%s5 + $0xb0] sm:$0xff]
  %v4347 = vld [vmem:[%s5 + $0xb8] sm:$0xff]
  %v4348 = vld [vmem:[%s5 + $0xc0] sm:$0xff]
  %v4349 = vld [vmem:[%s5 + $0xc8] sm:$0xff]
  %v4350 = vld [vmem:[%s5 + $0xd0] sm:$0xff]
  %v4351 = vld [vmem:[%s5 + $0xd8] sm:$0xff]
  %v4352 = vld [vmem:[%s5 + $0xe0] sm:$0xff]
  %v4353 = vld [vmem:[%s5 + $0xe8] sm:$0xff]
  %v4354 = vld [vmem:[%s5 + $0xf0] sm:$0xff]
  %v4355 = vld [vmem:[%s5 + $0xf8] sm:$0xff]
  %v4356 = vld [vmem:[%s5 + $0x100] sm:$0xff]
  %v4357 = vld [vmem:[%s5 + $0x108] sm:$0xff]
  %v4358 = vld [vmem:[%s5 + $0x110] sm:$0xff]
  %v4359 = vld [vmem:[%s5 + $0x118] sm:$0xff]
  %v4360 = vld [vmem:[%s5 + $0x120] sm:$0xff]
  %v4361 = vld [vmem:[%s5 + $0x128] sm:$0xff]
  %v4362 = vld [vmem:[%s5 + $0x130] sm:$0xff]
  %v4363 = vld [vmem:[%s5 + $0x138] sm:$0xff]
  %v4364 = vld [vmem:[%s5 + $0x140] sm:$0xff]
  %v4365 = vld [vmem:[%s5 + $0x148] sm:$0xff]
  %v4366 = vld [vmem:[%s5 + $0x150] sm:$0xff]
  %v4367 = vld [vmem:[%s5 + $0x158] sm:$0xff]
  %v4368 = vld [vmem:[%s5 + $0x160] sm:$0xff]
  %v4369 = vld [vmem:[%s5 + $0x168] sm:$0xff]
  %v4370 = vld [vmem:[%s5 + $0x170] sm:$0xff]
  %v4371 = vld [vmem:[%s5 + $0x178] sm:$0xff]
  %v4372 = vld [vmem:[%s5 + $0x180] sm:$0xff]
  %v4373 = vld [vmem:[%s5 + $0x188] sm:$0xff]
  %v4374 = vld [vmem:[%s5 + $0x190] sm:$0xff]
  %v4375 = vld [vmem:[%s5 + $0x198] sm:$0xff]
  %v4376 = vld [vmem:[%s5 + $0x1a0] sm:$0xff]
  %v4377 = vld [vmem:[%s5 + $0x1a8] sm:$0xff]
  %v4378 = vld [vmem:[%s5 + $0x1b0] sm:$0xff]
  %v4379 = vld [vmem:[%s5 + $0x1b8] sm:$0xff]
  %v4380 = vld [vmem:[%s5 + $0x1c0] sm:$0xff]
  %v4381 = vld [vmem:[%s5 + $0x1c8] sm:$0xff]
  %v4382 = vld [vmem:[%s5 + $0x1d0] sm:$0xff]
  %v4383 = vld [vmem:[%s5 + $0x1d8] sm:$0xff]
  %v4384 = vld [vmem:[%s5 + $0x1e0] sm:$0xff]
  %v4385 = vld [vmem:[%s5 + $0x1e8] sm:$0xff]
  %v4386 = vld [vmem:[%s5 + $0x1f0] sm:$0xff]
  %v4387 = vld [vmem:[%s5 + $0x1f8] sm:$0xff]
  %v4388 = vld [vmem:[%s5 + $0x200] sm:$0xff]
  %v4389 = vld [vmem:[%s5 + $0x208] sm:$0xff]
  %v4390 = vld [vmem:[%s5 + $0x210] sm:$0xff]
  %v4391 = vld [vmem:[%s5 + $0x218] sm:$0xff]
  %v4392 = vld [vmem:[%s5 + $0x220] sm:$0xff]
  %v4393 = vld [vmem:[%s5 + $0x228] sm:$0xff]
  %v4394 = vld [vmem:[%s5 + $0x230] sm:$0xff]
  %v4395 = vld [vmem:[%s5 + $0x238] sm:$0xff]
  %v4396 = vld [vmem:[%s5 + $0x240] sm:$0xff]
  %v4397 = vld [vmem:[%s5 + $0x248] sm:$0xff]
  %v4398 = vld [vmem:[%s5 + $0x250] sm:$0xff]
  %v4399 = vld [vmem:[%s5 + $0x258] sm:$0xff]
  %v4400 = vld [vmem:[%s5 + $0x260] sm:$0xff]
  %v4401 = vld [vmem:[%s5 + $0x268] sm:$0xff]
  %v4402 = vld [vmem:[%s5 + $0x270] sm:$0xff]
  %v4403 = vld [vmem:[%s5 + $0x278] sm:$0xff]
  %v4404 = vld [vmem:[%s5 + $0x280] sm:$0xff]
  %v4405 = vld [vmem:[%s5 + $0x288] sm:$0xff]
  %v4406 = vld [vmem:[%s5 + $0x290] sm:$0xff]
  %v4407 = vld [vmem:[%s5 + $0x298] sm:$0xff]
  %v4408 = vld [vmem:[%s5 + $0x2a0] sm:$0xff]
  %v4409 = vld [vmem:[%s5 + $0x2a8] sm:$0xff]
  %v4410 = vld [vmem:[%s5 + $0x2b0] sm:$0xff]
  %v4411 = vld [vmem:[%s5 + $0x2b8] sm:$0xff]
  %v4412 = vld [vmem:[%s5 + $0x2c0] sm:$0xff]
  %v4413 = vld [vmem:[%s5 + $0x2c8] sm:$0xff]
  %v4414 = vld [vmem:[%s5 + $0x2d0] sm:$0xff]
  %v4415 = vld [vmem:[%s5 + $0x2d8] sm:$0xff]
  %v4416 = vld [vmem:[%s5 + $0x2e0] sm:$0xff]
  %v4417 = vld [vmem:[%s5 + $0x2e8] sm:$0xff]
  %v4418 = vld [vmem:[%s5 + $0x2f0] sm:$0xff]
  %v4419 = vld [vmem:[%s5 + $0x2f8] sm:$0xff]
  %v4420 = vld [vmem:[%s5 + $0x300] sm:$0xff]
  %v4421 = vld [vmem:[%s5 + $0x308] sm:$0xff]
  %v4422 = vld [vmem:[%s5 + $0x310] sm:$0xff]
  %v4423 = vld [vmem:[%s5 + $0x318] sm:$0xff]
  %v4424 = vld [vmem:[%s5 + $0x320] sm:$0xff]
  %v4425 = vld [vmem:[%s5 + $0x328] sm:$0xff]
  %v4426 = vld [vmem:[%s5 + $0x330] sm:$0xff]
  %v4427 = vld [vmem:[%s5 + $0x338] sm:$0xff]
  %v4428 = vld [vmem:[%s5 + $0x340] sm:$0xff]
  %v4429 = vld [vmem:[%s5 + $0x348] sm:$0xff]
  %v4430 = vld [vmem:[%s5 + $0x350] sm:$0xff]
  %v4431 = vld [vmem:[%s5 + $0x358] sm:$0xff]
  %v4432 = vld [vmem:[%s5 + $0x360] sm:$0xff]
  %v4433 = vld [vmem:[%s5 + $0x368] sm:$0xff]
  %v4434 = vld [vmem:[%s5 + $0x370] sm:$0xff]
  %v4435 = vld [vmem:[%s5 + $0x378] sm:$0xff]
  %v4436 = vld [vmem:[%s5 + $0x380] sm:$0xff]
  %v4437 = vld [vmem:[%s5 + $0x388] sm:$0xff]
  %v4438 = vld [vmem:[%s5 + $0x390] sm:$0xff]
  %v4439 = vld [vmem:[%s5 + $0x398] sm:$0xff]
  %v4440 = vld [vmem:[%s5 + $0x3a0] sm:$0xff]
  %v4441 = vld [vmem:[%s5 + $0x3a8] sm:$0xff]
  %v4442 = vld [vmem:[%s5 + $0x3b0] sm:$0xff]
  %v4443 = vld [vmem:[%s5 + $0x3b8] sm:$0xff]
  %v4444 = vld [vmem:[%s5 + $0x3c0] sm:$0xff]
  %v4445 = vld [vmem:[%s5 + $0x3c8] sm:$0xff]
  %v4446 = vld [vmem:[%s5 + $0x3d0] sm:$0xff]
  %v4447 = vld [vmem:[%s5 + $0x3d8] sm:$0xff]
  %v4448 = vld [vmem:[%s5 + $0x3e0] sm:$0xff]
  %v4449 = vld [vmem:[%s5 + $0x3e8] sm:$0xff]
  %v4450 = vld [vmem:[%s5 + $0x3f0] sm:$0xff]
  %v4451 = vld [vmem:[%s5 + $0x3f8] sm:$0xff]
  %v4452 = vld [vmem:[%s5 + $0x400] sm:$0xff]
  %v4453 = vld [vmem:[%s5 + $0x408] sm:$0xff]
  %v4454 = vld [vmem:[%s5 + $0x410] sm:$0xff]
  %v4455 = vld [vmem:[%s5 + $0x418] sm:$0xff]
  %v4456 = vld [vmem:[%s5 + $0x420] sm:$0xff]
  %v4457 = vld [vmem:[%s5 + $0x428] sm:$0xff]
  %v4458 = vld [vmem:[%s5 + $0x430] sm:$0xff]
  %v4459 = vld [vmem:[%s5 + $0x438] sm:$0xff]
  %v4460 = vld [vmem:[%s5 + $0x440] sm:$0xff]
  %v4461 = vld [vmem:[%s5 + $0x448] sm:$0xff]
  %v4462 = vld [vmem:[%s5 + $0x450] sm:$0xff]
  %v4463 = vld [vmem:[%s5 + $0x458] sm:$0xff]
  %v4464 = vld [vmem:[%s5 + $0x460] sm:$0xff]
  %v4465 = vld [vmem:[%s5 + $0x468] sm:$0xff]
  %v4466 = vld [vmem:[%s5 + $0x470] sm:$0xff]
  %v4467 = vld [vmem:[%s5 + $0x478] sm:$0xff]
  %v4468 = vld [vmem:[%s5 + $0x480] sm:$0xff]
  %v4469 = vld [vmem:[%s5 + $0x488] sm:$0xff]
  %v4470 = vld [vmem:[%s5 + $0x490] sm:$0xff]
  %v4471 = vld [vmem:[%s5 + $0x498] sm:$0xff]
  %v4472 = vld [vmem:[%s5 + $0x4a0] sm:$0xff]
  %v4473 = vld [vmem:[%s5 + $0x4a8] sm:$0xff]
  %v4474 = vld [vmem:[%s5 + $0x4b0] sm:$0xff]
  %v4475 = vld [vmem:[%s5 + $0x4b8] sm:$0xff]
  %v4476 = vld [vmem:[%s5 + $0x4c0] sm:$0xff]
  %v4477 = vld [vmem:[%s5 + $0x4c8] sm:$0xff]
  %v4478 = vld [vmem:[%s5 + $0x4d0] sm:$0xff]
  %v4479 = vld [vmem:[%s5 + $0x4d8] sm:$0xff]
  %v4480 = vld [vmem:[%s5 + $0x4e0] sm:$0xff]
  %v4481 = vld [vmem:[%s5 + $0x4e8] sm:$0xff]
  %v4482 = vld [vmem:[%s5 + $0x4f0] sm:$0xff]
  %v4483 = vld [vmem:[%s5 + $0x4f8] sm:$0xff]
  %v4484 = vld [vmem:[%s5 + $0x500] sm:$0xff]
  %v4485 = vld [vmem:[%s5 + $0x508] sm:$0xff]
  %v4486 = vld [vmem:[%s5 + $0x510] sm:$0xff]
  %v4487 = vld [vmem:[%s5 + $0x518] sm:$0xff]
  %v4488 = vld [vmem:[%s5 + $0x520] sm:$0xff]
  %v4489 = vld [vmem:[%s5 + $0x528] sm:$0xff]
  %v4490 = vld [vmem:[%s5 + $0x530] sm:$0xff]
  %v4491 = vld [vmem:[%s5 + $0x538] sm:$0xff]
  %v4492 = vld [vmem:[%s5 + $0x540] sm:$0xff]
  %v4493 = vld [vmem:[%s5 + $0x548] sm:$0xff]
  %v4494 = vld [vmem:[%s5 + $0x550] sm:$0xff]
  %v4495 = vld [vmem:[%s5 + $0x558] sm:$0xff]
  %v4496 = vld [vmem:[%s5 + $0x560] sm:$0xff]
  %v4497 = vld [vmem:[%s5 + $0x568] sm:$0xff]
  %v4498 = vld [vmem:[%s5 + $0x570] sm:$0xff]
  %v4499 = vld [vmem:[%s5 + $0x578] sm:$0xff]
  %v4500 = vld [vmem:[%s5 + $0x580] sm:$0xff]
  %v4501 = vld [vmem:[%s5 + $0x588] sm:$0xff]
  %v4502 = vld [vmem:[%s5 + $0x590] sm:$0xff]
  %v4503 = vld [vmem:[%s5 + $0x598] sm:$0xff]
  %v4504 = vld [vmem:[%s5 + $0x5a0] sm:$0xff]
  %v4505 = vld [vmem:[%s5 + $0x5a8] sm:$0xff]
  %v4506 = vld [vmem:[%s5 + $0x5b0] sm:$0xff]
  %v4507 = vld [vmem:[%s5 + $0x5b8] sm:$0xff]
  %v4508 = vld [vmem:[%s5 + $0x5c0] sm:$0xff]
  %v4509 = vld [vmem:[%s5 + $0x5c8] sm:$0xff]
  %v4510 = vld [vmem:[%s5 + $0x5d0] sm:$0xff]
  %v4511 = vld [vmem:[%s5 + $0x5d8] sm:$0xff]
  %v4512 = vld [vmem:[%s5 + $0x5e0] sm:$0xff]
  %v4513 = vld [vmem:[%s5 + $0x5e8] sm:$0xff]
  %v4514 = vld [vmem:[%s5 + $0x5f0] sm:$0xff]
  %v4515 = vld [vmem:[%s5 + $0x5f8] sm:$0xff]
  %v4516 = vld [vmem:[%s5 + $0x600] sm:$0xff]
  %v4517 = vld [vmem:[%s5 + $0x608] sm:$0xff]
  %v4518 = vld [vmem:[%s5 + $0x610] sm:$0xff]
  %v4519 = vld [vmem:[%s5 + $0x618] sm:$0xff]
  %v4520 = vld [vmem:[%s5 + $0x620] sm:$0xff]
  %v4521 = vld [vmem:[%s5 + $0x628] sm:$0xff]
  %v4522 = vld [vmem:[%s5 + $0x630] sm:$0xff]
  %v4523 = vld [vmem:[%s5 + $0x638] sm:$0xff]
  %v4524 = vld [vmem:[%s5 + $0x640] sm:$0xff]
  %v4525 = vld [vmem:[%s5 + $0x648] sm:$0xff]
  %v4526 = vld [vmem:[%s5 + $0x650] sm:$0xff]
  %v4527 = vld [vmem:[%s5 + $0x658] sm:$0xff]
  %v4528 = vld [vmem:[%s5 + $0x660] sm:$0xff]
  %v4529 = vld [vmem:[%s5 + $0x668] sm:$0xff]
  %v4530 = vld [vmem:[%s5 + $0x670] sm:$0xff]
  %v4531 = vld [vmem:[%s5 + $0x678] sm:$0xff]
  %v4532 = vld [vmem:[%s5 + $0x680] sm:$0xff]
  %v4533 = vld [vmem:[%s5 + $0x688] sm:$0xff]
  %v4534 = vld [vmem:[%s5 + $0x690] sm:$0xff]
  %v4535 = vld [vmem:[%s5 + $0x698] sm:$0xff]
  %v4536 = vld [vmem:[%s5 + $0x6a0] sm:$0xff]
  %v4537 = vld [vmem:[%s5 + $0x6a8] sm:$0xff]
  %v4538 = vld [vmem:[%s5 + $0x6b0] sm:$0xff]
  %v4539 = vld [vmem:[%s5 + $0x6b8] sm:$0xff]
  %v4540 = vld [vmem:[%s5 + $0x6c0] sm:$0xff]
  %v4541 = vld [vmem:[%s5 + $0x6c8] sm:$0xff]
  %v4542 = vld [vmem:[%s5 + $0x6d0] sm:$0xff]
  %v4543 = vld [vmem:[%s5 + $0x6d8] sm:$0xff]
  %v4544 = vld [vmem:[%s5 + $0x6e0] sm:$0xff]
  %v4545 = vld [vmem:[%s5 + $0x6e8] sm:$0xff]
  %v4546 = vld [vmem:[%s5 + $0x6f0] sm:$0xff]
  %v4547 = vld [vmem:[%s5 + $0x6f8] sm:$0xff]
  %v4548 = vld [vmem:[%s5 + $0x700] sm:$0xff]
  %v4549 = vld [vmem:[%s5 + $0x708] sm:$0xff]
  %v4550 = vld [vmem:[%s5 + $0x710] sm:$0xff]
  %v4551 = vld [vmem:[%s5 + $0x718] sm:$0xff]
  %v4552 = vld [vmem:[%s5 + $0x720] sm:$0xff]
  %v4553 = vld [vmem:[%s5 + $0x728] sm:$0xff]
  %v4554 = vld [vmem:[%s5 + $0x730] sm:$0xff]
  %v4555 = vld [vmem:[%s5 + $0x738] sm:$0xff]
  %v4556 = vld [vmem:[%s5 + $0x740] sm:$0xff]
  %v4557 = vld [vmem:[%s5 + $0x748] sm:$0xff]
  %v4558 = vld [vmem:[%s5 + $0x750] sm:$0xff]
  %v4559 = vld [vmem:[%s5 + $0x758] sm:$0xff]
  %v4560 = vld [vmem:[%s5 + $0x760] sm:$0xff]
  %v4561 = vld [vmem:[%s5 + $0x768] sm:$0xff]
  %v4562 = vld [vmem:[%s5 + $0x770] sm:$0xff]
  %v4563 = vld [vmem:[%s5 + $0x778] sm:$0xff]
  %v4564 = vld [vmem:[%s5 + $0x780] sm:$0xff]
  %v4565 = vld [vmem:[%s5 + $0x788] sm:$0xff]
  %v4566 = vld [vmem:[%s5 + $0x790] sm:$0xff]
  %v4567 = vld [vmem:[%s5 + $0x798] sm:$0xff]
  %v4568 = vld [vmem:[%s5 + $0x7a0] sm:$0xff]
  %v4569 = vld [vmem:[%s5 + $0x7a8] sm:$0xff]
  %v4570 = vld [vmem:[%s5 + $0x7b0] sm:$0xff]
  %v4571 = vld [vmem:[%s5 + $0x7b8] sm:$0xff]
  %v4572 = vld [vmem:[%s5 + $0x7c0] sm:$0xff]
  %v4573 = vld [vmem:[%s5 + $0x7c8] sm:$0xff]
  %v4574 = vld [vmem:[%s5 + $0x7d0] sm:$0xff]
  %v4575 = vld [vmem:[%s5 + $0x7d8] sm:$0xff]
  %v4576 = vld [vmem:[%s5 + $0x7e0] sm:$0xff]
  %v4577 = vld [vmem:[%s5 + $0x7e8] sm:$0xff]
  %v4578 = vld [vmem:[%s5 + $0x7f0] sm:$0xff]
  %v4579 = vld [vmem:[%s5 + $0x7f8] sm:$0xff]
  %v4580 = vld [vmem:[%s5 + $0x800] sm:$0xff]
  %v4581 = vld [vmem:[%s5 + $0x808] sm:$0xff]
  %v4582 = vld [vmem:[%s5 + $0x810] sm:$0xff]
  %v4583 = vld [vmem:[%s5 + $0x818] sm:$0xff]
  %v4584 = vld [vmem:[%s5 + $0x820] sm:$0xff]
  %v4585 = vld [vmem:[%s5 + $0x828] sm:$0xff]
  %v4586 = vld [vmem:[%s5 + $0x830] sm:$0xff]
  %v4587 = vld [vmem:[%s5 + $0x838] sm:$0xff]
  %v4588 = vld [vmem:[%s5 + $0x840] sm:$0xff]
  %v4589 = vld [vmem:[%s5 + $0x848] sm:$0xff]
  %v4590 = vld [vmem:[%s5 + $0x850] sm:$0xff]
  %v4591 = vld [vmem:[%s5 + $0x858] sm:$0xff]
  %v4592 = vld [vmem:[%s5 + $0x860] sm:$0xff]
  %v4593 = vld [vmem:[%s5 + $0x868] sm:$0xff]
  %v4594 = vld [vmem:[%s5 + $0x870] sm:$0xff]
  %v4595 = vld [vmem:[%s5 + $0x878] sm:$0xff]
  %v4596 = vld [vmem:[%s5 + $0x880] sm:$0xff]
  %v4597 = vld [vmem:[%s5 + $0x888] sm:$0xff]
  %v4598 = vld [vmem:[%s5 + $0x890] sm:$0xff]
  %v4599 = vld [vmem:[%s5 + $0x898] sm:$0xff]
  %v4600 = vld [vmem:[%s5 + $0x8a0] sm:$0xff]
  %v4601 = vld [vmem:[%s5 + $0x8a8] sm:$0xff]
  %v4602 = vld [vmem:[%s5 + $0x8b0] sm:$0xff]
  %v4603 = vld [vmem:[%s5 + $0x8b8] sm:$0xff]
  %v4604 = vld [vmem:[%s5 + $0x8c0] sm:$0xff]
  %v4605 = vld [vmem:[%s5 + $0x8c8] sm:$0xff]
  %v4606 = vld [vmem:[%s5 + $0x8d0] sm:$0xff]
  %v4607 = vld [vmem:[%s5 + $0x8d8] sm:$0xff]
  %v4608 = vld [vmem:[%s5 + $0x8e0] sm:$0xff]
  %v4609 = vld [vmem:[%s5 + $0x8e8] sm:$0xff]
  %v4610 = vld [vmem:[%s5 + $0x8f0] sm:$0xff]
  %v4611 = vld [vmem:[%s5 + $0x8f8] sm:$0xff]
  %v4612 = vld [vmem:[%s5 + $0x900] sm:$0xff]
  %v4613 = vld [vmem:[%s5 + $0x908] sm:$0xff]
  %v4614 = vld [vmem:[%s5 + $0x910] sm:$0xff]
  %v4615 = vld [vmem:[%s5 + $0x918] sm:$0xff]
  %v4616 = vld [vmem:[%s5 + $0x920] sm:$0xff]
  %v4617 = vld [vmem:[%s5 + $0x928] sm:$0xff]
  %v4618 = vld [vmem:[%s5 + $0x930] sm:$0xff]
  %v4619 = vld [vmem:[%s5 + $0x938] sm:$0xff]
  %v4620 = vld [vmem:[%s5 + $0x940] sm:$0xff]
  %v4621 = vld [vmem:[%s5 + $0x948] sm:$0xff]
  %v4622 = vld [vmem:[%s5 + $0x950] sm:$0xff]
  %v4623 = vld [vmem:[%s5 + $0x958] sm:$0xff]
  %v4624 = vld [vmem:[%s5 + $0x960] sm:$0xff]
  %v4625 = vld [vmem:[%s5 + $0x968] sm:$0xff]
  %v4626 = vld [vmem:[%s5 + $0x970] sm:$0xff]
  %v4627 = vld [vmem:[%s5 + $0x978] sm:$0xff]
  %v4628 = vld [vmem:[%s5 + $0x980] sm:$0xff]
  %v4629 = vld [vmem:[%s5 + $0x988] sm:$0xff]
  %v4630 = vld [vmem:[%s5 + $0x990] sm:$0xff]
  %v4631 = vld [vmem:[%s5 + $0x998] sm:$0xff]
  %v4632 = vld [vmem:[%s5 + $0x9a0] sm:$0xff]
  %v4633 = vld [vmem:[%s5 + $0x9a8] sm:$0xff]
  %v4634 = vld [vmem:[%s5 + $0x9b0] sm:$0xff]
  %v4635 = vld [vmem:[%s5 + $0x9b8] sm:$0xff]
  %v4636 = vld [vmem:[%s5 + $0x9c0] sm:$0xff]
  %v4637 = vld [vmem:[%s5 + $0x9c8] sm:$0xff]
  %v4638 = vld [vmem:[%s5 + $0x9d0] sm:$0xff]
  %v4639 = vld [vmem:[%s5 + $0x9d8] sm:$0xff]
  %v4640 = vld [vmem:[%s5 + $0x9e0] sm:$0xff]
  %v4641 = vld [vmem:[%s5 + $0x9e8] sm:$0xff]
  %v4642 = vld [vmem:[%s5 + $0x9f0] sm:$0xff]
  %v4643 = vld [vmem:[%s5 + $0x9f8] sm:$0xff]
  %v4644 = vld [vmem:[%s5 + $0xa00] sm:$0xff]
  %v4645 = vld [vmem:[%s5 + $0xa08] sm:$0xff]
  %v4646 = vld [vmem:[%s5 + $0xa10] sm:$0xff]
  %v4647 = vld [vmem:[%s5 + $0xa18] sm:$0xff]
  %v4648 = vld [vmem:[%s5 + $0xa20] sm:$0xff]
  %v4649 = vld [vmem:[%s5 + $0xa28] sm:$0xff]
  %v4650 = vld [vmem:[%s5 + $0xa30] sm:$0xff]
  %v4651 = vld [vmem:[%s5 + $0xa38] sm:$0xff]
  %v4652 = vld [vmem:[%s5 + $0xa40] sm:$0xff]
  %v4653 = vld [vmem:[%s5 + $0xa48] sm:$0xff]
  %v4654 = vld [vmem:[%s5 + $0xa50] sm:$0xff]
  %v4655 = vld [vmem:[%s5 + $0xa58] sm:$0xff]
  %v4656 = vld [vmem:[%s5 + $0xa60] sm:$0xff]
  %v4657 = vld [vmem:[%s5 + $0xa68] sm:$0xff]
  %v4658 = vld [vmem:[%s5 + $0xa70] sm:$0xff]
  %v4659 = vld [vmem:[%s5 + $0xa78] sm:$0xff]
  %v4660 = vld [vmem:[%s5 + $0xa80] sm:$0xff]
  %v4661 = vld [vmem:[%s5 + $0xa88] sm:$0xff]
  %v4662 = vld [vmem:[%s5 + $0xa90] sm:$0xff]
  %v4663 = vld [vmem:[%s5 + $0xa98] sm:$0xff]
  %v4664 = vld [vmem:[%s5 + $0xaa0] sm:$0xff]
  %v4665 = vld [vmem:[%s5 + $0xaa8] sm:$0xff]
  %v4666 = vld [vmem:[%s5 + $0xab0] sm:$0xff]
  %v4667 = vld [vmem:[%s5 + $0xab8] sm:$0xff]
  %v4668 = vld [vmem:[%s5 + $0xac0] sm:$0xff]
  %v4669 = vld [vmem:[%s5 + $0xac8] sm:$0xff]
  %v4670 = vld [vmem:[%s5 + $0xad0] sm:$0xff]
  %v4671 = vld [vmem:[%s5 + $0xad8] sm:$0xff]
  %v4672 = vld [vmem:[%s5 + $0xae0] sm:$0xff]
  %v4673 = vld [vmem:[%s5 + $0xae8] sm:$0xff]
  %v4674 = vld [vmem:[%s5 + $0xaf0] sm:$0xff]
  %v4675 = vld [vmem:[%s5 + $0xaf8] sm:$0xff]
  %v4676 = vld [vmem:[%s5 + $0xb00] sm:$0xff]
  %v4677 = vld [vmem:[%s5 + $0xb08] sm:$0xff]
  %v4678 = vld [vmem:[%s5 + $0xb10] sm:$0xff]
  %v4679 = vld [vmem:[%s5 + $0xb18] sm:$0xff]
  %v4680 = vld [vmem:[%s5 + $0xb20] sm:$0xff]
  %v4681 = vld [vmem:[%s5 + $0xb28] sm:$0xff]
  %v4682 = vld [vmem:[%s5 + $0xb30] sm:$0xff]
  %v4683 = vld [vmem:[%s5 + $0xb38] sm:$0xff]
  %v4684 = vld [vmem:[%s5 + $0xb40] sm:$0xff]
  %v4685 = vld [vmem:[%s5 + $0xb48] sm:$0xff]
  %v4686 = vld [vmem:[%s5 + $0xb50] sm:$0xff]
  %v4687 = vld [vmem:[%s5 + $0xb58] sm:$0xff]
  %v4688 = vld [vmem:[%s5 + $0xb60] sm:$0xff]
  %v4689 = vld [vmem:[%s5 + $0xb68] sm:$0xff]
  %v4690 = vld [vmem:[%s5 + $0xb70] sm:$0xff]
  %v4691 = vld [vmem:[%s5 + $0xb78] sm:$0xff]
  %v4692 = vld [vmem:[%s5 + $0xb80] sm:$0xff]
  %v4693 = vld [vmem:[%s5 + $0xb88] sm:$0xff]
  %v4694 = vld [vmem:[%s5 + $0xb90] sm:$0xff]
  %v4695 = vld [vmem:[%s5 + $0xb98] sm:$0xff]
  %v4696 = vld [vmem:[%s5 + $0xba0] sm:$0xff]
  %v4697 = vld [vmem:[%s5 + $0xba8] sm:$0xff]
  %v4698 = vld [vmem:[%s5 + $0xbb0] sm:$0xff]
  %v4699 = vld [vmem:[%s5 + $0xbb8] sm:$0xff]
  %v4700 = vld [vmem:[%s5 + $0xbc0] sm:$0xff]
  %v4701 = vld [vmem:[%s5 + $0xbc8] sm:$0xff]
  %v4702 = vld [vmem:[%s5 + $0xbd0] sm:$0xff]
  %v4703 = vld [vmem:[%s5 + $0xbd8] sm:$0xff]
  %v4704 = vld [vmem:[%s5 + $0xbe0] sm:$0xff]
  %v4705 = vld [vmem:[%s5 + $0xbe8] sm:$0xff]
  %v4706 = vld [vmem:[%s5 + $0xbf0] sm:$0xff]
  %v4707 = vld [vmem:[%s5 + $0xbf8] sm:$0xff]
  %v4708 = vld [vmem:[%s6] sm:$0x1]
  %v4710 = vlaneseq
  %v4711 = vshrl.u32 %v4710, 7
  %v4712 = vsub.s32 0, %v4711
  %v4713 = vrot.slane %v4708, %v4712
  %v4739 = vcombine.low %v4300, %v4303
  %v4740 = vcombine.high %v4300, %v4303
  %v4741 = vcombine.low %v4306, %v4309
  %v4742 = vcombine.high %v4306, %v4309
  %v4743 = vcombine.low %v4312, %v4315
  %v4744 = vcombine.high %v4312, %v4315
  %v4745 = vcombine.low %v4318, %v4321
  %v4746 = vcombine.high %v4318, %v4321
  %v4748 = vunpack.c.l.s4 1966171168
  %v4749 = vunpack.c.0.s8 %v4748
  %v4750 = vlaneseq
  %v4751 = vshrl.u32 %v4750, 7
  %v4752 = vsub.s32 %v4749, %v4751
  %v4753 = vrot.slane %v4739, %v4752
  %v4755 = vunpack.c.l.s4 1966171168
  %v4756 = vunpack.c.0.s8 %v4755
  %v4757 = vlaneseq
  %v4758 = vshrl.u32 %v4757, 7
  %v4759 = vsub.s32 %v4756, %v4758
  %v4760 = vrot.slane %v4740, %v4759
  %v4762 = vunpack.c.l.s4 1966171168
  %v4763 = vunpack.c.0.s8 %v4762
  %v4764 = vlaneseq
  %v4765 = vshrl.u32 %v4764, 7
  %v4766 = vsub.s32 %v4763, %v4765
  %v4767 = vrot.slane %v4741, %v4766
  %v4769 = vunpack.c.l.s4 1966171168
  %v4770 = vunpack.c.0.s8 %v4769
  %v4771 = vlaneseq
  %v4772 = vshrl.u32 %v4771, 7
  %v4773 = vsub.s32 %v4770, %v4772
  %v4774 = vrot.slane %v4742, %v4773
  %v4776 = vunpack.c.l.s4 1966171168
  %v4777 = vunpack.c.0.s8 %v4776
  %v4778 = vlaneseq
  %v4779 = vshrl.u32 %v4778, 7
  %v4780 = vsub.s32 %v4777, %v4779
  %v4781 = vrot.slane %v4743, %v4780
  %v4783 = vunpack.c.l.s4 1966171168
  %v4784 = vunpack.c.0.s8 %v4783
  %v4785 = vlaneseq
  %v4786 = vshrl.u32 %v4785, 7
  %v4787 = vsub.s32 %v4784, %v4786
  %v4788 = vrot.slane %v4744, %v4787
  %v4790 = vunpack.c.l.s4 1966171168
  %v4791 = vunpack.c.0.s8 %v4790
  %v4792 = vlaneseq
  %v4793 = vshrl.u32 %v4792, 7
  %v4794 = vsub.s32 %v4791, %v4793
  %v4795 = vrot.slane %v4745, %v4794
  %v4797 = vunpack.c.l.s4 1966171168
  %v4798 = vunpack.c.0.s8 %v4797
  %v4799 = vlaneseq
  %v4800 = vshrl.u32 %v4799, 7
  %v4801 = vsub.s32 %v4798, %v4800
  %v4802 = vrot.slane %v4746, %v4801
  %v4803 = vcombine.low %v4753, %v4767
  %v4804 = vcombine.high %v4753, %v4767
  %v4805 = vcombine.low %v4760, %v4774
  %v4806 = vcombine.high %v4760, %v4774
  %v4807 = vcombine.low %v4781, %v4795
  %v4808 = vcombine.high %v4781, %v4795
  %v4809 = vcombine.low %v4788, %v4802
  %v4810 = vcombine.high %v4788, %v4802
  %v4812 = vunpack.c.l.s4 1966171168
  %v4813 = vunpack.c.0.s8 %v4812
  %v4814 = vlaneseq
  %v4815 = vshrl.u32 %v4814, 7
  %v4816 = vsub.s32 %v4813, %v4815
  %v4817 = vrot.slane %v4803, %v4816
  %v4819 = vunpack.c.l.s4 1966171168
  %v4820 = vunpack.c.0.s8 %v4819
  %v4821 = vlaneseq
  %v4822 = vshrl.u32 %v4821, 7
  %v4823 = vsub.s32 %v4820, %v4822
  %v4824 = vrot.slane %v4805, %v4823
  %v4826 = vunpack.c.l.s4 1966171168
  %v4827 = vunpack.c.0.s8 %v4826
  %v4828 = vlaneseq
  %v4829 = vshrl.u32 %v4828, 7
  %v4830 = vsub.s32 %v4827, %v4829
  %v4831 = vrot.slane %v4804, %v4830
  %v4833 = vunpack.c.l.s4 1966171168
  %v4834 = vunpack.c.0.s8 %v4833
  %v4835 = vlaneseq
  %v4836 = vshrl.u32 %v4835, 7
  %v4837 = vsub.s32 %v4834, %v4836
  %v4838 = vrot.slane %v4806, %v4837
  %v4840 = vunpack.c.l.s4 1966171168
  %v4841 = vunpack.c.0.s8 %v4840
  %v4842 = vlaneseq
  %v4843 = vshrl.u32 %v4842, 7
  %v4844 = vsub.s32 %v4841, %v4843
  %v4845 = vrot.slane %v4807, %v4844
  %v4847 = vunpack.c.l.s4 1966171168
  %v4848 = vunpack.c.0.s8 %v4847
  %v4849 = vlaneseq
  %v4850 = vshrl.u32 %v4849, 7
  %v4851 = vsub.s32 %v4848, %v4850
  %v4852 = vrot.slane %v4809, %v4851
  %v4854 = vunpack.c.l.s4 1966171168
  %v4855 = vunpack.c.0.s8 %v4854
  %v4856 = vlaneseq
  %v4857 = vshrl.u32 %v4856, 7
  %v4858 = vsub.s32 %v4855, %v4857
  %v4859 = vrot.slane %v4808, %v4858
  %v4861 = vunpack.c.l.s4 1966171168
  %v4862 = vunpack.c.0.s8 %v4861
  %v4863 = vlaneseq
  %v4864 = vshrl.u32 %v4863, 7
  %v4865 = vsub.s32 %v4862, %v4864
  %v4866 = vrot.slane %v4810, %v4865
  %v4867 = vcombine.low %v4817, %v4845
  %v4868 = vcombine.high %v4817, %v4845
  %v4869 = vcombine.low %v4824, %v4852
  %v4870 = vcombine.high %v4824, %v4852
  %v4871 = vcombine.low %v4831, %v4859
  %v4872 = vcombine.high %v4831, %v4859
  %v4873 = vcombine.low %v4838, %v4866
  %v4874 = vcombine.high %v4838, %v4866
  %v4875 = vcombine.low %v4301, %v4304
  %v4876 = vcombine.high %v4301, %v4304
  %v4877 = vcombine.low %v4307, %v4310
  %v4878 = vcombine.high %v4307, %v4310
  %v4879 = vcombine.low %v4313, %v4316
  %v4880 = vcombine.high %v4313, %v4316
  %v4881 = vcombine.low %v4319, %v4322
  %v4882 = vcombine.high %v4319, %v4322
  %v4884 = vunpack.c.l.s4 1966171168
  %v4885 = vunpack.c.0.s8 %v4884
  %v4886 = vlaneseq
  %v4887 = vshrl.u32 %v4886, 7
  %v4888 = vsub.s32 %v4885, %v4887
  %v4889 = vrot.slane %v4875, %v4888
  %v4891 = vunpack.c.l.s4 1966171168
  %v4892 = vunpack.c.0.s8 %v4891
  %v4893 = vlaneseq
  %v4894 = vshrl.u32 %v4893, 7
  %v4895 = vsub.s32 %v4892, %v4894
  %v4896 = vrot.slane %v4876, %v4895
  %v4898 = vunpack.c.l.s4 1966171168
  %v4899 = vunpack.c.0.s8 %v4898
  %v4900 = vlaneseq
  %v4901 = vshrl.u32 %v4900, 7
  %v4902 = vsub.s32 %v4899, %v4901
  %v4903 = vrot.slane %v4877, %v4902
  %v4905 = vunpack.c.l.s4 1966171168
  %v4906 = vunpack.c.0.s8 %v4905
  %v4907 = vlaneseq
  %v4908 = vshrl.u32 %v4907, 7
  %v4909 = vsub.s32 %v4906, %v4908
  %v4910 = vrot.slane %v4878, %v4909
  %v4912 = vunpack.c.l.s4 1966171168
  %v4913 = vunpack.c.0.s8 %v4912
  %v4914 = vlaneseq
  %v4915 = vshrl.u32 %v4914, 7
  %v4916 = vsub.s32 %v4913, %v4915
  %v4917 = vrot.slane %v4879, %v4916
  %v4919 = vunpack.c.l.s4 1966171168
  %v4920 = vunpack.c.0.s8 %v4919
  %v4921 = vlaneseq
  %v4922 = vshrl.u32 %v4921, 7
  %v4923 = vsub.s32 %v4920, %v4922
  %v4924 = vrot.slane %v4880, %v4923
  %v4926 = vunpack.c.l.s4 1966171168
  %v4927 = vunpack.c.0.s8 %v4926
  %v4928 = vlaneseq
  %v4929 = vshrl.u32 %v4928, 7
  %v4930 = vsub.s32 %v4927, %v4929
  %v4931 = vrot.slane %v4881, %v4930
  %v4933 = vunpack.c.l.s4 1966171168
  %v4934 = vunpack.c.0.s8 %v4933
  %v4935 = vlaneseq
  %v4936 = vshrl.u32 %v4935, 7
  %v4937 = vsub.s32 %v4934, %v4936
  %v4938 = vrot.slane %v4882, %v4937
  %v4939 = vcombine.low %v4889, %v4903
  %v4940 = vcombine.high %v4889, %v4903
  %v4941 = vcombine.low %v4896, %v4910
  %v4942 = vcombine.high %v4896, %v4910
  %v4943 = vcombine.low %v4917, %v4931
  %v4944 = vcombine.high %v4917, %v4931
  %v4945 = vcombine.low %v4924, %v4938
  %v4946 = vcombine.high %v4924, %v4938
  %v4948 = vunpack.c.l.s4 1966171168
  %v4949 = vunpack.c.0.s8 %v4948
  %v4950 = vlaneseq
  %v4951 = vshrl.u32 %v4950, 7
  %v4952 = vsub.s32 %v4949, %v4951
  %v4953 = vrot.slane %v4939, %v4952
  %v4955 = vunpack.c.l.s4 1966171168
  %v4956 = vunpack.c.0.s8 %v4955
  %v4957 = vlaneseq
  %v4958 = vshrl.u32 %v4957, 7
  %v4959 = vsub.s32 %v4956, %v4958
  %v4960 = vrot.slane %v4941, %v4959
  %v4962 = vunpack.c.l.s4 1966171168
  %v4963 = vunpack.c.0.s8 %v4962
  %v4964 = vlaneseq
  %v4965 = vshrl.u32 %v4964, 7
  %v4966 = vsub.s32 %v4963, %v4965
  %v4967 = vrot.slane %v4940, %v4966
  %v4969 = vunpack.c.l.s4 1966171168
  %v4970 = vunpack.c.0.s8 %v4969
  %v4971 = vlaneseq
  %v4972 = vshrl.u32 %v4971, 7
  %v4973 = vsub.s32 %v4970, %v4972
  %v4974 = vrot.slane %v4942, %v4973
  %v4976 = vunpack.c.l.s4 1966171168
  %v4977 = vunpack.c.0.s8 %v4976
  %v4978 = vlaneseq
  %v4979 = vshrl.u32 %v4978, 7
  %v4980 = vsub.s32 %v4977, %v4979
  %v4981 = vrot.slane %v4943, %v4980
  %v4983 = vunpack.c.l.s4 1966171168
  %v4984 = vunpack.c.0.s8 %v4983
  %v4985 = vlaneseq
  %v4986 = vshrl.u32 %v4985, 7
  %v4987 = vsub.s32 %v4984, %v4986
  %v4988 = vrot.slane %v4945, %v4987
  %v4990 = vunpack.c.l.s4 1966171168
  %v4991 = vunpack.c.0.s8 %v4990
  %v4992 = vlaneseq
  %v4993 = vshrl.u32 %v4992, 7
  %v4994 = vsub.s32 %v4991, %v4993
  %v4995 = vrot.slane %v4944, %v4994
  %v4997 = vunpack.c.l.s4 1966171168
  %v4998 = vunpack.c.0.s8 %v4997
  %v4999 = vlaneseq
  %v5000 = vshrl.u32 %v4999, 7
  %v5001 = vsub.s32 %v4998, %v5000
  %v5002 = vrot.slane %v4946, %v5001
  %v5003 = vcombine.low %v4953, %v4981
  %v5004 = vcombine.high %v4953, %v4981
  %v5005 = vcombine.low %v4960, %v4988
  %v5006 = vcombine.high %v4960, %v4988
  %v5007 = vcombine.low %v4967, %v4995
  %v5008 = vcombine.high %v4967, %v4995
  %v5009 = vcombine.low %v4974, %v5002
  %v5010 = vcombine.high %v4974, %v5002
  %v5011 = vcombine.low %v4302, %v4305
  %v5012 = vcombine.high %v4302, %v4305
  %v5013 = vcombine.low %v4308, %v4311
  %v5014 = vcombine.high %v4308, %v4311
  %v5015 = vcombine.low %v4314, %v4317
  %v5016 = vcombine.high %v4314, %v4317
  %v5017 = vcombine.low %v4320, %v4323
  %v5018 = vcombine.high %v4320, %v4323
  %v5020 = vunpack.c.l.s4 1966171168
  %v5021 = vunpack.c.0.s8 %v5020
  %v5022 = vlaneseq
  %v5023 = vshrl.u32 %v5022, 7
  %v5024 = vsub.s32 %v5021, %v5023
  %v5025 = vrot.slane %v5011, %v5024
  %v5027 = vunpack.c.l.s4 1966171168
  %v5028 = vunpack.c.0.s8 %v5027
  %v5029 = vlaneseq
  %v5030 = vshrl.u32 %v5029, 7
  %v5031 = vsub.s32 %v5028, %v5030
  %v5032 = vrot.slane %v5012, %v5031
  %v5034 = vunpack.c.l.s4 1966171168
  %v5035 = vunpack.c.0.s8 %v5034
  %v5036 = vlaneseq
  %v5037 = vshrl.u32 %v5036, 7
  %v5038 = vsub.s32 %v5035, %v5037
  %v5039 = vrot.slane %v5013, %v5038
  %v5041 = vunpack.c.l.s4 1966171168
  %v5042 = vunpack.c.0.s8 %v5041
  %v5043 = vlaneseq
  %v5044 = vshrl.u32 %v5043, 7
  %v5045 = vsub.s32 %v5042, %v5044
  %v5046 = vrot.slane %v5014, %v5045
  %v5048 = vunpack.c.l.s4 1966171168
  %v5049 = vunpack.c.0.s8 %v5048
  %v5050 = vlaneseq
  %v5051 = vshrl.u32 %v5050, 7
  %v5052 = vsub.s32 %v5049, %v5051
  %v5053 = vrot.slane %v5015, %v5052
  %v5055 = vunpack.c.l.s4 1966171168
  %v5056 = vunpack.c.0.s8 %v5055
  %v5057 = vlaneseq
  %v5058 = vshrl.u32 %v5057, 7
  %v5059 = vsub.s32 %v5056, %v5058
  %v5060 = vrot.slane %v5016, %v5059
  %v5062 = vunpack.c.l.s4 1966171168
  %v5063 = vunpack.c.0.s8 %v5062
  %v5064 = vlaneseq
  %v5065 = vshrl.u32 %v5064, 7
  %v5066 = vsub.s32 %v5063, %v5065
  %v5067 = vrot.slane %v5017, %v5066
  %v5069 = vunpack.c.l.s4 1966171168
  %v5070 = vunpack.c.0.s8 %v5069
  %v5071 = vlaneseq
  %v5072 = vshrl.u32 %v5071, 7
  %v5073 = vsub.s32 %v5070, %v5072
  %v5074 = vrot.slane %v5018, %v5073
  %v5075 = vcombine.low %v5025, %v5039
  %v5076 = vcombine.high %v5025, %v5039
  %v5077 = vcombine.low %v5032, %v5046
  %v5078 = vcombine.high %v5032, %v5046
  %v5079 = vcombine.low %v5053, %v5067
  %v5080 = vcombine.high %v5053, %v5067
  %v5081 = vcombine.low %v5060, %v5074
  %v5082 = vcombine.high %v5060, %v5074
  %v5084 = vunpack.c.l.s4 1966171168
  %v5085 = vunpack.c.0.s8 %v5084
  %v5086 = vlaneseq
  %v5087 = vshrl.u32 %v5086, 7
  %v5088 = vsub.s32 %v5085, %v5087
  %v5089 = vrot.slane %v5075, %v5088
  %v5091 = vunpack.c.l.s4 1966171168
  %v5092 = vunpack.c.0.s8 %v5091
  %v5093 = vlaneseq
  %v5094 = vshrl.u32 %v5093, 7
  %v5095 = vsub.s32 %v5092, %v5094
  %v5096 = vrot.slane %v5077, %v5095
  %v5098 = vunpack.c.l.s4 1966171168
  %v5099 = vunpack.c.0.s8 %v5098
  %v5100 = vlaneseq
  %v5101 = vshrl.u32 %v5100, 7
  %v5102 = vsub.s32 %v5099, %v5101
  %v5103 = vrot.slane %v5076, %v5102
  %v5105 = vunpack.c.l.s4 1966171168
  %v5106 = vunpack.c.0.s8 %v5105
  %v5107 = vlaneseq
  %v5108 = vshrl.u32 %v5107, 7
  %v5109 = vsub.s32 %v5106, %v5108
  %v5110 = vrot.slane %v5078, %v5109
  %v5112 = vunpack.c.l.s4 1966171168
  %v5113 = vunpack.c.0.s8 %v5112
  %v5114 = vlaneseq
  %v5115 = vshrl.u32 %v5114, 7
  %v5116 = vsub.s32 %v5113, %v5115
  %v5117 = vrot.slane %v5079, %v5116
  %v5119 = vunpack.c.l.s4 1966171168
  %v5120 = vunpack.c.0.s8 %v5119
  %v5121 = vlaneseq
  %v5122 = vshrl.u32 %v5121, 7
  %v5123 = vsub.s32 %v5120, %v5122
  %v5124 = vrot.slane %v5081, %v5123
  %v5126 = vunpack.c.l.s4 1966171168
  %v5127 = vunpack.c.0.s8 %v5126
  %v5128 = vlaneseq
  %v5129 = vshrl.u32 %v5128, 7
  %v5130 = vsub.s32 %v5127, %v5129
  %v5131 = vrot.slane %v5080, %v5130
  %v5133 = vunpack.c.l.s4 1966171168
  %v5134 = vunpack.c.0.s8 %v5133
  %v5135 = vlaneseq
  %v5136 = vshrl.u32 %v5135, 7
  %v5137 = vsub.s32 %v5134, %v5136
  %v5138 = vrot.slane %v5082, %v5137
  %v5139 = vcombine.low %v5089, %v5117
  %v5140 = vcombine.high %v5089, %v5117
  %v5141 = vcombine.low %v5096, %v5124
  %v5142 = vcombine.high %v5096, %v5124
  %v5143 = vcombine.low %v5103, %v5131
  %v5144 = vcombine.high %v5103, %v5131
  %v5145 = vcombine.low %v5110, %v5138
  %v5146 = vcombine.high %v5110, %v5138
  %5171 = vmatprep.subr.mxu0 0.0
  %5172 = vmatpush1.msra.mxu0 %v4339
  %5173 = vmatprep.subr.mxu0 0.0
  %5174 = vmatpush1.msra.mxu0 %v4338
  %5175 = vmatprep.subr.mxu0 0.0
  %5176 = vmatpush1.msra.mxu0 %v4337
  %5177 = vmatprep.subr.mxu0 0.0
  %5178 = vmatpush1.msra.mxu0 %v4336
  %5179 = vmatprep.subr.mxu0 0.0
  %5180 = vmatpush1.msra.mxu0 %v4335
  %5181 = vmatprep.subr.mxu0 0.0
  %5182 = vmatpush1.msra.mxu0 %v4334
  %5183 = vmatprep.subr.mxu0 0.0
  %5184 = vmatpush1.msra.mxu0 %v4333
  %5185 = vmatprep.subr.mxu0 0.0
  %5186 = vmatpush1.msra.mxu0 %v4332
  %5187 = vmatprep.subr.mxu0 0.0
  %5188 = vmatpush1.msra.mxu0 %v4331
  %5189 = vmatprep.subr.mxu0 0.0
  %5190 = vmatpush1.msra.mxu0 %v4330
  %5191 = vmatprep.subr.mxu0 0.0
  %5192 = vmatpush1.msra.mxu0 %v4329
  %5193 = vmatprep.subr.mxu0 0.0
  %5194 = vmatpush1.msra.mxu0 %v4328
  %5195 = vmatprep.subr.mxu0 0.0
  %5196 = vmatpush1.msra.mxu0 %v4327
  %5197 = vmatprep.subr.mxu0 0.0
  %5198 = vmatpush1.msra.mxu0 %v4326
  %5199 = vmatprep.subr.mxu0 0.0
  %5200 = vmatpush1.msra.mxu0 %v4325
  %5201 = vmatprep.subr.mxu0 0.0
  %5202 = vmatpush1.msra.mxu0 %v4324
  %5203 = vmatprep.subr.mxu0 0.0
  %5204 = vmatpush2.msra.mxu0 %v4355
  %5205 = vmatprep.subr.mxu0 0.0
  %5206 = vmatpush2.msra.mxu0 %v4354
  %5207 = vmatprep.subr.mxu0 0.0
  %5208 = vmatpush2.msra.mxu0 %v4353
  %5209 = vmatprep.subr.mxu0 0.0
  %5210 = vmatpush2.msra.mxu0 %v4352
  %5211 = vmatprep.subr.mxu0 0.0
  %5212 = vmatpush2.msra.mxu0 %v4351
  %5213 = vmatprep.subr.mxu0 0.0
  %5214 = vmatpush2.msra.mxu0 %v4350
  %5215 = vmatprep.subr.mxu0 0.0
  %5216 = vmatpush2.msra.mxu0 %v4349
  %5217 = vmatprep.subr.mxu0 0.0
  %5218 = vmatpush2.msra.mxu0 %v4348
  %5219 = vmatprep.subr.mxu0 0.0
  %5220 = vmatpush2.msra.mxu0 %v4347
  %5221 = vmatprep.subr.mxu0 0.0
  %5222 = vmatpush2.msra.mxu0 %v4346
  %5223 = vmatprep.subr.mxu0 0.0
  %5224 = vmatpush2.msra.mxu0 %v4345
  %5225 = vmatprep.subr.mxu0 0.0
  %5226 = vmatpush2.msra.mxu0 %v4344
  %5227 = vmatprep.subr.mxu0 0.0
  %5228 = vmatpush2.msra.mxu0 %v4343
  %5229 = vmatprep.subr.mxu0 0.0
  %5230 = vmatpush2.msra.mxu0 %v4342
  %5231 = vmatprep.subr.mxu0 0.0
  %5232 = vmatpush2.msra.mxu0 %v4341
  %5233 = vmatprep.subr.mxu0 0.0
  %5234 = vmatpush2.msra.mxu0 %v4340
  %5235 = vmatprep.mubr.f32.mxu0 %v4871
  %5236 = vmatmul.mubr.f32.gmra.mxu0 %v4867
  %v5237 = vpop.f32.mrf.mxu0
  %v5238 = vadd.f32 %v4713, %v5237
  %v5239 = vpop.f32.mrf.mxu0
  %5240 = vdwg.mxu0
  %5241 = vmatprep.subr.mxu0 0.0
  %5242 = vmatpush1.msra.mxu0 %v4371
  %5243 = vmatprep.subr.mxu0 0.0
  %5244 = vmatpush1.msra.mxu0 %v4370
  %5245 = vmatprep.subr.mxu0 0.0
  %5246 = vmatpush1.msra.mxu0 %v4369
  %5247 = vmatprep.subr.mxu0 0.0
  %5248 = vmatpush1.msra.mxu0 %v4368
  %5249 = vmatprep.subr.mxu0 0.0
  %5250 = vmatpush1.msra.mxu0 %v4367
  %5251 = vmatprep.subr.mxu0 0.0
  %5252 = vmatpush1.msra.mxu0 %v4366
  %5253 = vmatprep.subr.mxu0 0.0
  %5254 = vmatpush1.msra.mxu0 %v4365
  %5255 = vmatprep.subr.mxu0 0.0
  %5256 = vmatpush1.msra.mxu0 %v4364
  %5257 = vmatprep.subr.mxu0 0.0
  %5258 = vmatpush1.msra.mxu0 %v4363
  %5259 = vmatprep.subr.mxu0 0.0
  %5260 = vmatpush1.msra.mxu0 %v4362
  %5261 = vmatprep.subr.mxu0 0.0
  %5262 = vmatpush1.msra.mxu0 %v4361
  %5263 = vmatprep.subr.mxu0 0.0
  %5264 = vmatpush1.msra.mxu0 %v4360
  %5265 = vmatprep.subr.mxu0 0.0
  %5266 = vmatpush1.msra.mxu0 %v4359
  %5267 = vmatprep.subr.mxu0 0.0
  %5268 = vmatpush1.msra.mxu0 %v4358
  %5269 = vmatprep.subr.mxu0 0.0
  %5270 = vmatpush1.msra.mxu0 %v4357
  %5271 = vmatprep.subr.mxu0 0.0
  %5272 = vmatpush1.msra.mxu0 %v4356
  %5273 = vmatprep.subr.mxu0 0.0
  %5274 = vmatpush2.msra.mxu0 %v4387
  %5275 = vmatprep.subr.mxu0 0.0
  %5276 = vmatpush2.msra.mxu0 %v4386
  %5277 = vmatprep.subr.mxu0 0.0
  %5278 = vmatpush2.msra.mxu0 %v4385
  %5279 = vmatprep.subr.mxu0 0.0
  %5280 = vmatpush2.msra.mxu0 %v4384
  %5281 = vmatprep.subr.mxu0 0.0
  %5282 = vmatpush2.msra.mxu0 %v4383
  %5283 = vmatprep.subr.mxu0 0.0
  %5284 = vmatpush2.msra.mxu0 %v4382
  %5285 = vmatprep.subr.mxu0 0.0
  %5286 = vmatpush2.msra.mxu0 %v4381
  %5287 = vmatprep.subr.mxu0 0.0
  %5288 = vmatpush2.msra.mxu0 %v4380
  %5289 = vmatprep.subr.mxu0 0.0
  %5290 = vmatpush2.msra.mxu0 %v4379
  %5291 = vmatprep.subr.mxu0 0.0
  %5292 = vmatpush2.msra.mxu0 %v4378
  %5293 = vmatprep.subr.mxu0 0.0
  %5294 = vmatpush2.msra.mxu0 %v4377
  %5295 = vmatprep.subr.mxu0 0.0
  %5296 = vmatpush2.msra.mxu0 %v4376
  %5297 = vmatprep.subr.mxu0 0.0
  %5298 = vmatpush2.msra.mxu0 %v4375
  %5299 = vmatprep.subr.mxu0 0.0
  %5300 = vmatpush2.msra.mxu0 %v4374
  %5301 = vmatprep.subr.mxu0 0.0
  %5302 = vmatpush2.msra.mxu0 %v4373
  %5303 = vmatprep.subr.mxu0 0.0
  %5304 = vmatpush2.msra.mxu0 %v4372
  %5305 = vmatprep.mubr.f32.mxu0 %v4872
  %5306 = vmatmul.mubr.f32.gmra.mxu0 %v4868
  %v5307 = vpop.f32.mrf.mxu0
  %v5308 = vadd.f32 %v5238, %v5307
  %v5309 = vpop.f32.mrf.mxu0
  %5310 = vdwg.mxu0
  %5311 = vmatprep.subr.mxu0 0.0
  %5312 = vmatpush1.msra.mxu0 %v4403
  %5313 = vmatprep.subr.mxu0 0.0
  %5314 = vmatpush1.msra.mxu0 %v4402
  %5315 = vmatprep.subr.mxu0 0.0
  %5316 = vmatpush1.msra.mxu0 %v4401
  %5317 = vmatprep.subr.mxu0 0.0
  %5318 = vmatpush1.msra.mxu0 %v4400
  %5319 = vmatprep.subr.mxu0 0.0
  %5320 = vmatpush1.msra.mxu0 %v4399
  %5321 = vmatprep.subr.mxu0 0.0
  %5322 = vmatpush1.msra.mxu0 %v4398
  %5323 = vmatprep.subr.mxu0 0.0
  %5324 = vmatpush1.msra.mxu0 %v4397
  %5325 = vmatprep.subr.mxu0 0.0
  %5326 = vmatpush1.msra.mxu0 %v4396
  %5327 = vmatprep.subr.mxu0 0.0
  %5328 = vmatpush1.msra.mxu0 %v4395
  %5329 = vmatprep.subr.mxu0 0.0
  %5330 = vmatpush1.msra.mxu0 %v4394
  %5331 = vmatprep.subr.mxu0 0.0
  %5332 = vmatpush1.msra.mxu0 %v4393
  %5333 = vmatprep.subr.mxu0 0.0
  %5334 = vmatpush1.msra.mxu0 %v4392
  %5335 = vmatprep.subr.mxu0 0.0
  %5336 = vmatpush1.msra.mxu0 %v4391
  %5337 = vmatprep.subr.mxu0 0.0
  %5338 = vmatpush1.msra.mxu0 %v4390
  %5339 = vmatprep.subr.mxu0 0.0
  %5340 = vmatpush1.msra.mxu0 %v4389
  %5341 = vmatprep.subr.mxu0 0.0
  %5342 = vmatpush1.msra.mxu0 %v4388
  %5343 = vmatprep.subr.mxu0 0.0
  %5344 = vmatpush2.msra.mxu0 %v4419
  %5345 = vmatprep.subr.mxu0 0.0
  %5346 = vmatpush2.msra.mxu0 %v4418
  %5347 = vmatprep.subr.mxu0 0.0
  %5348 = vmatpush2.msra.mxu0 %v4417
  %5349 = vmatprep.subr.mxu0 0.0
  %5350 = vmatpush2.msra.mxu0 %v4416
  %5351 = vmatprep.subr.mxu0 0.0
  %5352 = vmatpush2.msra.mxu0 %v4415
  %5353 = vmatprep.subr.mxu0 0.0
  %5354 = vmatpush2.msra.mxu0 %v4414
  %5355 = vmatprep.subr.mxu0 0.0
  %5356 = vmatpush2.msra.mxu0 %v4413
  %5357 = vmatprep.subr.mxu0 0.0
  %5358 = vmatpush2.msra.mxu0 %v4412
  %5359 = vmatprep.subr.mxu0 0.0
  %5360 = vmatpush2.msra.mxu0 %v4411
  %5361 = vmatprep.subr.mxu0 0.0
  %5362 = vmatpush2.msra.mxu0 %v4410
  %5363 = vmatprep.subr.mxu0 0.0
  %5364 = vmatpush2.msra.mxu0 %v4409
  %5365 = vmatprep.subr.mxu0 0.0
  %5366 = vmatpush2.msra.mxu0 %v4408
  %5367 = vmatprep.subr.mxu0 0.0
  %5368 = vmatpush2.msra.mxu0 %v4407
  %5369 = vmatprep.subr.mxu0 0.0
  %5370 = vmatpush2.msra.mxu0 %v4406
  %5371 = vmatprep.subr.mxu0 0.0
  %5372 = vmatpush2.msra.mxu0 %v4405
  %5373 = vmatprep.subr.mxu0 0.0
  %5374 = vmatpush2.msra.mxu0 %v4404
  %5375 = vmatprep.mubr.f32.mxu0 %v4873
  %5376 = vmatmul.mubr.f32.gmra.mxu0 %v4869
  %v5377 = vpop.f32.mrf.mxu0
  %v5378 = vadd.f32 %v5308, %v5377
  %v5379 = vpop.f32.mrf.mxu0
  %5380 = vdwg.mxu0
  %5381 = vmatprep.subr.mxu0 0.0
  %5382 = vmatpush1.msra.mxu0 %v4435
  %5383 = vmatprep.subr.mxu0 0.0
  %5384 = vmatpush1.msra.mxu0 %v4434
  %5385 = vmatprep.subr.mxu0 0.0
  %5386 = vmatpush1.msra.mxu0 %v4433
  %5387 = vmatprep.subr.mxu0 0.0
  %5388 = vmatpush1.msra.mxu0 %v4432
  %5389 = vmatprep.subr.mxu0 0.0
  %5390 = vmatpush1.msra.mxu0 %v4431
  %5391 = vmatprep.subr.mxu0 0.0
  %5392 = vmatpush1.msra.mxu0 %v4430
  %5393 = vmatprep.subr.mxu0 0.0
  %5394 = vmatpush1.msra.mxu0 %v4429
  %5395 = vmatprep.subr.mxu0 0.0
  %5396 = vmatpush1.msra.mxu0 %v4428
  %5397 = vmatprep.subr.mxu0 0.0
  %5398 = vmatpush1.msra.mxu0 %v4427
  %5399 = vmatprep.subr.mxu0 0.0
  %5400 = vmatpush1.msra.mxu0 %v4426
  %5401 = vmatprep.subr.mxu0 0.0
  %5402 = vmatpush1.msra.mxu0 %v4425
  %5403 = vmatprep.subr.mxu0 0.0
  %5404 = vmatpush1.msra.mxu0 %v4424
  %5405 = vmatprep.subr.mxu0 0.0
  %5406 = vmatpush1.msra.mxu0 %v4423
  %5407 = vmatprep.subr.mxu0 0.0
  %5408 = vmatpush1.msra.mxu0 %v4422
  %5409 = vmatprep.subr.mxu0 0.0
  %5410 = vmatpush1.msra.mxu0 %v4421
  %5411 = vmatprep.subr.mxu0 0.0
  %5412 = vmatpush1.msra.mxu0 %v4420
  %5413 = vmatprep.subr.mxu0 0.0
  %5414 = vmatpush2.msra.mxu0 %v4451
  %5415 = vmatprep.subr.mxu0 0.0
  %5416 = vmatpush2.msra.mxu0 %v4450
  %5417 = vmatprep.subr.mxu0 0.0
  %5418 = vmatpush2.msra.mxu0 %v4449
  %5419 = vmatprep.subr.mxu0 0.0
  %5420 = vmatpush2.msra.mxu0 %v4448
  %5421 = vmatprep.subr.mxu0 0.0
  %5422 = vmatpush2.msra.mxu0 %v4447
  %5423 = vmatprep.subr.mxu0 0.0
  %5424 = vmatpush2.msra.mxu0 %v4446
  %5425 = vmatprep.subr.mxu0 0.0
  %5426 = vmatpush2.msra.mxu0 %v4445
  %5427 = vmatprep.subr.mxu0 0.0
  %5428 = vmatpush2.msra.mxu0 %v4444
  %5429 = vmatprep.subr.mxu0 0.0
  %5430 = vmatpush2.msra.mxu0 %v4443
  %5431 = vmatprep.subr.mxu0 0.0
  %5432 = vmatpush2.msra.mxu0 %v4442
  %5433 = vmatprep.subr.mxu0 0.0
  %5434 = vmatpush2.msra.mxu0 %v4441
  %5435 = vmatprep.subr.mxu0 0.0
  %5436 = vmatpush2.msra.mxu0 %v4440
  %5437 = vmatprep.subr.mxu0 0.0
  %5438 = vmatpush2.msra.mxu0 %v4439
  %5439 = vmatprep.subr.mxu0 0.0
  %5440 = vmatpush2.msra.mxu0 %v4438
  %5441 = vmatprep.subr.mxu0 0.0
  %5442 = vmatpush2.msra.mxu0 %v4437
  %5443 = vmatprep.subr.mxu0 0.0
  %5444 = vmatpush2.msra.mxu0 %v4436
  %5445 = vmatprep.mubr.f32.mxu0 %v4874
  %5446 = vmatmul.mubr.f32.gmra.mxu0 %v4870
  %v5447 = vpop.f32.mrf.mxu0
  %v5448 = vadd.f32 %v5378, %v5447
  %v5449 = vpop.f32.mrf.mxu0
  %5450 = vdwg.mxu0
  %5451 = vmatprep.subr.mxu0 0.0
  %5452 = vmatpush1.msra.mxu0 %v4467
  %5453 = vmatprep.subr.mxu0 0.0
  %5454 = vmatpush1.msra.mxu0 %v4466
  %5455 = vmatprep.subr.mxu0 0.0
  %5456 = vmatpush1.msra.mxu0 %v4465
  %5457 = vmatprep.subr.mxu0 0.0
  %5458 = vmatpush1.msra.mxu0 %v4464
  %5459 = vmatprep.subr.mxu0 0.0
  %5460 = vmatpush1.msra.mxu0 %v4463
  %5461 = vmatprep.subr.mxu0 0.0
  %5462 = vmatpush1.msra.mxu0 %v4462
  %5463 = vmatprep.subr.mxu0 0.0
  %5464 = vmatpush1.msra.mxu0 %v4461
  %5465 = vmatprep.subr.mxu0 0.0
  %5466 = vmatpush1.msra.mxu0 %v4460
  %5467 = vmatprep.subr.mxu0 0.0
  %5468 = vmatpush1.msra.mxu0 %v4459
  %5469 = vmatprep.subr.mxu0 0.0
  %5470 = vmatpush1.msra.mxu0 %v4458
  %5471 = vmatprep.subr.mxu0 0.0
  %5472 = vmatpush1.msra.mxu0 %v4457
  %5473 = vmatprep.subr.mxu0 0.0
  %5474 = vmatpush1.msra.mxu0 %v4456
  %5475 = vmatprep.subr.mxu0 0.0
  %5476 = vmatpush1.msra.mxu0 %v4455
  %5477 = vmatprep.subr.mxu0 0.0
  %5478 = vmatpush1.msra.mxu0 %v4454
  %5479 = vmatprep.subr.mxu0 0.0
  %5480 = vmatpush1.msra.mxu0 %v4453
  %5481 = vmatprep.subr.mxu0 0.0
  %5482 = vmatpush1.msra.mxu0 %v4452
  %5483 = vmatprep.subr.mxu0 0.0
  %5484 = vmatpush2.msra.mxu0 %v4483
  %5485 = vmatprep.subr.mxu0 0.0
  %5486 = vmatpush2.msra.mxu0 %v4482
  %5487 = vmatprep.subr.mxu0 0.0
  %5488 = vmatpush2.msra.mxu0 %v4481
  %5489 = vmatprep.subr.mxu0 0.0
  %5490 = vmatpush2.msra.mxu0 %v4480
  %5491 = vmatprep.subr.mxu0 0.0
  %5492 = vmatpush2.msra.mxu0 %v4479
  %5493 = vmatprep.subr.mxu0 0.0
  %5494 = vmatpush2.msra.mxu0 %v4478
  %5495 = vmatprep.subr.mxu0 0.0
  %5496 = vmatpush2.msra.mxu0 %v4477
  %5497 = vmatprep.subr.mxu0 0.0
  %5498 = vmatpush2.msra.mxu0 %v4476
  %5499 = vmatprep.subr.mxu0 0.0
  %5500 = vmatpush2.msra.mxu0 %v4475
  %5501 = vmatprep.subr.mxu0 0.0
  %5502 = vmatpush2.msra.mxu0 %v4474
  %5503 = vmatprep.subr.mxu0 0.0
  %5504 = vmatpush2.msra.mxu0 %v4473
  %5505 = vmatprep.subr.mxu0 0.0
  %5506 = vmatpush2.msra.mxu0 %v4472
  %5507 = vmatprep.subr.mxu0 0.0
  %5508 = vmatpush2.msra.mxu0 %v4471
  %5509 = vmatprep.subr.mxu0 0.0
  %5510 = vmatpush2.msra.mxu0 %v4470
  %5511 = vmatprep.subr.mxu0 0.0
  %5512 = vmatpush2.msra.mxu0 %v4469
  %5513 = vmatprep.subr.mxu0 0.0
  %5514 = vmatpush2.msra.mxu0 %v4468
  %5515 = vmatprep.mubr.f32.mxu0 %v5007
  %5516 = vmatmul.mubr.f32.gmra.mxu0 %v5003
  %v5517 = vpop.f32.mrf.mxu0
  %v5518 = vadd.f32 %v5448, %v5517
  %v5519 = vpop.f32.mrf.mxu0
  %5520 = vdwg.mxu0
  %5521 = vmatprep.subr.mxu0 0.0
  %5522 = vmatpush1.msra.mxu0 %v4499
  %5523 = vmatprep.subr.mxu0 0.0
  %5524 = vmatpush1.msra.mxu0 %v4498
  %5525 = vmatprep.subr.mxu0 0.0
  %5526 = vmatpush1.msra.mxu0 %v4497
  %5527 = vmatprep.subr.mxu0 0.0
  %5528 = vmatpush1.msra.mxu0 %v4496
  %5529 = vmatprep.subr.mxu0 0.0
  %5530 = vmatpush1.msra.mxu0 %v4495
  %5531 = vmatprep.subr.mxu0 0.0
  %5532 = vmatpush1.msra.mxu0 %v4494
  %5533 = vmatprep.subr.mxu0 0.0
  %5534 = vmatpush1.msra.mxu0 %v4493
  %5535 = vmatprep.subr.mxu0 0.0
  %5536 = vmatpush1.msra.mxu0 %v4492
  %5537 = vmatprep.subr.mxu0 0.0
  %5538 = vmatpush1.msra.mxu0 %v4491
  %5539 = vmatprep.subr.mxu0 0.0
  %5540 = vmatpush1.msra.mxu0 %v4490
  %5541 = vmatprep.subr.mxu0 0.0
  %5542 = vmatpush1.msra.mxu0 %v4489
  %5543 = vmatprep.subr.mxu0 0.0
  %5544 = vmatpush1.msra.mxu0 %v4488
  %5545 = vmatprep.subr.mxu0 0.0
  %5546 = vmatpush1.msra.mxu0 %v4487
  %5547 = vmatprep.subr.mxu0 0.0
  %5548 = vmatpush1.msra.mxu0 %v4486
  %5549 = vmatprep.subr.mxu0 0.0
  %5550 = vmatpush1.msra.mxu0 %v4485
  %5551 = vmatprep.subr.mxu0 0.0
  %5552 = vmatpush1.msra.mxu0 %v4484
  %5553 = vmatprep.subr.mxu0 0.0
  %5554 = vmatpush2.msra.mxu0 %v4515
  %5555 = vmatprep.subr.mxu0 0.0
  %5556 = vmatpush2.msra.mxu0 %v4514
  %5557 = vmatprep.subr.mxu0 0.0
  %5558 = vmatpush2.msra.mxu0 %v4513
  %5559 = vmatprep.subr.mxu0 0.0
  %5560 = vmatpush2.msra.mxu0 %v4512
  %5561 = vmatprep.subr.mxu0 0.0
  %5562 = vmatpush2.msra.mxu0 %v4511
  %5563 = vmatprep.subr.mxu0 0.0
  %5564 = vmatpush2.msra.mxu0 %v4510
  %5565 = vmatprep.subr.mxu0 0.0
  %5566 = vmatpush2.msra.mxu0 %v4509
  %5567 = vmatprep.subr.mxu0 0.0
  %5568 = vmatpush2.msra.mxu0 %v4508
  %5569 = vmatprep.subr.mxu0 0.0
  %5570 = vmatpush2.msra.mxu0 %v4507
  %5571 = vmatprep.subr.mxu0 0.0
  %5572 = vmatpush2.msra.mxu0 %v4506
  %5573 = vmatprep.subr.mxu0 0.0
  %5574 = vmatpush2.msra.mxu0 %v4505
  %5575 = vmatprep.subr.mxu0 0.0
  %5576 = vmatpush2.msra.mxu0 %v4504
  %5577 = vmatprep.subr.mxu0 0.0
  %5578 = vmatpush2.msra.mxu0 %v4503
  %5579 = vmatprep.subr.mxu0 0.0
  %5580 = vmatpush2.msra.mxu0 %v4502
  %5581 = vmatprep.subr.mxu0 0.0
  %5582 = vmatpush2.msra.mxu0 %v4501
  %5583 = vmatprep.subr.mxu0 0.0
  %5584 = vmatpush2.msra.mxu0 %v4500
  %5585 = vmatprep.mubr.f32.mxu0 %v5008
  %5586 = vmatmul.mubr.f32.gmra.mxu0 %v5004
  %v5587 = vpop.f32.mrf.mxu0
  %v5588 = vadd.f32 %v5518, %v5587
  %v5589 = vpop.f32.mrf.mxu0
  %5590 = vdwg.mxu0
  %5591 = vmatprep.subr.mxu0 0.0
  %5592 = vmatpush1.msra.mxu0 %v4531
  %5593 = vmatprep.subr.mxu0 0.0
  %5594 = vmatpush1.msra.mxu0 %v4530
  %5595 = vmatprep.subr.mxu0 0.0
  %5596 = vmatpush1.msra.mxu0 %v4529
  %5597 = vmatprep.subr.mxu0 0.0
  %5598 = vmatpush1.msra.mxu0 %v4528
  %5599 = vmatprep.subr.mxu0 0.0
  %5600 = vmatpush1.msra.mxu0 %v4527
  %5601 = vmatprep.subr.mxu0 0.0
  %5602 = vmatpush1.msra.mxu0 %v4526
  %5603 = vmatprep.subr.mxu0 0.0
  %5604 = vmatpush1.msra.mxu0 %v4525
  %5605 = vmatprep.subr.mxu0 0.0
  %5606 = vmatpush1.msra.mxu0 %v4524
  %5607 = vmatprep.subr.mxu0 0.0
  %5608 = vmatpush1.msra.mxu0 %v4523
  %5609 = vmatprep.subr.mxu0 0.0
  %5610 = vmatpush1.msra.mxu0 %v4522
  %5611 = vmatprep.subr.mxu0 0.0
  %5612 = vmatpush1.msra.mxu0 %v4521
  %5613 = vmatprep.subr.mxu0 0.0
  %5614 = vmatpush1.msra.mxu0 %v4520
  %5615 = vmatprep.subr.mxu0 0.0
  %5616 = vmatpush1.msra.mxu0 %v4519
  %5617 = vmatprep.subr.mxu0 0.0
  %5618 = vmatpush1.msra.mxu0 %v4518
  %5619 = vmatprep.subr.mxu0 0.0
  %5620 = vmatpush1.msra.mxu0 %v4517
  %5621 = vmatprep.subr.mxu0 0.0
  %5622 = vmatpush1.msra.mxu0 %v4516
  %5623 = vmatprep.subr.mxu0 0.0
  %5624 = vmatpush2.msra.mxu0 %v4547
  %5625 = vmatprep.subr.mxu0 0.0
  %5626 = vmatpush2.msra.mxu0 %v4546
  %5627 = vmatprep.subr.mxu0 0.0
  %5628 = vmatpush2.msra.mxu0 %v4545
  %5629 = vmatprep.subr.mxu0 0.0
  %5630 = vmatpush2.msra.mxu0 %v4544
  %5631 = vmatprep.subr.mxu0 0.0
  %5632 = vmatpush2.msra.mxu0 %v4543
  %5633 = vmatprep.subr.mxu0 0.0
  %5634 = vmatpush2.msra.mxu0 %v4542
  %5635 = vmatprep.subr.mxu0 0.0
  %5636 = vmatpush2.msra.mxu0 %v4541
  %5637 = vmatprep.subr.mxu0 0.0
  %5638 = vmatpush2.msra.mxu0 %v4540
  %5639 = vmatprep.subr.mxu0 0.0
  %5640 = vmatpush2.msra.mxu0 %v4539
  %5641 = vmatprep.subr.mxu0 0.0
  %5642 = vmatpush2.msra.mxu0 %v4538
  %5643 = vmatprep.subr.mxu0 0.0
  %5644 = vmatpush2.msra.mxu0 %v4537
  %5645 = vmatprep.subr.mxu0 0.0
  %5646 = vmatpush2.msra.mxu0 %v4536
  %5647 = vmatprep.subr.mxu0 0.0
  %5648 = vmatpush2.msra.mxu0 %v4535
  %5649 = vmatprep.subr.mxu0 0.0
  %5650 = vmatpush2.msra.mxu0 %v4534
  %5651 = vmatprep.subr.mxu0 0.0
  %5652 = vmatpush2.msra.mxu0 %v4533
  %5653 = vmatprep.subr.mxu0 0.0
  %5654 = vmatpush2.msra.mxu0 %v4532
  %5655 = vmatprep.mubr.f32.mxu0 %v5009
  %5656 = vmatmul.mubr.f32.gmra.mxu0 %v5005
  %v5657 = vpop.f32.mrf.mxu0
  %v5658 = vadd.f32 %v5588, %v5657
  %v5659 = vpop.f32.mrf.mxu0
  %5660 = vdwg.mxu0
  %5661 = vmatprep.subr.mxu0 0.0
  %5662 = vmatpush1.msra.mxu0 %v4563
  %5663 = vmatprep.subr.mxu0 0.0
  %5664 = vmatpush1.msra.mxu0 %v4562
  %5665 = vmatprep.subr.mxu0 0.0
  %5666 = vmatpush1.msra.mxu0 %v4561
  %5667 = vmatprep.subr.mxu0 0.0
  %5668 = vmatpush1.msra.mxu0 %v4560
  %5669 = vmatprep.subr.mxu0 0.0
  %5670 = vmatpush1.msra.mxu0 %v4559
  %5671 = vmatprep.subr.mxu0 0.0
  %5672 = vmatpush1.msra.mxu0 %v4558
  %5673 = vmatprep.subr.mxu0 0.0
  %5674 = vmatpush1.msra.mxu0 %v4557
  %5675 = vmatprep.subr.mxu0 0.0
  %5676 = vmatpush1.msra.mxu0 %v4556
  %5677 = vmatprep.subr.mxu0 0.0
  %5678 = vmatpush1.msra.mxu0 %v4555
  %5679 = vmatprep.subr.mxu0 0.0
  %5680 = vmatpush1.msra.mxu0 %v4554
  %5681 = vmatprep.subr.mxu0 0.0
  %5682 = vmatpush1.msra.mxu0 %v4553
  %5683 = vmatprep.subr.mxu0 0.0
  %5684 = vmatpush1.msra.mxu0 %v4552
  %5685 = vmatprep.subr.mxu0 0.0
  %5686 = vmatpush1.msra.mxu0 %v4551
  %5687 = vmatprep.subr.mxu0 0.0
  %5688 = vmatpush1.msra.mxu0 %v4550
  %5689 = vmatprep.subr.mxu0 0.0
  %5690 = vmatpush1.msra.mxu0 %v4549
  %5691 = vmatprep.subr.mxu0 0.0
  %5692 = vmatpush1.msra.mxu0 %v4548
  %5693 = vmatprep.subr.mxu0 0.0
  %5694 = vmatpush2.msra.mxu0 %v4579
  %5695 = vmatprep.subr.mxu0 0.0
  %5696 = vmatpush2.msra.mxu0 %v4578
  %5697 = vmatprep.subr.mxu0 0.0
  %5698 = vmatpush2.msra.mxu0 %v4577
  %5699 = vmatprep.subr.mxu0 0.0
  %5700 = vmatpush2.msra.mxu0 %v4576
  %5701 = vmatprep.subr.mxu0 0.0
  %5702 = vmatpush2.msra.mxu0 %v4575
  %5703 = vmatprep.subr.mxu0 0.0
  %5704 = vmatpush2.msra.mxu0 %v4574
  %5705 = vmatprep.subr.mxu0 0.0
  %5706 = vmatpush2.msra.mxu0 %v4573
  %5707 = vmatprep.subr.mxu0 0.0
  %5708 = vmatpush2.msra.mxu0 %v4572
  %5709 = vmatprep.subr.mxu0 0.0
  %5710 = vmatpush2.msra.mxu0 %v4571
  %5711 = vmatprep.subr.mxu0 0.0
  %5712 = vmatpush2.msra.mxu0 %v4570
  %5713 = vmatprep.subr.mxu0 0.0
  %5714 = vmatpush2.msra.mxu0 %v4569
  %5715 = vmatprep.subr.mxu0 0.0
  %5716 = vmatpush2.msra.mxu0 %v4568
  %5717 = vmatprep.subr.mxu0 0.0
  %5718 = vmatpush2.msra.mxu0 %v4567
  %5719 = vmatprep.subr.mxu0 0.0
  %5720 = vmatpush2.msra.mxu0 %v4566
  %5721 = vmatprep.subr.mxu0 0.0
  %5722 = vmatpush2.msra.mxu0 %v4565
  %5723 = vmatprep.subr.mxu0 0.0
  %5724 = vmatpush2.msra.mxu0 %v4564
  %5725 = vmatprep.mubr.f32.mxu0 %v5010
  %5726 = vmatmul.mubr.f32.gmra.mxu0 %v5006
  %v5727 = vpop.f32.mrf.mxu0
  %v5728 = vadd.f32 %v5658, %v5727
  %v5729 = vpop.f32.mrf.mxu0
  %5730 = vdwg.mxu0
  %5731 = vmatprep.subr.mxu0 0.0
  %5732 = vmatpush1.msra.mxu0 %v4595
  %5733 = vmatprep.subr.mxu0 0.0
  %5734 = vmatpush1.msra.mxu0 %v4594
  %5735 = vmatprep.subr.mxu0 0.0
  %5736 = vmatpush1.msra.mxu0 %v4593
  %5737 = vmatprep.subr.mxu0 0.0
  %5738 = vmatpush1.msra.mxu0 %v4592
  %5739 = vmatprep.subr.mxu0 0.0
  %5740 = vmatpush1.msra.mxu0 %v4591
  %5741 = vmatprep.subr.mxu0 0.0
  %5742 = vmatpush1.msra.mxu0 %v4590
  %5743 = vmatprep.subr.mxu0 0.0
  %5744 = vmatpush1.msra.mxu0 %v4589
  %5745 = vmatprep.subr.mxu0 0.0
  %5746 = vmatpush1.msra.mxu0 %v4588
  %5747 = vmatprep.subr.mxu0 0.0
  %5748 = vmatpush1.msra.mxu0 %v4587
  %5749 = vmatprep.subr.mxu0 0.0
  %5750 = vmatpush1.msra.mxu0 %v4586
  %5751 = vmatprep.subr.mxu0 0.0
  %5752 = vmatpush1.msra.mxu0 %v4585
  %5753 = vmatprep.subr.mxu0 0.0
  %5754 = vmatpush1.msra.mxu0 %v4584
  %5755 = vmatprep.subr.mxu0 0.0
  %5756 = vmatpush1.msra.mxu0 %v4583
  %5757 = vmatprep.subr.mxu0 0.0
  %5758 = vmatpush1.msra.mxu0 %v4582
  %5759 = vmatprep.subr.mxu0 0.0
  %5760 = vmatpush1.msra.mxu0 %v4581
  %5761 = vmatprep.subr.mxu0 0.0
  %5762 = vmatpush1.msra.mxu0 %v4580
  %5763 = vmatprep.subr.mxu0 0.0
  %5764 = vmatpush2.msra.mxu0 %v4611
  %5765 = vmatprep.subr.mxu0 0.0
  %5766 = vmatpush2.msra.mxu0 %v4610
  %5767 = vmatprep.subr.mxu0 0.0
  %5768 = vmatpush2.msra.mxu0 %v4609
  %5769 = vmatprep.subr.mxu0 0.0
  %5770 = vmatpush2.msra.mxu0 %v4608
  %5771 = vmatprep.subr.mxu0 0.0
  %5772 = vmatpush2.msra.mxu0 %v4607
  %5773 = vmatprep.subr.mxu0 0.0
  %5774 = vmatpush2.msra.mxu0 %v4606
  %5775 = vmatprep.subr.mxu0 0.0
  %5776 = vmatpush2.msra.mxu0 %v4605
  %5777 = vmatprep.subr.mxu0 0.0
  %5778 = vmatpush2.msra.mxu0 %v4604
  %5779 = vmatprep.subr.mxu0 0.0
  %5780 = vmatpush2.msra.mxu0 %v4603
  %5781 = vmatprep.subr.mxu0 0.0
  %5782 = vmatpush2.msra.mxu0 %v4602
  %5783 = vmatprep.subr.mxu0 0.0
  %5784 = vmatpush2.msra.mxu0 %v4601
  %5785 = vmatprep.subr.mxu0 0.0
  %5786 = vmatpush2.msra.mxu0 %v4600
  %5787 = vmatprep.subr.mxu0 0.0
  %5788 = vmatpush2.msra.mxu0 %v4599
  %5789 = vmatprep.subr.mxu0 0.0
  %5790 = vmatpush2.msra.mxu0 %v4598
  %5791 = vmatprep.subr.mxu0 0.0
  %5792 = vmatpush2.msra.mxu0 %v4597
  %5793 = vmatprep.subr.mxu0 0.0
  %5794 = vmatpush2.msra.mxu0 %v4596
  %5795 = vmatprep.mubr.f32.mxu0 %v5143
  %5796 = vmatmul.mubr.f32.gmra.mxu0 %v5139
  %v5797 = vpop.f32.mrf.mxu0
  %v5798 = vadd.f32 %v5728, %v5797
  %v5799 = vpop.f32.mrf.mxu0
  %5800 = vdwg.mxu0
  %5801 = vmatprep.subr.mxu0 0.0
  %5802 = vmatpush1.msra.mxu0 %v4627
  %5803 = vmatprep.subr.mxu0 0.0
  %5804 = vmatpush1.msra.mxu0 %v4626
  %5805 = vmatprep.subr.mxu0 0.0
  %5806 = vmatpush1.msra.mxu0 %v4625
  %5807 = vmatprep.subr.mxu0 0.0
  %5808 = vmatpush1.msra.mxu0 %v4624
  %5809 = vmatprep.subr.mxu0 0.0
  %5810 = vmatpush1.msra.mxu0 %v4623
  %5811 = vmatprep.subr.mxu0 0.0
  %5812 = vmatpush1.msra.mxu0 %v4622
  %5813 = vmatprep.subr.mxu0 0.0
  %5814 = vmatpush1.msra.mxu0 %v4621
  %5815 = vmatprep.subr.mxu0 0.0
  %5816 = vmatpush1.msra.mxu0 %v4620
  %5817 = vmatprep.subr.mxu0 0.0
  %5818 = vmatpush1.msra.mxu0 %v4619
  %5819 = vmatprep.subr.mxu0 0.0
  %5820 = vmatpush1.msra.mxu0 %v4618
  %5821 = vmatprep.subr.mxu0 0.0
  %5822 = vmatpush1.msra.mxu0 %v4617
  %5823 = vmatprep.subr.mxu0 0.0
  %5824 = vmatpush1.msra.mxu0 %v4616
  %5825 = vmatprep.subr.mxu0 0.0
  %5826 = vmatpush1.msra.mxu0 %v4615
  %5827 = vmatprep.subr.mxu0 0.0
  %5828 = vmatpush1.msra.mxu0 %v4614
  %5829 = vmatprep.subr.mxu0 0.0
  %5830 = vmatpush1.msra.mxu0 %v4613
  %5831 = vmatprep.subr.mxu0 0.0
  %5832 = vmatpush1.msra.mxu0 %v4612
  %5833 = vmatprep.subr.mxu0 0.0
  %5834 = vmatpush2.msra.mxu0 %v4643
  %5835 = vmatprep.subr.mxu0 0.0
  %5836 = vmatpush2.msra.mxu0 %v4642
  %5837 = vmatprep.subr.mxu0 0.0
  %5838 = vmatpush2.msra.mxu0 %v4641
  %5839 = vmatprep.subr.mxu0 0.0
  %5840 = vmatpush2.msra.mxu0 %v4640
  %5841 = vmatprep.subr.mxu0 0.0
  %5842 = vmatpush2.msra.mxu0 %v4639
  %5843 = vmatprep.subr.mxu0 0.0
  %5844 = vmatpush2.msra.mxu0 %v4638
  %5845 = vmatprep.subr.mxu0 0.0
  %5846 = vmatpush2.msra.mxu0 %v4637
  %5847 = vmatprep.subr.mxu0 0.0
  %5848 = vmatpush2.msra.mxu0 %v4636
  %5849 = vmatprep.subr.mxu0 0.0
  %5850 = vmatpush2.msra.mxu0 %v4635
  %5851 = vmatprep.subr.mxu0 0.0
  %5852 = vmatpush2.msra.mxu0 %v4634
  %5853 = vmatprep.subr.mxu0 0.0
  %5854 = vmatpush2.msra.mxu0 %v4633
  %5855 = vmatprep.subr.mxu0 0.0
  %5856 = vmatpush2.msra.mxu0 %v4632
  %5857 = vmatprep.subr.mxu0 0.0
  %5858 = vmatpush2.msra.mxu0 %v4631
  %5859 = vmatprep.subr.mxu0 0.0
  %5860 = vmatpush2.msra.mxu0 %v4630
  %5861 = vmatprep.subr.mxu0 0.0
  %5862 = vmatpush2.msra.mxu0 %v4629
  %5863 = vmatprep.subr.mxu0 0.0
  %5864 = vmatpush2.msra.mxu0 %v4628
  %5865 = vmatprep.mubr.f32.mxu0 %v5144
  %5866 = vmatmul.mubr.f32.gmra.mxu0 %v5140
  %v5867 = vpop.f32.mrf.mxu0
  %v5868 = vadd.f32 %v5798, %v5867
  %v5869 = vpop.f32.mrf.mxu0
  %5870 = vdwg.mxu0
  %5871 = vmatprep.subr.mxu0 0.0
  %5872 = vmatpush1.msra.mxu0 %v4659
  %5873 = vmatprep.subr.mxu0 0.0
  %5874 = vmatpush1.msra.mxu0 %v4658
  %5875 = vmatprep.subr.mxu0 0.0
  %5876 = vmatpush1.msra.mxu0 %v4657
  %5877 = vmatprep.subr.mxu0 0.0
  %5878 = vmatpush1.msra.mxu0 %v4656
  %5879 = vmatprep.subr.mxu0 0.0
  %5880 = vmatpush1.msra.mxu0 %v4655
  %5881 = vmatprep.subr.mxu0 0.0
  %5882 = vmatpush1.msra.mxu0 %v4654
  %5883 = vmatprep.subr.mxu0 0.0
  %5884 = vmatpush1.msra.mxu0 %v4653
  %5885 = vmatprep.subr.mxu0 0.0
  %5886 = vmatpush1.msra.mxu0 %v4652
  %5887 = vmatprep.subr.mxu0 0.0
  %5888 = vmatpush1.msra.mxu0 %v4651
  %5889 = vmatprep.subr.mxu0 0.0
  %5890 = vmatpush1.msra.mxu0 %v4650
  %5891 = vmatprep.subr.mxu0 0.0
  %5892 = vmatpush1.msra.mxu0 %v4649
  %5893 = vmatprep.subr.mxu0 0.0
  %5894 = vmatpush1.msra.mxu0 %v4648
  %5895 = vmatprep.subr.mxu0 0.0
  %5896 = vmatpush1.msra.mxu0 %v4647
  %5897 = vmatprep.subr.mxu0 0.0
  %5898 = vmatpush1.msra.mxu0 %v4646
  %5899 = vmatprep.subr.mxu0 0.0
  %5900 = vmatpush1.msra.mxu0 %v4645
  %5901 = vmatprep.subr.mxu0 0.0
  %5902 = vmatpush1.msra.mxu0 %v4644
  %5903 = vmatprep.subr.mxu0 0.0
  %5904 = vmatpush2.msra.mxu0 %v4675
  %5905 = vmatprep.subr.mxu0 0.0
  %5906 = vmatpush2.msra.mxu0 %v4674
  %5907 = vmatprep.subr.mxu0 0.0
  %5908 = vmatpush2.msra.mxu0 %v4673
  %5909 = vmatprep.subr.mxu0 0.0
  %5910 = vmatpush2.msra.mxu0 %v4672
  %5911 = vmatprep.subr.mxu0 0.0
  %5912 = vmatpush2.msra.mxu0 %v4671
  %5913 = vmatprep.subr.mxu0 0.0
  %5914 = vmatpush2.msra.mxu0 %v4670
  %5915 = vmatprep.subr.mxu0 0.0
  %5916 = vmatpush2.msra.mxu0 %v4669
  %5917 = vmatprep.subr.mxu0 0.0
  %5918 = vmatpush2.msra.mxu0 %v4668
  %5919 = vmatprep.subr.mxu0 0.0
  %5920 = vmatpush2.msra.mxu0 %v4667
  %5921 = vmatprep.subr.mxu0 0.0
  %5922 = vmatpush2.msra.mxu0 %v4666
  %5923 = vmatprep.subr.mxu0 0.0
  %5924 = vmatpush2.msra.mxu0 %v4665
  %5925 = vmatprep.subr.mxu0 0.0
  %5926 = vmatpush2.msra.mxu0 %v4664
  %5927 = vmatprep.subr.mxu0 0.0
  %5928 = vmatpush2.msra.mxu0 %v4663
  %5929 = vmatprep.subr.mxu0 0.0
  %5930 = vmatpush2.msra.mxu0 %v4662
  %5931 = vmatprep.subr.mxu0 0.0
  %5932 = vmatpush2.msra.mxu0 %v4661
  %5933 = vmatprep.subr.mxu0 0.0
  %5934 = vmatpush2.msra.mxu0 %v4660
  %5935 = vmatprep.mubr.f32.mxu0 %v5145
  %5936 = vmatmul.mubr.f32.gmra.mxu0 %v5141
  %v5937 = vpop.f32.mrf.mxu0
  %v5938 = vadd.f32 %v5868, %v5937
  %v5939 = vpop.f32.mrf.mxu0
  %5940 = vdwg.mxu0
  %5941 = vmatprep.subr.mxu0 0.0
  %5942 = vmatpush1.msra.mxu0 %v4691
  %5943 = vmatprep.subr.mxu0 0.0
  %5944 = vmatpush1.msra.mxu0 %v4690
  %5945 = vmatprep.subr.mxu0 0.0
  %5946 = vmatpush1.msra.mxu0 %v4689
  %5947 = vmatprep.subr.mxu0 0.0
  %5948 = vmatpush1.msra.mxu0 %v4688
  %5949 = vmatprep.subr.mxu0 0.0
  %5950 = vmatpush1.msra.mxu0 %v4687
  %5951 = vmatprep.subr.mxu0 0.0
  %5952 = vmatpush1.msra.mxu0 %v4686
  %5953 = vmatprep.subr.mxu0 0.0
  %5954 = vmatpush1.msra.mxu0 %v4685
  %5955 = vmatprep.subr.mxu0 0.0
  %5956 = vmatpush1.msra.mxu0 %v4684
  %5957 = vmatprep.subr.mxu0 0.0
  %5958 = vmatpush1.msra.mxu0 %v4683
  %5959 = vmatprep.subr.mxu0 0.0
  %5960 = vmatpush1.msra.mxu0 %v4682
  %5961 = vmatprep.subr.mxu0 0.0
  %5962 = vmatpush1.msra.mxu0 %v4681
  %5963 = vmatprep.subr.mxu0 0.0
  %5964 = vmatpush1.msra.mxu0 %v4680
  %5965 = vmatprep.subr.mxu0 0.0
  %5966 = vmatpush1.msra.mxu0 %v4679
  %5967 = vmatprep.subr.mxu0 0.0
  %5968 = vmatpush1.msra.mxu0 %v4678
  %5969 = vmatprep.subr.mxu0 0.0
  %5970 = vmatpush1.msra.mxu0 %v4677
  %5971 = vmatprep.subr.mxu0 0.0
  %5972 = vmatpush1.msra.mxu0 %v4676
  %5973 = vmatprep.subr.mxu0 0.0
  %5974 = vmatpush2.msra.mxu0 %v4707
  %5975 = vmatprep.subr.mxu0 0.0
  %5976 = vmatpush2.msra.mxu0 %v4706
  %5977 = vmatprep.subr.mxu0 0.0
  %5978 = vmatpush2.msra.mxu0 %v4705
  %5979 = vmatprep.subr.mxu0 0.0
  %5980 = vmatpush2.msra.mxu0 %v4704
  %5981 = vmatprep.subr.mxu0 0.0
  %5982 = vmatpush2.msra.mxu0 %v4703
  %5983 = vmatprep.subr.mxu0 0.0
  %5984 = vmatpush2.msra.mxu0 %v4702
  %5985 = vmatprep.subr.mxu0 0.0
  %5986 = vmatpush2.msra.mxu0 %v4701
  %5987 = vmatprep.subr.mxu0 0.0
  %5988 = vmatpush2.msra.mxu0 %v4700
  %5989 = vmatprep.subr.mxu0 0.0
  %5990 = vmatpush2.msra.mxu0 %v4699
  %5991 = vmatprep.subr.mxu0 0.0
  %5992 = vmatpush2.msra.mxu0 %v4698
  %5993 = vmatprep.subr.mxu0 0.0
  %5994 = vmatpush2.msra.mxu0 %v4697
  %5995 = vmatprep.subr.mxu0 0.0
  %5996 = vmatpush2.msra.mxu0 %v4696
  %5997 = vmatprep.subr.mxu0 0.0
  %5998 = vmatpush2.msra.mxu0 %v4695
  %5999 = vmatprep.subr.mxu0 0.0
  %6000 = vmatpush2.msra.mxu0 %v4694
  %6001 = vmatprep.subr.mxu0 0.0
  %6002 = vmatpush2.msra.mxu0 %v4693
  %6003 = vmatprep.subr.mxu0 0.0
  %6004 = vmatpush2.msra.mxu0 %v4692
  %6005 = vmatprep.mubr.f32.mxu0 %v5146
  %6006 = vmatmul.mubr.f32.gmra.mxu0 %v5142
  %v6007 = vpop.f32.mrf.mxu0
  %v6008 = vadd.f32 %v5938, %v6007
  %v6009 = vpop.f32.mrf.mxu0
  %6010 = vdwg.mxu0
  %v6011 = vmax.f32 %v6008, 0.0
  %v6012 = vld [vmem:[%s7] sm:$0xff]
  %v6013 = vld [vmem:[%s7 + $0x8] sm:$0xff]
  %v6014 = vld [vmem:[%s7 + $0x10] sm:$0xff]
  %v6015 = vld [vmem:[%s7 + $0x18] sm:$0xff]
  %v6016 = vld [vmem:[%s7 + $0x20] sm:$0xff]
  %v6017 = vld [vmem:[%s7 + $0x28] sm:$0xff]
  %v6018 = vld [vmem:[%s7 + $0x30] sm:$0xff]
  %v6019 = vld [vmem:[%s7 + $0x38] sm:$0xff]
  %v6020 = vld [vmem:[%s8] sm:$0x1]
  %v6022 = vlaneseq
  %v6023 = vshrl.u32 %v6022, 7
  %v6024 = vsub.s32 0, %v6023
  %v6025 = vrot.slane %v6020, %v6024
  %v6028 = vsel %vm3466, %v6011, 0
  %6030 = vmatprep.subr.mxu0 0.0
  %6031 = vmatpush1.msra.mxu0 0.0
  %6032 = vmatprep.subr.mxu0 0.0
  %6033 = vmatpush1.msra.mxu0 0.0
  %6034 = vmatprep.subr.mxu0 0.0
  %6035 = vmatpush1.msra.mxu0 0.0
  %6036 = vmatprep.subr.mxu0 0.0
  %6037 = vmatpush1.msra.mxu0 0.0
  %6038 = vmatprep.subr.mxu0 0.0
  %6039 = vmatpush1.msra.mxu0 0.0
  %6040 = vmatprep.subr.mxu0 0.0
  %6041 = vmatpush1.msra.mxu0 0.0
  %6042 = vmatprep.subr.mxu0 0.0
  %6043 = vmatpush1.msra.mxu0 0.0
  %6044 = vmatprep.subr.mxu0 0.0
  %6045 = vmatpush1.msra.mxu0 0.0
  %6046 = vmatprep.subr.mxu0 0.0
  %6047 = vmatpush1.msra.mxu0 %v6019
  %6048 = vmatprep.subr.mxu0 0.0
  %6049 = vmatpush1.msra.mxu0 %v6018
  %6050 = vmatprep.subr.mxu0 0.0
  %6051 = vmatpush1.msra.mxu0 %v6017
  %6052 = vmatprep.subr.mxu0 0.0
  %6053 = vmatpush1.msra.mxu0 %v6016
  %6054 = vmatprep.subr.mxu0 0.0
  %6055 = vmatpush1.msra.mxu0 %v6015
  %6056 = vmatprep.subr.mxu0 0.0
  %6057 = vmatpush1.msra.mxu0 %v6014
  %6058 = vmatprep.subr.mxu0 0.0
  %6059 = vmatpush1.msra.mxu0 %v6013
  %6060 = vmatprep.subr.mxu0 0.0
  %6061 = vmatpush1.msra.mxu0 %v6012
  %6062 = vmatprep.subr.mxu0 0.0
  %6063 = vmatpush2.msra.mxu0 0.0
  %6064 = vmatprep.subr.mxu0 0.0
  %6065 = vmatpush2.msra.mxu0 0.0
  %6066 = vmatprep.subr.mxu0 0.0
  %6067 = vmatpush2.msra.mxu0 0.0
  %6068 = vmatprep.subr.mxu0 0.0
  %6069 = vmatpush2.msra.mxu0 0.0
  %6070 = vmatprep.subr.mxu0 0.0
  %6071 = vmatpush2.msra.mxu0 0.0
  %6072 = vmatprep.subr.mxu0 0.0
  %6073 = vmatpush2.msra.mxu0 0.0
  %6074 = vmatprep.subr.mxu0 0.0
  %6075 = vmatpush2.msra.mxu0 0.0
  %6076 = vmatprep.subr.mxu0 0.0
  %6077 = vmatpush2.msra.mxu0 0.0
  %6078 = vmatprep.subr.mxu0 0.0
  %6079 = vmatpush2.msra.mxu0 0.0
  %6080 = vmatprep.subr.mxu0 0.0
  %6081 = vmatpush2.msra.mxu0 0.0
  %6082 = vmatprep.subr.mxu0 0.0
  %6083 = vmatpush2.msra.mxu0 0.0
  %6084 = vmatprep.subr.mxu0 0.0
  %6085 = vmatpush2.msra.mxu0 0.0
  %6086 = vmatprep.subr.mxu0 0.0
  %6087 = vmatpush2.msra.mxu0 0.0
  %6088 = vmatprep.subr.mxu0 0.0
  %6089 = vmatpush2.msra.mxu0 0.0
  %6090 = vmatprep.subr.mxu0 0.0
  %6091 = vmatpush2.msra.mxu0 0.0
  %6092 = vmatprep.subr.mxu0 0.0
  %6093 = vmatpush2.msra.mxu0 0.0
  %6094 = vmatprep.mubr.f32.mxu0 0.0
  %6095 = vmatmul.mubr.f32.gmra.mxu0 %v6028
  %v6096 = vpop.f32.mrf.mxu0
  %v6097 = vadd.f32 %v6025, %v6096
  %v6098 = vpop.f32.mrf.mxu0
  %6099 = vdwg.mxu0
  %vm6100 = vcmask 15360
  %6101 = vst.msk [vmem:[%s9] sm:$0xff] %vm6100, %v6097
  // Predicated region
  $region38: #{tpu_custom_call.1} parent=0 // pred_check
    _
  $region39: #{tpu_custom_call.1} parent=0 // pred_check_branch
    %6103 = sbr.rel (0) target = $region41
  $region40: #{tpu_custom_call.1} parent=0 // pred_region
    _
  $region41: #{tpu_custom_call.1} parent=0 // pred_fallthru
    _
  // Predicated region
  $region42: #{tpu_custom_call.1} parent=0 // pred_check
    _
  $region43: #{tpu_custom_call.1} parent=0 // pred_check_branch
    %6105 = sbr.rel (0) target = $region45
  $region44: #{tpu_custom_call.1} parent=0 // pred_region
    _
  $region45: #{tpu_custom_call.1} parent=0 // pred_fallthru
    _

</llo_original>
